<compile_context>
chip_gen: v6e
topology: v6e:2x2x1
jax: 0.10.0
libtpu: 0.0.40
codegen_flags: <defaults>
</compile_context>

<pallas_src>
import jax
import jax.numpy as jnp
import numpy as np
from jax import lax
from jax.experimental import pallas as pl
from jax.experimental.pallas import tpu as pltpu


# ------------------------------ fused kernel ------------------------------------
def _fused_down_layer_kernel(x_ref, w1_ref, w2_ref, b1_ref, b2_ref,
                             o_ref, pad1_ref, pad2_ref):
    # x_ref : (1, Ho, 2, Wo, 2*Cin)  one batch element, pooling-friendly view
    # w1_ref: (9, Cin,  Cmid)        conv1 taps (BN scale pre-folded), t = dy*3+dx
    # w2_ref: (9, Cmid, Cout)        conv2 taps (BN scale pre-folded)
    # b*_ref: (1, C)                 folded BatchNorm bias (conv bias folded in)
    # o_ref : (1, Cout, Ho*Wo)       channel-major output
    # pad1_ref: (Ho+2, Wo+2, Cin)    VMEM halo scratch for conv1 input
    # pad2_ref: (Ho+2, Wo+2, Cmid)   VMEM halo scratch for conv2 input
    Hp2, Wp2, Cin = pad1_ref.shape
    Ho, Wo = Hp2 - 2, Wp2 - 2
    Cmid = pad2_ref.shape[-1]
    Cout = o_ref.shape[1]
    HW = Ho * Wo

    # ---- fused 2x2 max-pool (stride 2) ----
    xa = x_ref[0, :, 0, :, :]                                 # (Ho, Wo, 2*Cin) even rows
    xb = x_ref[0, :, 1, :, :]                                 # (Ho, Wo, 2*Cin) odd rows
    hm = jnp.maximum(xa, xb)
    pooled = jnp.maximum(hm[:, :, :Cin], hm[:, :, Cin:])      # (Ho, Wo, Cin)

    # ---- 3x3 'same' conv as 9 accumulated (HW, Cin) x (Cin, Cout) matmuls ----
    def conv3x3(xpad_ref, w_ref, cin, cout):
        acc = jnp.zeros((HW, cout), jnp.float32)
        for dy in range(3):
            for dx in range(3):
                patch = xpad_ref[dy:dy + Ho, dx:dx + Wo, :].reshape(HW, cin)
                acc = acc + jnp.dot(patch, w_ref[dy * 3 + dx],
                                    preferred_element_type=jnp.float32)
        return acc

    # ---- conv1 + (folded) BN + ReLU -- padding handled in VMEM scratch ----
    pad1_ref[...] = jnp.zeros_like(pad1_ref)
    pad1_ref[1:Ho + 1, 1:Wo + 1, :] = pooled.astype(pad1_ref.dtype)
    h1 = jnp.maximum(conv3x3(pad1_ref, w1_ref, Cin, Cmid) + b1_ref[...], 0.0)   # (HW, Cmid)

    # ---- conv2 + (folded) BN + ReLU ----
    pad2_ref[...] = jnp.zeros_like(pad2_ref)
    pad2_ref[1:Ho + 1, 1:Wo + 1, :] = h1.reshape(Ho, Wo, Cmid).astype(pad2_ref.dtype)
    h2 = jnp.maximum(conv3x3(pad2_ref, w2_ref, Cmid, Cout) + b2_ref[...], 0.0)  # (HW, Cout)

    # ---- channel-major store: (HW, Cout) -> (Cout, HW); wrapper reshape is free ----
    o_ref[0, :, :] = jnp.transpose(h2, (1, 0)).astype(o_ref.dtype)


# --------------------------------- parameters ----------------------------------
def init_params(key, in_ch, out_ch):
    ks = jax.random.split(key, 12)

    def conv_params(kw, kb, cin, cout):
        w = 0.1 * jax.random.normal(kw, (cout, cin, 3, 3), jnp.float32)  # OIHW (PyTorch)
        b = 0.1 * jax.random.normal(kb, (cout,), jnp.float32)
        return w, b

    def bn_params(kg, kb, km, kv, c):
        gamma = 1.0 + 0.1 * jax.random.normal(kg, (c,), jnp.float32)
        beta = 0.1 * jax.random.normal(kb, (c,), jnp.float32)
        rmean = 0.1 * jax.random.normal(km, (c,), jnp.float32)
        rvar = jnp.abs(1.0 + 0.1 * jax.random.normal(kv, (c,), jnp.float32))
        return gamma, beta, rmean, rvar

    w1, b1 = conv_params(ks[0], ks[1], in_ch, out_ch)
    g1, be1, m1, v1 = bn_params(ks[2], ks[3], ks[4], ks[5], out_ch)
    w2, b2 = conv_params(ks[6], ks[7], out_ch, out_ch)
    g2, be2, m2, v2 = bn_params(ks[8], ks[9], ks[10], ks[11], out_ch)
    return (w1, b1, g1, be1, m1, v1, w2, b2, g2, be2, m2, v2)


def fold_bn(conv_bias, gamma, beta, rmean, rvar, eps=1e-5):
    # TODO(synk): BatchNorm is applied in inference mode (running stats); PyTorch
    # train-mode batch statistics would require an extra cross-batch reduction pass.
    scale = gamma / jnp.sqrt(rvar + eps)
    bias = beta + (conv_bias - rmean) * scale
    return scale, bias


# -------------------------------- forward passes --------------------------------
def down_layer_forward(x_nchw, params):
    (w1, b1, g1, be1, m1, v1, w2, b2, g2, be2, m2, v2) = params
    B, Cin, H, W = x_nchw.shape
    Cout = w1.shape[0]
    Ho, Wo = H // 2, W // 2

    # glue: NCHW -> NHWC transpose, then a FREE reshape exposing the 2x2 pool window
    x = jnp.transpose(x_nchw, (0, 2, 3, 1))                   # (B, H, W, Cin)
    xr = x.reshape(B, Ho, 2, Wo, 2 * Cin)

    # fold BN scale into the (tiny) conv weights, BN+conv bias into one bias vector
    s1, bb1 = fold_bn(b1, g1, be1, m1, v1)
    s2, bb2 = fold_bn(b2, g2, be2, m2, v2)
    w1_k = (jnp.transpose(w1, (2, 3, 1, 0)) * s1).reshape(9, Cin, Cout)   # (9, Cin, Cout)
    w2_k = (jnp.transpose(w2, (2, 3, 1, 0)) * s2).reshape(9, Cout, Cout)  # (9, Cmid, Cout)

    out = pl.pallas_call(
        _fused_down_layer_kernel,
        out_shape=jax.ShapeDtypeStruct((B, Cout, Ho * Wo), x.dtype),
        grid=(B,),
        in_specs=[
            pl.BlockSpec((1, Ho, 2, Wo, 2 * Cin), lambda b: (b, 0, 0, 0, 0)),
            pl.BlockSpec((9, Cin, Cout), lambda b: (0, 0, 0)),
            pl.BlockSpec((9, Cout, Cout), lambda b: (0, 0, 0)),
            pl.BlockSpec((1, Cout), lambda b: (0, 0)),
            pl.BlockSpec((1, Cout), lambda b: (0, 0)),
        ],
        out_specs=pl.BlockSpec((1, Cout, Ho * Wo), lambda b: (b, 0, 0)),
        scratch_shapes=[
            pltpu.VMEM((Ho + 2, Wo + 2, Cin), jnp.float32),
            pltpu.VMEM((Ho + 2, Wo + 2, Cout), jnp.float32),
        ],
        compiler_params=pltpu.CompilerParams(dimension_semantics=("parallel",)),
    )(xr, w1_k, w2_k,
      bb1.reshape(1, Cout).astype(jnp.float32),
      bb2.reshape(1, Cout).astype(jnp.float32))

    # free reshape: (B, Cout, Ho*Wo) -> NCHW (no transpose needed)
    return out.reshape(B, Cout, Ho, Wo)


def down_layer_reference(x_nchw, params):
    (w1, b1, g1, be1, m1, v1, w2, b2, g2, be2, m2, v2) = params
    x = jnp.transpose(x_nchw, (0, 2, 3, 1))
    p = lax.reduce_window(x, -jnp.inf, lax.max, (1, 2, 2, 1), (1, 2, 2, 1), "VALID")

    def conv(xx, w_oihw, cb, g, be, m, v):
        w_hwio = jnp.transpose(w_oihw, (2, 3, 1, 0))
        y = lax.conv_general_dilated(xx, w_hwio, (1, 1), "SAME",
                                     dimension_numbers=("NHWC", "HWIO", "NHWC"))
        s, bb = fold_bn(cb, g, be, m, v)
        return jnp.maximum(y * s + bb, 0.0)

    h1 = conv(p, w1, b1, g1, be1, m1, v1)
    h2 = conv(h1, w2, b2, g2, be2, m2, v2)
    return jnp.transpose(h2, (0, 3, 1, 2))


# ------------------------------------ main ---------------------------------------
if __name__ == "__main__":
    key = jax.random.PRNGKey(0)
    kx, kp = jax.random.split(key)
    in_ch, out_ch = 4, 8
    x = jax.random.normal(kx, (2, in_ch, 16, 16), jnp.float32)   # NCHW like PyTorch
    params = init_params(kp, in_ch, out_ch)

    out = jax.jit(down_layer_forward)(x, params)
    out = jax.block_until_ready(out)

    ref = down_layer_reference(x, params)
    assert out.shape == (2, out_ch, 8, 8), out.shape
    np.testing.assert_allclose(np.asarray(out), np.asarray(ref), rtol=2e-3, atol=2e-3)
    print("KERNEL_OK")
</pallas_src>

<mosaic_0001>
module attributes {stable_mosaic.version = 11 : i64} {
  func.func @_fused_down_layer_kernel(%arg0: i32, %arg1: memref<1x8x2x8x8xf32, #tpu.memory_space<vmem>>, %arg2: memref<9x4x8xf32, #tpu.memory_space<vmem>>, %arg3: memref<9x8x8xf32, #tpu.memory_space<vmem>>, %arg4: memref<1x8xf32, #tpu.memory_space<vmem>>, %arg5: memref<1x8xf32, #tpu.memory_space<vmem>>, %arg6: memref<1x8x64xf32, #tpu.memory_space<vmem>>, %arg7: memref<10x10x4xf32, #tpu.memory_space<vmem>>, %arg8: memref<10x10x8xf32, #tpu.memory_space<vmem>>) attributes {dimension_semantics = [#tpu.dimension_semantics<parallel>], iteration_bounds = array<i64: 2>, scalar_prefetch = 0 : i64, scratch_operands = 2 : i64, tpu.core_type = #tpu.core_type<tc>, window_params = [{transform_indices = @transform_0, window_bounds = array<i64: 1, 8, 2, 8, 8>}, {pipeline_mode = #tpu.pipeline_mode<synchronous>, transform_indices = @transform_1, window_bounds = array<i64: 9, 4, 8>}, {pipeline_mode = #tpu.pipeline_mode<synchronous>, transform_indices = @transform_2, window_bounds = array<i64: 9, 8, 8>}, {pipeline_mode = #tpu.pipeline_mode<synchronous>, transform_indices = @transform_3, window_bounds = array<i64: 1, 8>}, {pipeline_mode = #tpu.pipeline_mode<synchronous>, transform_indices = @transform_4, window_bounds = array<i64: 1, 8>}, {transform_indices = @transform_5, window_bounds = array<i64: 1, 8, 64>}]} {
    %c0 = arith.constant 0 : index
    %c0_0 = arith.constant 0 : index
    %c0_1 = arith.constant 0 : index
    %c0_2 = arith.constant 0 : index
    %c0_3 = arith.constant 0 : index
    %0 = vector.load %arg1[%c0, %c0_0, %c0_1, %c0_2, %c0_3] : memref<1x8x2x8x8xf32, #tpu.memory_space<vmem>>, vector<1x8x1x8x8xf32>
    %1 = vector.shape_cast %0 : vector<1x8x1x8x8xf32> to vector<8x8x8xf32>
    %c0_4 = arith.constant 0 : index
    %c0_5 = arith.constant 0 : index
    %c1 = arith.constant 1 : index
    %c0_6 = arith.constant 0 : index
    %c0_7 = arith.constant 0 : index
    %2 = vector.load %arg1[%c0_4, %c0_5, %c1, %c0_6, %c0_7] : memref<1x8x2x8x8xf32, #tpu.memory_space<vmem>>, vector<1x8x1x8x8xf32>
    %3 = vector.shape_cast %2 : vector<1x8x1x8x8xf32> to vector<8x8x8xf32>
    %4 = arith.maximumf %1, %3 : vector<8x8x8xf32>
    %5 = vector.extract_strided_slice %4 {offsets = [0, 0, 0], sizes = [8, 8, 4], strides = [1, 1, 1]} : vector<8x8x8xf32> to vector<8x8x4xf32>
    %6 = vector.extract_strided_slice %4 {offsets = [0, 0, 4], sizes = [8, 8, 4], strides = [1, 1, 1]} : vector<8x8x8xf32> to vector<8x8x4xf32>
    %7 = arith.maximumf %5, %6 : vector<8x8x4xf32>
    %cst = arith.constant 0.000000e+00 : f32
    %8 = vector.broadcast %cst : f32 to vector<10x10x4xf32>
    %c0_8 = arith.constant 0 : index
    %c0_9 = arith.constant 0 : index
    %c0_10 = arith.constant 0 : index
    %9 = vector.load %arg7[%c0_8, %c0_9, %c0_10] : memref<10x10x4xf32, #tpu.memory_space<vmem>>, vector<10x10x4xf32>
    tpu.vector_store %arg7[%c0_8, %c0_9, %c0_10], %8 {strides = array<i32>} : memref<10x10x4xf32, #tpu.memory_space<vmem>>, vector<10x10x4xf32>,
    %c1_11 = arith.constant 1 : index
    %c1_12 = arith.constant 1 : index
    %c0_13 = arith.constant 0 : index
    %10 = vector.load %arg7[%c1_11, %c1_12, %c0_13] : memref<10x10x4xf32, #tpu.memory_space<vmem>>, vector<8x8x4xf32>
    tpu.vector_store %arg7[%c1_11, %c1_12, %c0_13], %7 {strides = array<i32>} : memref<10x10x4xf32, #tpu.memory_space<vmem>>, vector<8x8x4xf32>,
    %cst_14 = arith.constant 0.000000e+00 : f32
    %11 = vector.broadcast %cst_14 : f32 to vector<64x8xf32>
    %c0_15 = arith.constant 0 : index
    %c0_16 = arith.constant 0 : index
    %c0_17 = arith.constant 0 : index
    %12 = vector.load %arg7[%c0_15, %c0_16, %c0_17] : memref<10x10x4xf32, #tpu.memory_space<vmem>>, vector<8x8x4xf32>
    %13 = vector.shape_cast %12 : vector<8x8x4xf32> to vector<64x4xf32>
    %c0_18 = arith.constant 0 : index
    %c0_19 = arith.constant 0 : index
    %c0_20 = arith.constant 0 : index
    %14 = vector.load %arg2[%c0_18, %c0_19, %c0_20] : memref<9x4x8xf32, #tpu.memory_space<vmem>>, vector<1x4x8xf32>
    %15 = vector.shape_cast %14 : vector<1x4x8xf32> to vector<4x8xf32>
    %cst_21 = arith.constant dense<0.000000e+00> : vector<64x8xf32>
    %16 = tpu.matmul %13, %15, %cst_21 {dimension_numbers = #tpu.dot_dimension_numbers<[1], [0], [0], [1], [0, 0, 1, 1], [], []>} : vector<64x4xf32>, vector<4x8xf32>, vector<64x8xf32> -> vector<64x8xf32>
    %17 = arith.addf %11, %16 : vector<64x8xf32>
    %c0_22 = arith.constant 0 : index
    %c1_23 = arith.constant 1 : index
    %c0_24 = arith.constant 0 : index
    %18 = vector.load %arg7[%c0_22, %c1_23, %c0_24] : memref<10x10x4xf32, #tpu.memory_space<vmem>>, vector<8x8x4xf32>
    %19 = vector.shape_cast %18 : vector<8x8x4xf32> to vector<64x4xf32>
    %c1_25 = arith.constant 1 : index
    %c0_26 = arith.constant 0 : index
    %c0_27 = arith.constant 0 : index
    %20 = vector.load %arg2[%c1_25, %c0_26, %c0_27] : memref<9x4x8xf32, #tpu.memory_space<vmem>>, vector<1x4x8xf32>
    %21 = vector.shape_cast %20 : vector<1x4x8xf32> to vector<4x8xf32>
    %cst_28 = arith.constant dense<0.000000e+00> : vector<64x8xf32>
    %22 = tpu.matmul %19, %21, %cst_28 {dimension_numbers = #tpu.dot_dimension_numbers<[1], [0], [0], [1], [0, 0, 1, 1], [], []>} : vector<64x4xf32>, vector<4x8xf32>, vector<64x8xf32> -> vector<64x8xf32>
    %23 = arith.addf %17, %22 : vector<64x8xf32>
    %c0_29 = arith.constant 0 : index
    %c2 = arith.constant 2 : index
    %c0_30 = arith.constant 0 : index
    %24 = vector.load %arg7[%c0_29, %c2, %c0_30] : memref<10x10x4xf32, #tpu.memory_space<vmem>>, vector<8x8x4xf32>
    %25 = vector.shape_cast %24 : vector<8x8x4xf32> to vector<64x4xf32>
    %c2_31 = arith.constant 2 : index
    %c0_32 = arith.constant 0 : index
    %c0_33 = arith.constant 0 : index
    %26 = vector.load %arg2[%c2_31, %c0_32, %c0_33] : memref<9x4x8xf32, #tpu.memory_space<vmem>>, vector<1x4x8xf32>
    %27 = vector.shape_cast %26 : vector<1x4x8xf32> to vector<4x8xf32>
    %cst_34 = arith.constant dense<0.000000e+00> : vector<64x8xf32>
    %28 = tpu.matmul %25, %27, %cst_34 {dimension_numbers = #tpu.dot_dimension_numbers<[1], [0], [0], [1], [0, 0, 1, 1], [], []>} : vector<64x4xf32>, vector<4x8xf32>, vector<64x8xf32> -> vector<64x8xf32>
    %29 = arith.addf %23, %28 : vector<64x8xf32>
    %c1_35 = arith.constant 1 : index
    %c0_36 = arith.constant 0 : index
    %c0_37 = arith.constant 0 : index
    %30 = vector.load %arg7[%c1_35, %c0_36, %c0_37] : memref<10x10x4xf32, #tpu.memory_space<vmem>>, vector<8x8x4xf32>
    %31 = vector.shape_cast %30 : vector<8x8x4xf32> to vector<64x4xf32>
    %c3 = arith.constant 3 : index
    %c0_38 = arith.constant 0 : index
    %c0_39 = arith.constant 0 : index
    %32 = vector.load %arg2[%c3, %c0_38, %c0_39] : memref<9x4x8xf32, #tpu.memory_space<vmem>>, vector<1x4x8xf32>
    %33 = vector.shape_cast %32 : vector<1x4x8xf32> to vector<4x8xf32>
    %cst_40 = arith.constant dense<0.000000e+00> : vector<64x8xf32>
    %34 = tpu.matmul %31, %33, %cst_40 {dimension_numbers = #tpu.dot_dimension_numbers<[1], [0], [0], [1], [0, 0, 1, 1], [], []>} : vector<64x4xf32>, vector<4x8xf32>, vector<64x8xf32> -> vector<64x8xf32>
    %35 = arith.addf %29, %34 : vector<64x8xf32>
    %c1_41 = arith.constant 1 : index
    %c1_42 = arith.constant 1 : index
    %c0_43 = arith.constant 0 : index
    %36 = vector.load %arg7[%c1_41, %c1_42, %c0_43] : memref<10x10x4xf32, #tpu.memory_space<vmem>>, vector<8x8x4xf32>
    %37 = vector.shape_cast %36 : vector<8x8x4xf32> to vector<64x4xf32>
    %c4 = arith.constant 4 : index
    %c0_44 = arith.constant 0 : index
    %c0_45 = arith.constant 0 : index
    %38 = vector.load %arg2[%c4, %c0_44, %c0_45] : memref<9x4x8xf32, #tpu.memory_space<vmem>>, vector<1x4x8xf32>
    %39 = vector.shape_cast %38 : vector<1x4x8xf32> to vector<4x8xf32>
    %cst_46 = arith.constant dense<0.000000e+00> : vector<64x8xf32>
    %40 = tpu.matmul %37, %39, %cst_46 {dimension_numbers = #tpu.dot_dimension_numbers<[1], [0], [0], [1], [0, 0, 1, 1], [], []>} : vector<64x4xf32>, vector<4x8xf32>, vector<64x8xf32> -> vector<64x8xf32>
    %41 = arith.addf %35, %40 : vector<64x8xf32>
    %c1_47 = arith.constant 1 : index
    %c2_48 = arith.constant 2 : index
    %c0_49 = arith.constant 0 : index
    %42 = vector.load %arg7[%c1_47, %c2_48, %c0_49] : memref<10x10x4xf32, #tpu.memory_space<vmem>>, vector<8x8x4xf32>
    %43 = vector.shape_cast %42 : vector<8x8x4xf32> to vector<64x4xf32>
    %c5 = arith.constant 5 : index
    %c0_50 = arith.constant 0 : index
    %c0_51 = arith.constant 0 : index
    %44 = vector.load %arg2[%c5, %c0_50, %c0_51] : memref<9x4x8xf32, #tpu.memory_space<vmem>>, vector<1x4x8xf32>
    %45 = vector.shape_cast %44 : vector<1x4x8xf32> to vector<4x8xf32>
    %cst_52 = arith.constant dense<0.000000e+00> : vector<64x8xf32>
    %46 = tpu.matmul %43, %45, %cst_52 {dimension_numbers = #tpu.dot_dimension_numbers<[1], [0], [0], [1], [0, 0, 1, 1], [], []>} : vector<64x4xf32>, vector<4x8xf32>, vector<64x8xf32> -> vector<64x8xf32>
    %47 = arith.addf %41, %46 : vector<64x8xf32>
    %c2_53 = arith.constant 2 : index
    %c0_54 = arith.constant 0 : index
    %c0_55 = arith.constant 0 : index
    %48 = vector.load %arg7[%c2_53, %c0_54, %c0_55] : memref<10x10x4xf32, #tpu.memory_space<vmem>>, vector<8x8x4xf32>
    %49 = vector.shape_cast %48 : vector<8x8x4xf32> to vector<64x4xf32>
    %c6 = arith.constant 6 : index
    %c0_56 = arith.constant 0 : index
    %c0_57 = arith.constant 0 : index
    %50 = vector.load %arg2[%c6, %c0_56, %c0_57] : memref<9x4x8xf32, #tpu.memory_space<vmem>>, vector<1x4x8xf32>
    %51 = vector.shape_cast %50 : vector<1x4x8xf32> to vector<4x8xf32>
    %cst_58 = arith.constant dense<0.000000e+00> : vector<64x8xf32>
    %52 = tpu.matmul %49, %51, %cst_58 {dimension_numbers = #tpu.dot_dimension_numbers<[1], [0], [0], [1], [0, 0, 1, 1], [], []>} : vector<64x4xf32>, vector<4x8xf32>, vector<64x8xf32> -> vector<64x8xf32>
    %53 = arith.addf %47, %52 : vector<64x8xf32>
    %c2_59 = arith.constant 2 : index
    %c1_60 = arith.constant 1 : index
    %c0_61 = arith.constant 0 : index
    %54 = vector.load %arg7[%c2_59, %c1_60, %c0_61] : memref<10x10x4xf32, #tpu.memory_space<vmem>>, vector<8x8x4xf32>
    %55 = vector.shape_cast %54 : vector<8x8x4xf32> to vector<64x4xf32>
    %c7 = arith.constant 7 : index
    %c0_62 = arith.constant 0 : index
    %c0_63 = arith.constant 0 : index
    %56 = vector.load %arg2[%c7, %c0_62, %c0_63] : memref<9x4x8xf32, #tpu.memory_space<vmem>>, vector<1x4x8xf32>
    %57 = vector.shape_cast %56 : vector<1x4x8xf32> to vector<4x8xf32>
    %cst_64 = arith.constant dense<0.000000e+00> : vector<64x8xf32>
    %58 = tpu.matmul %55, %57, %cst_64 {dimension_numbers = #tpu.dot_dimension_numbers<[1], [0], [0], [1], [0, 0, 1, 1], [], []>} : vector<64x4xf32>, vector<4x8xf32>, vector<64x8xf32> -> vector<64x8xf32>
    %59 = arith.addf %53, %58 : vector<64x8xf32>
    %c2_65 = arith.constant 2 : index
    %c2_66 = arith.constant 2 : index
    %c0_67 = arith.constant 0 : index
    %60 = vector.load %arg7[%c2_65, %c2_66, %c0_67] : memref<10x10x4xf32, #tpu.memory_space<vmem>>, vector<8x8x4xf32>
    %61 = vector.shape_cast %60 : vector<8x8x4xf32> to vector<64x4xf32>
    %c8 = arith.constant 8 : index
    %c0_68 = arith.constant 0 : index
    %c0_69 = arith.constant 0 : index
    %62 = vector.load %arg2[%c8, %c0_68, %c0_69] : memref<9x4x8xf32, #tpu.memory_space<vmem>>, vector<1x4x8xf32>
    %63 = vector.shape_cast %62 : vector<1x4x8xf32> to vector<4x8xf32>
    %cst_70 = arith.constant dense<0.000000e+00> : vector<64x8xf32>
    %64 = tpu.matmul %61, %63, %cst_70 {dimension_numbers = #tpu.dot_dimension_numbers<[1], [0], [0], [1], [0, 0, 1, 1], [], []>} : vector<64x4xf32>, vector<4x8xf32>, vector<64x8xf32> -> vector<64x8xf32>
    %65 = arith.addf %59, %64 : vector<64x8xf32>
    %c0_71 = arith.constant 0 : index
    %c0_72 = arith.constant 0 : index
    %66 = vector.load %arg4[%c0_71, %c0_72] : memref<1x8xf32, #tpu.memory_space<vmem>>, vector<1x8xf32>
    %67 = vector.broadcast %66 : vector<1x8xf32> to vector<64x8xf32>
    %68 = arith.addf %65, %67 : vector<64x8xf32>
    %cst_73 = arith.constant 0.000000e+00 : f32
    %69 = vector.broadcast %cst_73 : f32 to vector<64x8xf32>
    %70 = arith.maximumf %68, %69 : vector<64x8xf32>
    %cst_74 = arith.constant 0.000000e+00 : f32
    %71 = vector.broadcast %cst_74 : f32 to vector<10x10x8xf32>
    %c0_75 = arith.constant 0 : index
    %c0_76 = arith.constant 0 : index
    %c0_77 = arith.constant 0 : index
    %72 = vector.load %arg8[%c0_75, %c0_76, %c0_77] : memref<10x10x8xf32, #tpu.memory_space<vmem>>, vector<10x10x8xf32>
    tpu.vector_store %arg8[%c0_75, %c0_76, %c0_77], %71 {strides = array<i32>} : memref<10x10x8xf32, #tpu.memory_space<vmem>>, vector<10x10x8xf32>,
    %73 = vector.shape_cast %70 : vector<64x8xf32> to vector<8x8x8xf32>
    %c1_78 = arith.constant 1 : index
    %c1_79 = arith.constant 1 : index
    %c0_80 = arith.constant 0 : index
    %74 = vector.load %arg8[%c1_78, %c1_79, %c0_80] : memref<10x10x8xf32, #tpu.memory_space<vmem>>, vector<8x8x8xf32>
    tpu.vector_store %arg8[%c1_78, %c1_79, %c0_80], %73 {strides = array<i32>} : memref<10x10x8xf32, #tpu.memory_space<vmem>>, vector<8x8x8xf32>,
    %cst_81 = arith.constant 0.000000e+00 : f32
    %75 = vector.broadcast %cst_81 : f32 to vector<64x8xf32>
    %c0_82 = arith.constant 0 : index
    %c0_83 = arith.constant 0 : index
    %c0_84 = arith.constant 0 : index
    %76 = vector.load %arg8[%c0_82, %c0_83, %c0_84] : memref<10x10x8xf32, #tpu.memory_space<vmem>>, vector<8x8x8xf32>
    %77 = vector.shape_cast %76 : vector<8x8x8xf32> to vector<64x8xf32>
    %c0_85 = arith.constant 0 : index
    %c0_86 = arith.constant 0 : index
    %c0_87 = arith.constant 0 : index
    %78 = vector.load %arg3[%c0_85, %c0_86, %c0_87] : memref<9x8x8xf32, #tpu.memory_space<vmem>>, vector<1x8x8xf32>
    %79 = vector.shape_cast %78 : vector<1x8x8xf32> to vector<8x8xf32>
    %cst_88 = arith.constant dense<0.000000e+00> : vector<64x8xf32>
    %80 = tpu.matmul %77, %79, %cst_88 {dimension_numbers = #tpu.dot_dimension_numbers<[1], [0], [0], [1], [0, 0, 1, 1], [], []>} : vector<64x8xf32>, vector<8x8xf32>, vector<64x8xf32> -> vector<64x8xf32>
    %81 = arith.addf %75, %80 : vector<64x8xf32>
    %c0_89 = arith.constant 0 : index
    %c1_90 = arith.constant 1 : index
    %c0_91 = arith.constant 0 : index
    %82 = vector.load %arg8[%c0_89, %c1_90, %c0_91] : memref<10x10x8xf32, #tpu.memory_space<vmem>>, vector<8x8x8xf32>
    %83 = vector.shape_cast %82 : vector<8x8x8xf32> to vector<64x8xf32>
    %c1_92 = arith.constant 1 : index
    %c0_93 = arith.constant 0 : index
    %c0_94 = arith.constant 0 : index
    %84 = vector.load %arg3[%c1_92, %c0_93, %c0_94] : memref<9x8x8xf32, #tpu.memory_space<vmem>>, vector<1x8x8xf32>
    %85 = vector.shape_cast %84 : vector<1x8x8xf32> to vector<8x8xf32>
    %cst_95 = arith.constant dense<0.000000e+00> : vector<64x8xf32>
    %86 = tpu.matmul %83, %85, %cst_95 {dimension_numbers = #tpu.dot_dimension_numbers<[1], [0], [0], [1], [0, 0, 1, 1], [], []>} : vector<64x8xf32>, vector<8x8xf32>, vector<64x8xf32> -> vector<64x8xf32>
    %87 = arith.addf %81, %86 : vector<64x8xf32>
    %c0_96 = arith.constant 0 : index
    %c2_97 = arith.constant 2 : index
    %c0_98 = arith.constant 0 : index
    %88 = vector.load %arg8[%c0_96, %c2_97, %c0_98] : memref<10x10x8xf32, #tpu.memory_space<vmem>>, vector<8x8x8xf32>
    %89 = vector.shape_cast %88 : vector<8x8x8xf32> to vector<64x8xf32>
    %c2_99 = arith.constant 2 : index
    %c0_100 = arith.constant 0 : index
    %c0_101 = arith.constant 0 : index
    %90 = vector.load %arg3[%c2_99, %c0_100, %c0_101] : memref<9x8x8xf32, #tpu.memory_space<vmem>>, vector<1x8x8xf32>
    %91 = vector.shape_cast %90 : vector<1x8x8xf32> to vector<8x8xf32>
    %cst_102 = arith.constant dense<0.000000e+00> : vector<64x8xf32>
    %92 = tpu.matmul %89, %91, %cst_102 {dimension_numbers = #tpu.dot_dimension_numbers<[1], [0], [0], [1], [0, 0, 1, 1], [], []>} : vector<64x8xf32>, vector<8x8xf32>, vector<64x8xf32> -> vector<64x8xf32>
    %93 = arith.addf %87, %92 : vector<64x8xf32>
    %c1_103 = arith.constant 1 : index
    %c0_104 = arith.constant 0 : index
    %c0_105 = arith.constant 0 : index
    %94 = vector.load %arg8[%c1_103, %c0_104, %c0_105] : memref<10x10x8xf32, #tpu.memory_space<vmem>>, vector<8x8x8xf32>
    %95 = vector.shape_cast %94 : vector<8x8x8xf32> to vector<64x8xf32>
    %c3_106 = arith.constant 3 : index
    %c0_107 = arith.constant 0 : index
    %c0_108 = arith.constant 0 : index
    %96 = vector.load %arg3[%c3_106, %c0_107, %c0_108] : memref<9x8x8xf32, #tpu.memory_space<vmem>>, vector<1x8x8xf32>
    %97 = vector.shape_cast %96 : vector<1x8x8xf32> to vector<8x8xf32>
    %cst_109 = arith.constant dense<0.000000e+00> : vector<64x8xf32>
    %98 = tpu.matmul %95, %97, %cst_109 {dimension_numbers = #tpu.dot_dimension_numbers<[1], [0], [0], [1], [0, 0, 1, 1], [], []>} : vector<64x8xf32>, vector<8x8xf32>, vector<64x8xf32> -> vector<64x8xf32>
    %99 = arith.addf %93, %98 : vector<64x8xf32>
    %c1_110 = arith.constant 1 : index
    %c1_111 = arith.constant 1 : index
    %c0_112 = arith.constant 0 : index
    %100 = vector.load %arg8[%c1_110, %c1_111, %c0_112] : memref<10x10x8xf32, #tpu.memory_space<vmem>>, vector<8x8x8xf32>
    %101 = vector.shape_cast %100 : vector<8x8x8xf32> to vector<64x8xf32>
    %c4_113 = arith.constant 4 : index
    %c0_114 = arith.constant 0 : index
    %c0_115 = arith.constant 0 : index
    %102 = vector.load %arg3[%c4_113, %c0_114, %c0_115] : memref<9x8x8xf32, #tpu.memory_space<vmem>>, vector<1x8x8xf32>
    %103 = vector.shape_cast %102 : vector<1x8x8xf32> to vector<8x8xf32>
    %cst_116 = arith.constant dense<0.000000e+00> : vector<64x8xf32>
    %104 = tpu.matmul %101, %103, %cst_116 {dimension_numbers = #tpu.dot_dimension_numbers<[1], [0], [0], [1], [0, 0, 1, 1], [], []>} : vector<64x8xf32>, vector<8x8xf32>, vector<64x8xf32> -> vector<64x8xf32>
    %105 = arith.addf %99, %104 : vector<64x8xf32>
    %c1_117 = arith.constant 1 : index
    %c2_118 = arith.constant 2 : index
    %c0_119 = arith.constant 0 : index
    %106 = vector.load %arg8[%c1_117, %c2_118, %c0_119] : memref<10x10x8xf32, #tpu.memory_space<vmem>>, vector<8x8x8xf32>
    %107 = vector.shape_cast %106 : vector<8x8x8xf32> to vector<64x8xf32>
    %c5_120 = arith.constant 5 : index
    %c0_121 = arith.constant 0 : index
    %c0_122 = arith.constant 0 : index
    %108 = vector.load %arg3[%c5_120, %c0_121, %c0_122] : memref<9x8x8xf32, #tpu.memory_space<vmem>>, vector<1x8x8xf32>
    %109 = vector.shape_cast %108 : vector<1x8x8xf32> to vector<8x8xf32>
    %cst_123 = arith.constant dense<0.000000e+00> : vector<64x8xf32>
    %110 = tpu.matmul %107, %109, %cst_123 {dimension_numbers = #tpu.dot_dimension_numbers<[1], [0], [0], [1], [0, 0, 1, 1], [], []>} : vector<64x8xf32>, vector<8x8xf32>, vector<64x8xf32> -> vector<64x8xf32>
    %111 = arith.addf %105, %110 : vector<64x8xf32>
    %c2_124 = arith.constant 2 : index
    %c0_125 = arith.constant 0 : index
    %c0_126 = arith.constant 0 : index
    %112 = vector.load %arg8[%c2_124, %c0_125, %c0_126] : memref<10x10x8xf32, #tpu.memory_space<vmem>>, vector<8x8x8xf32>
    %113 = vector.shape_cast %112 : vector<8x8x8xf32> to vector<64x8xf32>
    %c6_127 = arith.constant 6 : index
    %c0_128 = arith.constant 0 : index
    %c0_129 = arith.constant 0 : index
    %114 = vector.load %arg3[%c6_127, %c0_128, %c0_129] : memref<9x8x8xf32, #tpu.memory_space<vmem>>, vector<1x8x8xf32>
    %115 = vector.shape_cast %114 : vector<1x8x8xf32> to vector<8x8xf32>
    %cst_130 = arith.constant dense<0.000000e+00> : vector<64x8xf32>
    %116 = tpu.matmul %113, %115, %cst_130 {dimension_numbers = #tpu.dot_dimension_numbers<[1], [0], [0], [1], [0, 0, 1, 1], [], []>} : vector<64x8xf32>, vector<8x8xf32>, vector<64x8xf32> -> vector<64x8xf32>
    %117 = arith.addf %111, %116 : vector<64x8xf32>
    %c2_131 = arith.constant 2 : index
    %c1_132 = arith.constant 1 : index
    %c0_133 = arith.constant 0 : index
    %118 = vector.load %arg8[%c2_131, %c1_132, %c0_133] : memref<10x10x8xf32, #tpu.memory_space<vmem>>, vector<8x8x8xf32>
    %119 = vector.shape_cast %118 : vector<8x8x8xf32> to vector<64x8xf32>
    %c7_134 = arith.constant 7 : index
    %c0_135 = arith.constant 0 : index
    %c0_136 = arith.constant 0 : index
    %120 = vector.load %arg3[%c7_134, %c0_135, %c0_136] : memref<9x8x8xf32, #tpu.memory_space<vmem>>, vector<1x8x8xf32>
    %121 = vector.shape_cast %120 : vector<1x8x8xf32> to vector<8x8xf32>
    %cst_137 = arith.constant dense<0.000000e+00> : vector<64x8xf32>
    %122 = tpu.matmul %119, %121, %cst_137 {dimension_numbers = #tpu.dot_dimension_numbers<[1], [0], [0], [1], [0, 0, 1, 1], [], []>} : vector<64x8xf32>, vector<8x8xf32>, vector<64x8xf32> -> vector<64x8xf32>
    %123 = arith.addf %117, %122 : vector<64x8xf32>
    %c2_138 = arith.constant 2 : index
    %c2_139 = arith.constant 2 : index
    %c0_140 = arith.constant 0 : index
    %124 = vector.load %arg8[%c2_138, %c2_139, %c0_140] : memref<10x10x8xf32, #tpu.memory_space<vmem>>, vector<8x8x8xf32>
    %125 = vector.shape_cast %124 : vector<8x8x8xf32> to vector<64x8xf32>
    %c8_141 = arith.constant 8 : index
    %c0_142 = arith.constant 0 : index
    %c0_143 = arith.constant 0 : index
    %126 = vector.load %arg3[%c8_141, %c0_142, %c0_143] : memref<9x8x8xf32, #tpu.memory_space<vmem>>, vector<1x8x8xf32>
    %127 = vector.shape_cast %126 : vector<1x8x8xf32> to vector<8x8xf32>
    %cst_144 = arith.constant dense<0.000000e+00> : vector<64x8xf32>
    %128 = tpu.matmul %125, %127, %cst_144 {dimension_numbers = #tpu.dot_dimension_numbers<[1], [0], [0], [1], [0, 0, 1, 1], [], []>} : vector<64x8xf32>, vector<8x8xf32>, vector<64x8xf32> -> vector<64x8xf32>
    %129 = arith.addf %123, %128 : vector<64x8xf32>
    %c0_145 = arith.constant 0 : index
    %c0_146 = arith.constant 0 : index
    %130 = vector.load %arg5[%c0_145, %c0_146] : memref<1x8xf32, #tpu.memory_space<vmem>>, vector<1x8xf32>
    %131 = vector.broadcast %130 : vector<1x8xf32> to vector<64x8xf32>
    %132 = arith.addf %129, %131 : vector<64x8xf32>
    %cst_147 = arith.constant 0.000000e+00 : f32
    %133 = vector.broadcast %cst_147 : f32 to vector<64x8xf32>
    %134 = arith.maximumf %132, %133 : vector<64x8xf32>
    %135 = tpu.transpose %134, [1, 0] : vector<64x8xf32> -> vector<8x64xf32>
    %c0_148 = arith.constant 0 : index
    %c0_149 = arith.constant 0 : index
    %c0_150 = arith.constant 0 : index
    %136 = vector.load %arg6[%c0_148, %c0_149, %c0_150] : memref<1x8x64xf32, #tpu.memory_space<vmem>>, vector<1x8x64xf32>
    %137 = vector.shape_cast %136 : vector<1x8x64xf32> to vector<8x64xf32>
    %138 = vector.shape_cast %135 : vector<8x64xf32> to vector<1x8x64xf32>
    tpu.vector_store %arg6[%c0_148, %c0_149, %c0_150], %138 {strides = array<i32>} : memref<1x8x64xf32, #tpu.memory_space<vmem>>, vector<1x8x64xf32>,
    return
  }
  func.func @transform_0(%arg0: i32) -> (i32, i32, i32, i32, i32) {
    %c0_i32 = arith.constant 0 : i32
    %c0_i32_0 = arith.constant 0 : i32
    %c0_i32_1 = arith.constant 0 : i32
    %c0_i32_2 = arith.constant 0 : i32
    %c0_i32_3 = arith.constant 0 : i32
    return %arg0, %c0_i32, %c0_i32_0, %c0_i32_1, %c0_i32_2 : i32, i32, i32, i32, i32
  }
  func.func @transform_1(%arg0: i32) -> (i32, i32, i32) {
    %c0_i32 = arith.constant 0 : i32
    %c0_i32_0 = arith.constant 0 : i32
    %c0_i32_1 = arith.constant 0 : i32
    %c0_i32_2 = arith.constant 0 : i32
    return %c0_i32, %c0_i32_0, %c0_i32_1 : i32, i32, i32
  }
  func.func @transform_2(%arg0: i32) -> (i32, i32, i32) {
    %c0_i32 = arith.constant 0 : i32
    %c0_i32_0 = arith.constant 0 : i32
    %c0_i32_1 = arith.constant 0 : i32
    %c0_i32_2 = arith.constant 0 : i32
    return %c0_i32, %c0_i32_0, %c0_i32_1 : i32, i32, i32
  }
  func.func @transform_3(%arg0: i32) -> (i32, i32) {
    %c0_i32 = arith.constant 0 : i32
    %c0_i32_0 = arith.constant 0 : i32
    %c0_i32_1 = arith.constant 0 : i32
    return %c0_i32, %c0_i32_0 : i32, i32
  }
  func.func @transform_4(%arg0: i32) -> (i32, i32) {
    %c0_i32 = arith.constant 0 : i32
    %c0_i32_0 = arith.constant 0 : i32
    %c0_i32_1 = arith.constant 0 : i32
    return %c0_i32, %c0_i32_0 : i32, i32
  }
  func.func @transform_5(%arg0: i32) -> (i32, i32, i32) {
    %c0_i32 = arith.constant 0 : i32
    %c0_i32_0 = arith.constant 0 : i32
    %c0_i32_1 = arith.constant 0 : i32
    return %arg0, %c0_i32, %c0_i32_0 : i32, i32, i32
  }
}

</mosaic_0001>

<llo_original>
// kernel: down_layer_forward.1
$region0: #{down_layer_forward.1}
  #allocation0 [shape = 'u32[]', space=smem, size = 0x4, offset = 0x4, fixed_abs, tag = 'smem constant byte address 0x4 - core index']
  #allocation1 [shape = 'u32[144,128]{1,0:T(1,128)}', space=vmem, size = 0x12000, scoped, tag = 'internal scratch']
  #allocation2 [shape = 'f32[10,10,4]{2,1,0:T(8,128)}', space=vmem, size = 0x14000, scoped, tag = 'scratch operand']
  #allocation3 [shape = 'f32[10,10,8]{2,1,0:T(8,128)}', space=vmem, size = 0x14000, scoped, tag = 'scratch operand']
  %s0 = inlined_call_operand.vmem [shape: f32[2,8,2,8,8], index: 0, kind: input, shape index: {}]
  %s1 = inlined_call_operand.vmem [shape: f32[9,4,8], index: 1, kind: input, shape index: {}]
  %s2 = inlined_call_operand.vmem [shape: f32[9,8,8], index: 2, kind: input, shape index: {}]
  %s3 = inlined_call_operand.vmem [shape: f32[1,8], index: 3, kind: input, shape index: {}]
  %s4 = inlined_call_operand.vmem [shape: f32[1,8], index: 4, kind: input, shape index: {}]
  %s5 = inlined_call_operand.vmem [shape: f32[2,8,64], index: 5, kind: output, shape index: {}]
  %s6 = sld [smem:[#allocation0]]
  $region53: #{down_layer_forward.1} parent=0
    _
  %s8 = ssub.s32 1, %s6
  %s9 = scalar_select 0, %s8, %s6
  loop: start=0, step=1, limit=4
  $region2: #{down_layer_forward.1} parent=0 // loop_pre_header
    _
  $region3: #{down_layer_forward.1} parent=0 // loop_header
    %s11 = sphi 0, %s15
    %p12 = scmp.ge.s32.totalorder %s11, 4
    %s21 = sphi 0, %s23
    %s24 = sphi 0, %s21
    %s25 = sphi 0, %s24
    %s41 = sphi 0, %s25
    %s45 = sphi 0, %s45
    %s47 = sphi 0, %s45
    %s48 = sphi 0, %s47
    %s62 = sphi 0, %s48
    %s66 = sphi 0, %s66
    %s68 = sphi 0, %s66
    %s69 = sphi 0, %s68
    %s83 = sphi 0, %s69
    %s87 = sphi 0, %s87
    %s89 = sphi 0, %s87
    %s90 = sphi 0, %s89
    %s104 = sphi 0, %s90
    %s108 = sphi 0, %s108
    %s110 = sphi 0, %s108
    %s111 = sphi 0, %s110
    %s125 = sphi 0, %s111
    %s131 = sphi 0, %s133
    %s134 = sphi 0, %s131
    %s135 = sphi 0, %s134
    %s151 = sphi 0, %s135
  $region4: #{down_layer_forward.1} parent=0 // loop_header_branch
    %14 = sbr.rel (%p12) target = $region8
  $region5: #{down_layer_forward.1} parent=0 // loop_body
    %s16 = ssub.s32 %s11, 1
    %s17 = ssub.s32 %s11, 2
    %s18 = sadd.s32 %s11, 1
    %s19 = ssub.s32 %s11, %s18
    %p20 = scmp.eq.s32.totalorder %s19, 0
    %s22 = sadd.s32 %s21, 1
    %s23 = scalar_select %p20, %s21, %s22
    %p26 = pneg %p20
    %p27 = scmp.eq.s32.totalorder %s11, 1
    %p28 = por %p26, %p27
    %p29 = scmp.ne.s32.totalorder %s21, %s24
    %p30 = scmp.eq.s32.totalorder %s11, 0
    %p31 = por %p29, %p30
    %p32 = scmp.ne.s32.totalorder %s21, %s24
    %p33 = scmp.eq.s32.totalorder %s16, 1
    %p34 = por %p32, %p33
    %p35 = scmp.ne.s32.totalorder %s24, %s25
    %p36 = scmp.eq.s32.totalorder %s16, 0
    %p37 = por %p35, %p36
    %p38 = scmp.ne.s32.totalorder %s24, %s25
    %p39 = scmp.eq.s32.totalorder %s17, 1
    %p40 = por %p38, %p39
    %p42 = scmp.ne.s32.totalorder %s25, %s41
    %p43 = scmp.eq.s32.totalorder %s17, 0
    %p44 = por %p42, %p43
    %s46 = sadd.s32 %s45, 1
    %p49 = scmp.eq.s32.totalorder %s11, 1
    %p50 = scmp.ne.s32.totalorder %s45, %s47
    %p51 = scmp.eq.s32.totalorder %s11, 0
    %p52 = por %p50, %p51
    %p53 = scmp.ne.s32.totalorder %s45, %s47
    %p54 = scmp.eq.s32.totalorder %s16, 1
    %p55 = por %p53, %p54
    %p56 = scmp.ne.s32.totalorder %s47, %s48
    %p57 = scmp.eq.s32.totalorder %s16, 0
    %p58 = por %p56, %p57
    %p59 = scmp.ne.s32.totalorder %s47, %s48
    %p60 = scmp.eq.s32.totalorder %s17, 1
    %p61 = por %p59, %p60
    %p63 = scmp.ne.s32.totalorder %s48, %s62
    %p64 = scmp.eq.s32.totalorder %s17, 0
    %p65 = por %p63, %p64
    %s67 = sadd.s32 %s66, 1
    %p70 = scmp.eq.s32.totalorder %s11, 1
    %p71 = scmp.ne.s32.totalorder %s66, %s68
    %p72 = scmp.eq.s32.totalorder %s11, 0
    %p73 = por %p71, %p72
    %p74 = scmp.ne.s32.totalorder %s66, %s68
    %p75 = scmp.eq.s32.totalorder %s16, 1
    %p76 = por %p74, %p75
    %p77 = scmp.ne.s32.totalorder %s68, %s69
    %p78 = scmp.eq.s32.totalorder %s16, 0
    %p79 = por %p77, %p78
    %p80 = scmp.ne.s32.totalorder %s68, %s69
    %p81 = scmp.eq.s32.totalorder %s17, 1
    %p82 = por %p80, %p81
    %p84 = scmp.ne.s32.totalorder %s69, %s83
    %p85 = scmp.eq.s32.totalorder %s17, 0
    %p86 = por %p84, %p85
    %s88 = sadd.s32 %s87, 1
    %p91 = scmp.eq.s32.totalorder %s11, 1
    %p92 = scmp.ne.s32.totalorder %s87, %s89
    %p93 = scmp.eq.s32.totalorder %s11, 0
    %p94 = por %p92, %p93
    %p95 = scmp.ne.s32.totalorder %s87, %s89
    %p96 = scmp.eq.s32.totalorder %s16, 1
    %p97 = por %p95, %p96
    %p98 = scmp.ne.s32.totalorder %s89, %s90
    %p99 = scmp.eq.s32.totalorder %s16, 0
    %p100 = por %p98, %p99
    %p101 = scmp.ne.s32.totalorder %s89, %s90
    %p102 = scmp.eq.s32.totalorder %s17, 1
    %p103 = por %p101, %p102
    %p105 = scmp.ne.s32.totalorder %s90, %s104
    %p106 = scmp.eq.s32.totalorder %s17, 0
    %p107 = por %p105, %p106
    %s109 = sadd.s32 %s108, 1
    %p112 = scmp.eq.s32.totalorder %s11, 1
    %p113 = scmp.ne.s32.totalorder %s108, %s110
    %p114 = scmp.eq.s32.totalorder %s11, 0
    %p115 = por %p113, %p114
    %p116 = scmp.ne.s32.totalorder %s108, %s110
    %p117 = scmp.eq.s32.totalorder %s16, 1
    %p118 = por %p116, %p117
    %p119 = scmp.ne.s32.totalorder %s110, %s111
    %p120 = scmp.eq.s32.totalorder %s16, 0
    %p121 = por %p119, %p120
    %p122 = scmp.ne.s32.totalorder %s110, %s111
    %p123 = scmp.eq.s32.totalorder %s17, 1
    %p124 = por %p122, %p123
    %p126 = scmp.ne.s32.totalorder %s111, %s125
    %p127 = scmp.eq.s32.totalorder %s17, 0
    %p128 = por %p126, %p127
    %s129 = ssub.s32 %s11, %s18
    %p130 = scmp.eq.s32.totalorder %s129, 0
    %s132 = sadd.s32 %s131, 1
    %s133 = scalar_select %p130, %s131, %s132
    %p136 = pneg %p130
    %p137 = scmp.eq.s32.totalorder %s11, 1
    %p138 = por %p136, %p137
    %p139 = scmp.ne.s32.totalorder %s131, %s134
    %p140 = scmp.eq.s32.totalorder %s11, 0
    %p141 = por %p139, %p140
    %p142 = scmp.ne.s32.totalorder %s131, %s134
    %p143 = scmp.eq.s32.totalorder %s16, 1
    %p144 = por %p142, %p143
    %p145 = scmp.ne.s32.totalorder %s134, %s135
    %p146 = scmp.eq.s32.totalorder %s16, 0
    %p147 = por %p145, %p146
    %p148 = scmp.ne.s32.totalorder %s134, %s135
    %p149 = scmp.eq.s32.totalorder %s17, 1
    %p150 = por %p148, %p149
    %p152 = scmp.ne.s32.totalorder %s135, %s151
    %p153 = scmp.eq.s32.totalorder %s17, 0
    %p154 = por %p152, %p153
    %p155 = scmp.le.s32.totalorder 1, %s11
    %p156 = scmp.lt.s32.totalorder %s11, 3
    %p157 = pnand %p155, %p156
    %p158 = pneg %p157
    // Predicated region
    $region9: #{down_layer_forward.1} parent=5 // pred_check
      _
    $region10: #{down_layer_forward.1} parent=5 // pred_check_branch
      %160 = sbr.rel (%p157) target = $region12
    $region11: #{down_layer_forward.1} parent=5 // pred_region
      %s161 = ssub.s32 %s11, 1
      // Predicated region
      $region13: #{down_layer_forward.1} parent=11 // pred_check
        %p162 = pneg %p58
      $region14: #{down_layer_forward.1} parent=11 // pred_check_branch
        %164 = sbr.rel (%p162) target = $region16
      $region15: #{down_layer_forward.1} parent=11 // pred_region
        _
      $region16: #{down_layer_forward.1} parent=11 // pred_fallthru
        _
      // Predicated region
      $region17: #{down_layer_forward.1} parent=11 // pred_check
        %p165 = pneg %p79
      $region18: #{down_layer_forward.1} parent=11 // pred_check_branch
        %167 = sbr.rel (%p165) target = $region20
      $region19: #{down_layer_forward.1} parent=11 // pred_region
        _
      $region20: #{down_layer_forward.1} parent=11 // pred_fallthru
        _
      // Predicated region
      $region21: #{down_layer_forward.1} parent=11 // pred_check
        %p168 = pneg %p100
      $region22: #{down_layer_forward.1} parent=11 // pred_check_branch
        %170 = sbr.rel (%p168) target = $region24
      $region23: #{down_layer_forward.1} parent=11 // pred_region
        _
      $region24: #{down_layer_forward.1} parent=11 // pred_fallthru
        _
      // Predicated region
      $region25: #{down_layer_forward.1} parent=11 // pred_check
        %p171 = pneg %p121
      $region26: #{down_layer_forward.1} parent=11 // pred_check_branch
        %173 = sbr.rel (%p171) target = $region28
      $region27: #{down_layer_forward.1} parent=11 // pred_region
        _
      $region28: #{down_layer_forward.1} parent=11 // pred_fallthru
        _
    $region12: #{down_layer_forward.1} parent=5 // pred_fallthru
      _
    %p174 = scmp.lt.s32.totalorder %s11, 2
    // Predicated region
    $region29: #{down_layer_forward.1} parent=5 // pred_check
      %p175 = pneg %p174
    $region30: #{down_layer_forward.1} parent=5 // pred_check_branch
      %177 = sbr.rel (%p175) target = $region32
    $region31: #{down_layer_forward.1} parent=5 // pred_region
      // Predicated region
      $region33: #{down_layer_forward.1} parent=31 // pred_check
        %p178 = pneg %p31
      $region34: #{down_layer_forward.1} parent=31 // pred_check_branch
        %180 = sbr.rel (%p178) target = $region36
      $region35: #{down_layer_forward.1} parent=31 // pred_region
        %p181 = scmp.lt.s32.totalorder %s11, 1
        %s182 = scalar_select %p181, %s11, 1
        %s183 = smul.addr %s182, 16
        %s184 = smul.addr %s183, 8
        %s185 = scalar_lea.vmem %s0, %s184
      $region36: #{down_layer_forward.1} parent=31 // pred_fallthru
        _
    $region32: #{down_layer_forward.1} parent=5 // pred_fallthru
      _
    %p186 = scmp.le.s32.totalorder 1, %s11
    %p187 = scmp.lt.s32.totalorder %s11, 3
    %p188 = pnand %p186, %p187
    %p189 = pneg %p188
    // Predicated region
    $region37: #{down_layer_forward.1} parent=5 // pred_check
      _
    $region38: #{down_layer_forward.1} parent=5 // pred_check_branch
      %191 = sbr.rel (%p188) target = $region40
    $region39: #{down_layer_forward.1} parent=5 // pred_region
      %s192 = ssub.s32 %s11, 1
      %p193 = scmp.lt.s32.totalorder %s16, 1
      %s194 = scalar_select %p193, %s16, 1
      %s195 = smul.addr %s194, 16
      %s196 = smul.addr %s195, 8
      %s197 = scalar_lea.vmem %s0, %s196
      %p198 = pneg %p37
      %p199 = pneg %p34
      %p200 = pneg %p58
      %p201 = pneg %p55
      %p202 = pneg %p79
      %p203 = pneg %p76
      %p204 = pneg %p100
      %p205 = pneg %p97
      %p206 = pneg %p121
      %p207 = pneg %p118
      %p208 = pneg %p147
      %p209 = pneg %p144
      %p210 = scmp.lt.s32.totalorder %s16, 1
      %s211 = scalar_select %p210, %s16, 1
      %s212 = smul.addr %s211, 8
      %s213 = scalar_lea.vmem %s5, %s212
      %p214 = scmp.lt.s32.totalorder %s16, 1
      %s215 = scalar_select %p214, %s16, 1
      %s216 = smul.addr %s215, 16
      %s217 = smul.addr %s216, 8
      %s218 = scalar_lea.vmem %s0, %s217
      %p219 = scmp.lt.s32.totalorder %s16, 1
      %s220 = scalar_select %p219, %s16, 1
      %s221 = smul.addr %s220, 8
      %s222 = scalar_lea.vmem %s5, %s221
      %v223 = vld [vmem:[%s218] sm:$0xff]
      %v224 = vld [vmem:[%s218 + $0x10] sm:$0xff]
      %v225 = vld [vmem:[%s218 + $0x20] sm:$0xff]
      %v226 = vld [vmem:[%s218 + $0x30] sm:$0xff]
      %v227 = vld [vmem:[%s218 + $0x40] sm:$0xff]
      %v228 = vld [vmem:[%s218 + $0x50] sm:$0xff]
      %v229 = vld [vmem:[%s218 + $0x60] sm:$0xff]
      %v230 = vld [vmem:[%s218 + $0x70] sm:$0xff]
      %s231 = scalar_lea.vmem %s218, 8
      %v232 = vld [vmem:[%s231] sm:$0xff]
      %v233 = vld [vmem:[%s231 + $0x10] sm:$0xff]
      %v234 = vld [vmem:[%s231 + $0x20] sm:$0xff]
      %v235 = vld [vmem:[%s231 + $0x30] sm:$0xff]
      %v236 = vld [vmem:[%s231 + $0x40] sm:$0xff]
      %v237 = vld [vmem:[%s231 + $0x50] sm:$0xff]
      %v238 = vld [vmem:[%s231 + $0x60] sm:$0xff]
      %v239 = vld [vmem:[%s231 + $0x70] sm:$0xff]
      %v240 = vmax.f32 %v223, %v232
      %v241 = vmax.f32 %v224, %v233
      %v242 = vmax.f32 %v225, %v234
      %v243 = vmax.f32 %v226, %v235
      %v244 = vmax.f32 %v227, %v236
      %v245 = vmax.f32 %v228, %v237
      %v246 = vmax.f32 %v229, %v238
      %v247 = vmax.f32 %v230, %v239
      %256 = vrot.lane.b32.xlu0 %v240, 124
      %v257 = vpop.permute.xlu0 %256
      %258 = vrot.lane.b32.xlu0 %v241, 124
      %v259 = vpop.permute.xlu0 %258
      %260 = vrot.lane.b32.xlu0 %v242, 124
      %v261 = vpop.permute.xlu0 %260
      %262 = vrot.lane.b32.xlu0 %v243, 124
      %v263 = vpop.permute.xlu0 %262
      %264 = vrot.lane.b32.xlu0 %v244, 124
      %v265 = vpop.permute.xlu0 %264
      %266 = vrot.lane.b32.xlu0 %v245, 124
      %v267 = vpop.permute.xlu0 %266
      %268 = vrot.lane.b32.xlu0 %v246, 124
      %v269 = vpop.permute.xlu0 %268
      %270 = vrot.lane.b32.xlu0 %v247, 124
      %v271 = vpop.permute.xlu0 %270
      %v280 = vmax.f32 %v240, %v257
      %v281 = vmax.f32 %v241, %v259
      %v282 = vmax.f32 %v242, %v261
      %v283 = vmax.f32 %v243, %v263
      %v284 = vmax.f32 %v244, %v265
      %v285 = vmax.f32 %v245, %v267
      %v286 = vmax.f32 %v246, %v269
      %v287 = vmax.f32 %v247, %v271
      %vm288 = vcmask 31744
      %289 = vst.msk [vmem:[#allocation2] sm:$0xff] %vm288, 0.0
      %vm290 = vcmask 25600
      %291 = vst.msk [vmem:[#allocation2 + $0x8] sm:$0x3] %vm290, 0.0
      %292 = vst.msk [vmem:[#allocation2 + $0x10] sm:$0xff] %vm288, 0.0
      %293 = vst.msk [vmem:[#allocation2 + $0x18] sm:$0x3] %vm290, 0.0
      %294 = vst.msk [vmem:[#allocation2 + $0x20] sm:$0xff] %vm288, 0.0
      %295 = vst.msk [vmem:[#allocation2 + $0x28] sm:$0x3] %vm290, 0.0
      %296 = vst.msk [vmem:[#allocation2 + $0x30] sm:$0xff] %vm288, 0.0
      %297 = vst.msk [vmem:[#allocation2 + $0x38] sm:$0x3] %vm290, 0.0
      %298 = vst.msk [vmem:[#allocation2 + $0x40] sm:$0xff] %vm288, 0.0
      %299 = vst.msk [vmem:[#allocation2 + $0x48] sm:$0x3] %vm290, 0.0
      %300 = vst.msk [vmem:[#allocation2 + $0x50] sm:$0xff] %vm288, 0.0
      %301 = vst.msk [vmem:[#allocation2 + $0x58] sm:$0x3] %vm290, 0.0
      %302 = vst.msk [vmem:[#allocation2 + $0x60] sm:$0xff] %vm288, 0.0
      %303 = vst.msk [vmem:[#allocation2 + $0x68] sm:$0x3] %vm290, 0.0
      %304 = vst.msk [vmem:[#allocation2 + $0x70] sm:$0xff] %vm288, 0.0
      %305 = vst.msk [vmem:[#allocation2 + $0x78] sm:$0x3] %vm290, 0.0
      %306 = vst.msk [vmem:[#allocation2 + $0x80] sm:$0xff] %vm288, 0.0
      %307 = vst.msk [vmem:[#allocation2 + $0x88] sm:$0x3] %vm290, 0.0
      %308 = vst.msk [vmem:[#allocation2 + $0x90] sm:$0xff] %vm288, 0.0
      %309 = vst.msk [vmem:[#allocation2 + $0x98] sm:$0x3] %vm290, 0.0
      %s310 = scalar_lea.vmem [#allocation2], 16
      %311 = vst.msk [vmem:[%s310 + $0x1] sm:$0xff] %vm288, %v280
      %312 = vst.msk [vmem:[%s310 + $0x11] sm:$0xff] %vm288, %v281
      %313 = vst.msk [vmem:[%s310 + $0x21] sm:$0xff] %vm288, %v282
      %314 = vst.msk [vmem:[%s310 + $0x31] sm:$0xff] %vm288, %v283
      %315 = vst.msk [vmem:[%s310 + $0x41] sm:$0xff] %vm288, %v284
      %316 = vst.msk [vmem:[%s310 + $0x51] sm:$0xff] %vm288, %v285
      %317 = vst.msk [vmem:[%s310 + $0x61] sm:$0xff] %vm288, %v286
      %318 = vst.msk [vmem:[%s310 + $0x71] sm:$0xff] %vm288, %v287
      %v319 = vld [vmem:[#allocation2] sm:$0xff]
      %v320 = vld [vmem:[#allocation2 + $0x10] sm:$0xff]
      %v321 = vld [vmem:[#allocation2 + $0x20] sm:$0xff]
      %v322 = vld [vmem:[#allocation2 + $0x30] sm:$0xff]
      %v323 = vld [vmem:[#allocation2 + $0x40] sm:$0xff]
      %v324 = vld [vmem:[#allocation2 + $0x50] sm:$0xff]
      %v325 = vld [vmem:[#allocation2 + $0x60] sm:$0xff]
      %v326 = vld [vmem:[#allocation2 + $0x70] sm:$0xff]
      %v327 = vld [vmem:[%s1] sm:$0xf]
      %v328 = vld [vmem:[#allocation2 + $0x1] sm:$0xff]
      %v329 = vld [vmem:[#allocation2 + $0x11] sm:$0xff]
      %v330 = vld [vmem:[#allocation2 + $0x21] sm:$0xff]
      %v331 = vld [vmem:[#allocation2 + $0x31] sm:$0xff]
      %v332 = vld [vmem:[#allocation2 + $0x41] sm:$0xff]
      %v333 = vld [vmem:[#allocation2 + $0x51] sm:$0xff]
      %v334 = vld [vmem:[#allocation2 + $0x61] sm:$0xff]
      %v335 = vld [vmem:[#allocation2 + $0x71] sm:$0xff]
      %s336 = scalar_lea.vmem %s1, 4
      %v337 = vld [vmem:[%s336] sm:$0xf]
      %v339 = vsel %vm288, %v328, 0
      %v342 = vsel %vm288, %v329, 0
      %v345 = vsel %vm288, %v330, 0
      %v348 = vsel %vm288, %v331, 0
      %v351 = vsel %vm288, %v332, 0
      %v354 = vsel %vm288, %v333, 0
      %v357 = vsel %vm288, %v334, 0
      %v360 = vsel %vm288, %v335, 0
      %vm362 = vcmask 1043456
      %v364 = vsel %vm362, %v337, 0
      %366 = vmatprep.subr.mxu0 0.0
      %367 = vmatpush1.msra.mxu0 0.0
      %368 = vmatprep.subr.mxu0 0.0
      %369 = vmatpush1.msra.mxu0 0.0
      %370 = vmatprep.subr.mxu0 0.0
      %371 = vmatpush1.msra.mxu0 0.0
      %372 = vmatprep.subr.mxu0 0.0
      %373 = vmatpush1.msra.mxu0 0.0
      %374 = vmatprep.subr.mxu0 0.0
      %375 = vmatpush1.msra.mxu0 0.0
      %376 = vmatprep.subr.mxu0 0.0
      %377 = vmatpush1.msra.mxu0 0.0
      %378 = vmatprep.subr.mxu0 0.0
      %379 = vmatpush1.msra.mxu0 0.0
      %380 = vmatprep.subr.mxu0 0.0
      %381 = vmatpush1.msra.mxu0 0.0
      %382 = vmatprep.subr.mxu0 0.0
      %383 = vmatpush1.msra.mxu0 0.0
      %384 = vmatprep.subr.mxu0 0.0
      %385 = vmatpush1.msra.mxu0 0.0
      %386 = vmatprep.subr.mxu0 0.0
      %387 = vmatpush1.msra.mxu0 0.0
      %388 = vmatprep.subr.mxu0 0.0
      %389 = vmatpush1.msra.mxu0 0.0
      %390 = vmatprep.subr.mxu0 0.0
      %391 = vmatpush1.msra.mxu0 0.0
      %392 = vmatprep.subr.mxu0 0.0
      %393 = vmatpush1.msra.mxu0 0.0
      %394 = vmatprep.subr.mxu0 0.0
      %395 = vmatpush1.msra.mxu0 0.0
      %396 = vmatprep.subr.mxu0 0.0
      %397 = vmatpush1.msra.mxu0 %v364
      %398 = vmatprep.subr.mxu0 0.0
      %399 = vmatpush2.msra.mxu0 0.0
      %400 = vmatprep.subr.mxu0 0.0
      %401 = vmatpush2.msra.mxu0 0.0
      %402 = vmatprep.subr.mxu0 0.0
      %403 = vmatpush2.msra.mxu0 0.0
      %404 = vmatprep.subr.mxu0 0.0
      %405 = vmatpush2.msra.mxu0 0.0
      %406 = vmatprep.subr.mxu0 0.0
      %407 = vmatpush2.msra.mxu0 0.0
      %408 = vmatprep.subr.mxu0 0.0
      %409 = vmatpush2.msra.mxu0 0.0
      %410 = vmatprep.subr.mxu0 0.0
      %411 = vmatpush2.msra.mxu0 0.0
      %412 = vmatprep.subr.mxu0 0.0
      %413 = vmatpush2.msra.mxu0 0.0
      %414 = vmatprep.subr.mxu0 0.0
      %415 = vmatpush2.msra.mxu0 0.0
      %416 = vmatprep.subr.mxu0 0.0
      %417 = vmatpush2.msra.mxu0 0.0
      %418 = vmatprep.subr.mxu0 0.0
      %419 = vmatpush2.msra.mxu0 0.0
      %420 = vmatprep.subr.mxu0 0.0
      %421 = vmatpush2.msra.mxu0 0.0
      %422 = vmatprep.subr.mxu0 0.0
      %423 = vmatpush2.msra.mxu0 0.0
      %424 = vmatprep.subr.mxu0 0.0
      %425 = vmatpush2.msra.mxu0 0.0
      %426 = vmatprep.subr.mxu0 0.0
      %427 = vmatpush2.msra.mxu0 0.0
      %428 = vmatprep.subr.mxu0 0.0
      %429 = vmatpush2.msra.mxu0 0.0
      %430 = vmatprep.mubr.f32.mxu0 0.0
      %431 = vmatmul.mubr.f32.gmra.mxu0 %v339
      %v432 = vpop.f32.mrf.mxu0
      %v433 = vadd.f32 0.0, %v432
      %v434 = vpop.f32.mrf.mxu0
      %435 = vmatprep.mubr.f32.mxu0 0.0
      %436 = vmatmul.mubr.f32.gmra.mxu0 %v342
      %v437 = vpop.f32.mrf.mxu0
      %v438 = vadd.f32 0.0, %v437
      %v439 = vpop.f32.mrf.mxu0
      %440 = vmatprep.mubr.f32.mxu0 0.0
      %441 = vmatmul.mubr.f32.gmra.mxu0 %v345
      %v442 = vpop.f32.mrf.mxu0
      %v443 = vadd.f32 0.0, %v442
      %v444 = vpop.f32.mrf.mxu0
      %445 = vmatprep.mubr.f32.mxu0 0.0
      %446 = vmatmul.mubr.f32.gmra.mxu0 %v348
      %v447 = vpop.f32.mrf.mxu0
      %v448 = vadd.f32 0.0, %v447
      %v449 = vpop.f32.mrf.mxu0
      %450 = vmatprep.mubr.f32.mxu0 0.0
      %451 = vmatmul.mubr.f32.gmra.mxu0 %v351
      %v452 = vpop.f32.mrf.mxu0
      %v453 = vadd.f32 0.0, %v452
      %v454 = vpop.f32.mrf.mxu0
      %455 = vmatprep.mubr.f32.mxu0 0.0
      %456 = vmatmul.mubr.f32.gmra.mxu0 %v354
      %v457 = vpop.f32.mrf.mxu0
      %v458 = vadd.f32 0.0, %v457
      %v459 = vpop.f32.mrf.mxu0
      %460 = vmatprep.mubr.f32.mxu0 0.0
      %461 = vmatmul.mubr.f32.gmra.mxu0 %v357
      %v462 = vpop.f32.mrf.mxu0
      %v463 = vadd.f32 0.0, %v462
      %v464 = vpop.f32.mrf.mxu0
      %465 = vmatprep.mubr.f32.mxu0 0.0
      %466 = vmatmul.mubr.f32.gmra.mxu0 %v360
      %v467 = vpop.f32.mrf.mxu0
      %v468 = vadd.f32 0.0, %v467
      %v469 = vpop.f32.mrf.mxu0
      %470 = vdwg.mxu0
      %v472 = vsel %vm288, %v319, 0
      %v475 = vsel %vm288, %v320, 0
      %v478 = vsel %vm288, %v321, 0
      %v481 = vsel %vm288, %v322, 0
      %v484 = vsel %vm288, %v323, 0
      %v487 = vsel %vm288, %v324, 0
      %v490 = vsel %vm288, %v325, 0
      %v493 = vsel %vm288, %v326, 0
      %v496 = vsel %vm362, %v327, 0
      %498 = vmatprep.subr.mxu0 0.0
      %499 = vmatpush1.msra.mxu0 0.0
      %500 = vmatprep.subr.mxu0 0.0
      %501 = vmatpush1.msra.mxu0 0.0
      %502 = vmatprep.subr.mxu0 0.0
      %503 = vmatpush1.msra.mxu0 0.0
      %504 = vmatprep.subr.mxu0 0.0
      %505 = vmatpush1.msra.mxu0 0.0
      %506 = vmatprep.subr.mxu0 0.0
      %507 = vmatpush1.msra.mxu0 0.0
      %508 = vmatprep.subr.mxu0 0.0
      %509 = vmatpush1.msra.mxu0 0.0
      %510 = vmatprep.subr.mxu0 0.0
      %511 = vmatpush1.msra.mxu0 0.0
      %512 = vmatprep.subr.mxu0 0.0
      %513 = vmatpush1.msra.mxu0 0.0
      %514 = vmatprep.subr.mxu0 0.0
      %515 = vmatpush1.msra.mxu0 0.0
      %516 = vmatprep.subr.mxu0 0.0
      %517 = vmatpush1.msra.mxu0 0.0
      %518 = vmatprep.subr.mxu0 0.0
      %519 = vmatpush1.msra.mxu0 0.0
      %520 = vmatprep.subr.mxu0 0.0
      %521 = vmatpush1.msra.mxu0 0.0
      %522 = vmatprep.subr.mxu0 0.0
      %523 = vmatpush1.msra.mxu0 0.0
      %524 = vmatprep.subr.mxu0 0.0
      %525 = vmatpush1.msra.mxu0 0.0
      %526 = vmatprep.subr.mxu0 0.0
      %527 = vmatpush1.msra.mxu0 0.0
      %528 = vmatprep.subr.mxu0 0.0
      %529 = vmatpush1.msra.mxu0 %v496
      %530 = vmatprep.subr.mxu0 0.0
      %531 = vmatpush2.msra.mxu0 0.0
      %532 = vmatprep.subr.mxu0 0.0
      %533 = vmatpush2.msra.mxu0 0.0
      %534 = vmatprep.subr.mxu0 0.0
      %535 = vmatpush2.msra.mxu0 0.0
      %536 = vmatprep.subr.mxu0 0.0
      %537 = vmatpush2.msra.mxu0 0.0
      %538 = vmatprep.subr.mxu0 0.0
      %539 = vmatpush2.msra.mxu0 0.0
      %540 = vmatprep.subr.mxu0 0.0
      %541 = vmatpush2.msra.mxu0 0.0
      %542 = vmatprep.subr.mxu0 0.0
      %543 = vmatpush2.msra.mxu0 0.0
      %544 = vmatprep.subr.mxu0 0.0
      %545 = vmatpush2.msra.mxu0 0.0
      %546 = vmatprep.subr.mxu0 0.0
      %547 = vmatpush2.msra.mxu0 0.0
      %548 = vmatprep.subr.mxu0 0.0
      %549 = vmatpush2.msra.mxu0 0.0
      %550 = vmatprep.subr.mxu0 0.0
      %551 = vmatpush2.msra.mxu0 0.0
      %552 = vmatprep.subr.mxu0 0.0
      %553 = vmatpush2.msra.mxu0 0.0
      %554 = vmatprep.subr.mxu0 0.0
      %555 = vmatpush2.msra.mxu0 0.0
      %556 = vmatprep.subr.mxu0 0.0
      %557 = vmatpush2.msra.mxu0 0.0
      %558 = vmatprep.subr.mxu0 0.0
      %559 = vmatpush2.msra.mxu0 0.0
      %560 = vmatprep.subr.mxu0 0.0
      %561 = vmatpush2.msra.mxu0 0.0
      %562 = vmatprep.mubr.f32.mxu0 0.0
      %563 = vmatmul.mubr.f32.gmra.mxu0 %v472
      %v564 = vpop.f32.mrf.mxu0
      %v565 = vadd.f32 %v433, %v564
      %v566 = vpop.f32.mrf.mxu0
      %567 = vmatprep.mubr.f32.mxu0 0.0
      %568 = vmatmul.mubr.f32.gmra.mxu0 %v475
      %v569 = vpop.f32.mrf.mxu0
      %v570 = vadd.f32 %v438, %v569
      %v571 = vpop.f32.mrf.mxu0
      %572 = vmatprep.mubr.f32.mxu0 0.0
      %573 = vmatmul.mubr.f32.gmra.mxu0 %v478
      %v574 = vpop.f32.mrf.mxu0
      %v575 = vadd.f32 %v443, %v574
      %v576 = vpop.f32.mrf.mxu0
      %577 = vmatprep.mubr.f32.mxu0 0.0
      %578 = vmatmul.mubr.f32.gmra.mxu0 %v481
      %v579 = vpop.f32.mrf.mxu0
      %v580 = vadd.f32 %v448, %v579
      %v581 = vpop.f32.mrf.mxu0
      %582 = vmatprep.mubr.f32.mxu0 0.0
      %583 = vmatmul.mubr.f32.gmra.mxu0 %v484
      %v584 = vpop.f32.mrf.mxu0
      %v585 = vadd.f32 %v453, %v584
      %v586 = vpop.f32.mrf.mxu0
      %587 = vmatprep.mubr.f32.mxu0 0.0
      %588 = vmatmul.mubr.f32.gmra.mxu0 %v487
      %v589 = vpop.f32.mrf.mxu0
      %v590 = vadd.f32 %v458, %v589
      %v591 = vpop.f32.mrf.mxu0
      %592 = vmatprep.mubr.f32.mxu0 0.0
      %593 = vmatmul.mubr.f32.gmra.mxu0 %v490
      %v594 = vpop.f32.mrf.mxu0
      %v595 = vadd.f32 %v463, %v594
      %v596 = vpop.f32.mrf.mxu0
      %597 = vmatprep.mubr.f32.mxu0 0.0
      %598 = vmatmul.mubr.f32.gmra.mxu0 %v493
      %v599 = vpop.f32.mrf.mxu0
      %v600 = vadd.f32 %v468, %v599
      %v601 = vpop.f32.mrf.mxu0
      %602 = vdwg.mxu0
      %v603 = vld [vmem:[#allocation2 + $0x2] sm:$0xff]
      %v604 = vld [vmem:[#allocation2 + $0x12] sm:$0xff]
      %v605 = vld [vmem:[#allocation2 + $0x22] sm:$0xff]
      %v606 = vld [vmem:[#allocation2 + $0x32] sm:$0xff]
      %v607 = vld [vmem:[#allocation2 + $0x42] sm:$0xff]
      %v608 = vld [vmem:[#allocation2 + $0x52] sm:$0xff]
      %v609 = vld [vmem:[#allocation2 + $0x62] sm:$0xff]
      %v610 = vld [vmem:[#allocation2 + $0x72] sm:$0xff]
      %s611 = scalar_lea.vmem %s1, 8
      %v612 = vld [vmem:[%s611] sm:$0xf]
      %v614 = vsel %vm288, %v603, 0
      %v617 = vsel %vm288, %v604, 0
      %v620 = vsel %vm288, %v605, 0
      %v623 = vsel %vm288, %v606, 0
      %v626 = vsel %vm288, %v607, 0
      %v629 = vsel %vm288, %v608, 0
      %v632 = vsel %vm288, %v609, 0
      %v635 = vsel %vm288, %v610, 0
      %v638 = vsel %vm362, %v612, 0
      %640 = vmatprep.subr.mxu0 0.0
      %641 = vmatpush1.msra.mxu0 0.0
      %642 = vmatprep.subr.mxu0 0.0
      %643 = vmatpush1.msra.mxu0 0.0
      %644 = vmatprep.subr.mxu0 0.0
      %645 = vmatpush1.msra.mxu0 0.0
      %646 = vmatprep.subr.mxu0 0.0
      %647 = vmatpush1.msra.mxu0 0.0
      %648 = vmatprep.subr.mxu0 0.0
      %649 = vmatpush1.msra.mxu0 0.0
      %650 = vmatprep.subr.mxu0 0.0
      %651 = vmatpush1.msra.mxu0 0.0
      %652 = vmatprep.subr.mxu0 0.0
      %653 = vmatpush1.msra.mxu0 0.0
      %654 = vmatprep.subr.mxu0 0.0
      %655 = vmatpush1.msra.mxu0 0.0
      %656 = vmatprep.subr.mxu0 0.0
      %657 = vmatpush1.msra.mxu0 0.0
      %658 = vmatprep.subr.mxu0 0.0
      %659 = vmatpush1.msra.mxu0 0.0
      %660 = vmatprep.subr.mxu0 0.0
      %661 = vmatpush1.msra.mxu0 0.0
      %662 = vmatprep.subr.mxu0 0.0
      %663 = vmatpush1.msra.mxu0 0.0
      %664 = vmatprep.subr.mxu0 0.0
      %665 = vmatpush1.msra.mxu0 0.0
      %666 = vmatprep.subr.mxu0 0.0
      %667 = vmatpush1.msra.mxu0 0.0
      %668 = vmatprep.subr.mxu0 0.0
      %669 = vmatpush1.msra.mxu0 0.0
      %670 = vmatprep.subr.mxu0 0.0
      %671 = vmatpush1.msra.mxu0 %v638
      %672 = vmatprep.subr.mxu0 0.0
      %673 = vmatpush2.msra.mxu0 0.0
      %674 = vmatprep.subr.mxu0 0.0
      %675 = vmatpush2.msra.mxu0 0.0
      %676 = vmatprep.subr.mxu0 0.0
      %677 = vmatpush2.msra.mxu0 0.0
      %678 = vmatprep.subr.mxu0 0.0
      %679 = vmatpush2.msra.mxu0 0.0
      %680 = vmatprep.subr.mxu0 0.0
      %681 = vmatpush2.msra.mxu0 0.0
      %682 = vmatprep.subr.mxu0 0.0
      %683 = vmatpush2.msra.mxu0 0.0
      %684 = vmatprep.subr.mxu0 0.0
      %685 = vmatpush2.msra.mxu0 0.0
      %686 = vmatprep.subr.mxu0 0.0
      %687 = vmatpush2.msra.mxu0 0.0
      %688 = vmatprep.subr.mxu0 0.0
      %689 = vmatpush2.msra.mxu0 0.0
      %690 = vmatprep.subr.mxu0 0.0
      %691 = vmatpush2.msra.mxu0 0.0
      %692 = vmatprep.subr.mxu0 0.0
      %693 = vmatpush2.msra.mxu0 0.0
      %694 = vmatprep.subr.mxu0 0.0
      %695 = vmatpush2.msra.mxu0 0.0
      %696 = vmatprep.subr.mxu0 0.0
      %697 = vmatpush2.msra.mxu0 0.0
      %698 = vmatprep.subr.mxu0 0.0
      %699 = vmatpush2.msra.mxu0 0.0
      %700 = vmatprep.subr.mxu0 0.0
      %701 = vmatpush2.msra.mxu0 0.0
      %702 = vmatprep.subr.mxu0 0.0
      %703 = vmatpush2.msra.mxu0 0.0
      %704 = vmatprep.mubr.f32.mxu0 0.0
      %705 = vmatmul.mubr.f32.gmra.mxu0 %v614
      %v706 = vpop.f32.mrf.mxu0
      %v707 = vadd.f32 0.0, %v706
      %v708 = vpop.f32.mrf.mxu0
      %709 = vmatprep.mubr.f32.mxu0 0.0
      %710 = vmatmul.mubr.f32.gmra.mxu0 %v617
      %v711 = vpop.f32.mrf.mxu0
      %v712 = vadd.f32 0.0, %v711
      %v713 = vpop.f32.mrf.mxu0
      %714 = vmatprep.mubr.f32.mxu0 0.0
      %715 = vmatmul.mubr.f32.gmra.mxu0 %v620
      %v716 = vpop.f32.mrf.mxu0
      %v717 = vadd.f32 0.0, %v716
      %v718 = vpop.f32.mrf.mxu0
      %719 = vmatprep.mubr.f32.mxu0 0.0
      %720 = vmatmul.mubr.f32.gmra.mxu0 %v623
      %v721 = vpop.f32.mrf.mxu0
      %v722 = vadd.f32 0.0, %v721
      %v723 = vpop.f32.mrf.mxu0
      %724 = vmatprep.mubr.f32.mxu0 0.0
      %725 = vmatmul.mubr.f32.gmra.mxu0 %v626
      %v726 = vpop.f32.mrf.mxu0
      %v727 = vadd.f32 0.0, %v726
      %v728 = vpop.f32.mrf.mxu0
      %729 = vmatprep.mubr.f32.mxu0 0.0
      %730 = vmatmul.mubr.f32.gmra.mxu0 %v629
      %v731 = vpop.f32.mrf.mxu0
      %v732 = vadd.f32 0.0, %v731
      %v733 = vpop.f32.mrf.mxu0
      %734 = vmatprep.mubr.f32.mxu0 0.0
      %735 = vmatmul.mubr.f32.gmra.mxu0 %v632
      %v736 = vpop.f32.mrf.mxu0
      %v737 = vadd.f32 0.0, %v736
      %v738 = vpop.f32.mrf.mxu0
      %739 = vmatprep.mubr.f32.mxu0 0.0
      %740 = vmatmul.mubr.f32.gmra.mxu0 %v635
      %v741 = vpop.f32.mrf.mxu0
      %v742 = vadd.f32 0.0, %v741
      %v743 = vpop.f32.mrf.mxu0
      %744 = vdwg.mxu0
      %v745 = vadd.f32 %v565, %v707
      %v746 = vadd.f32 %v570, %v712
      %v747 = vadd.f32 %v575, %v717
      %v748 = vadd.f32 %v580, %v722
      %v749 = vadd.f32 %v585, %v727
      %v750 = vadd.f32 %v590, %v732
      %v751 = vadd.f32 %v595, %v737
      %v752 = vadd.f32 %v600, %v742
      %v753 = vld [vmem:[%s310] sm:$0xff]
      %v754 = vld [vmem:[%s310 + $0x10] sm:$0xff]
      %v755 = vld [vmem:[%s310 + $0x20] sm:$0xff]
      %v756 = vld [vmem:[%s310 + $0x30] sm:$0xff]
      %v757 = vld [vmem:[%s310 + $0x40] sm:$0xff]
      %v758 = vld [vmem:[%s310 + $0x50] sm:$0xff]
      %v759 = vld [vmem:[%s310 + $0x60] sm:$0xff]
      %v760 = vld [vmem:[%s310 + $0x70] sm:$0xff]
      %s761 = scalar_lea.vmem %s1, 12
      %v762 = vld [vmem:[%s761] sm:$0xf]
      %v764 = vsel %vm288, %v753, 0
      %v767 = vsel %vm288, %v754, 0
      %v770 = vsel %vm288, %v755, 0
      %v773 = vsel %vm288, %v756, 0
      %v776 = vsel %vm288, %v757, 0
      %v779 = vsel %vm288, %v758, 0
      %v782 = vsel %vm288, %v759, 0
      %v785 = vsel %vm288, %v760, 0
      %v788 = vsel %vm362, %v762, 0
      %790 = vmatprep.subr.mxu0 0.0
      %791 = vmatpush1.msra.mxu0 0.0
      %792 = vmatprep.subr.mxu0 0.0
      %793 = vmatpush1.msra.mxu0 0.0
      %794 = vmatprep.subr.mxu0 0.0
      %795 = vmatpush1.msra.mxu0 0.0
      %796 = vmatprep.subr.mxu0 0.0
      %797 = vmatpush1.msra.mxu0 0.0
      %798 = vmatprep.subr.mxu0 0.0
      %799 = vmatpush1.msra.mxu0 0.0
      %800 = vmatprep.subr.mxu0 0.0
      %801 = vmatpush1.msra.mxu0 0.0
      %802 = vmatprep.subr.mxu0 0.0
      %803 = vmatpush1.msra.mxu0 0.0
      %804 = vmatprep.subr.mxu0 0.0
      %805 = vmatpush1.msra.mxu0 0.0
      %806 = vmatprep.subr.mxu0 0.0
      %807 = vmatpush1.msra.mxu0 0.0
      %808 = vmatprep.subr.mxu0 0.0
      %809 = vmatpush1.msra.mxu0 0.0
      %810 = vmatprep.subr.mxu0 0.0
      %811 = vmatpush1.msra.mxu0 0.0
      %812 = vmatprep.subr.mxu0 0.0
      %813 = vmatpush1.msra.mxu0 0.0
      %814 = vmatprep.subr.mxu0 0.0
      %815 = vmatpush1.msra.mxu0 0.0
      %816 = vmatprep.subr.mxu0 0.0
      %817 = vmatpush1.msra.mxu0 0.0
      %818 = vmatprep.subr.mxu0 0.0
      %819 = vmatpush1.msra.mxu0 0.0
      %820 = vmatprep.subr.mxu0 0.0
      %821 = vmatpush1.msra.mxu0 %v788
      %822 = vmatprep.subr.mxu0 0.0
      %823 = vmatpush2.msra.mxu0 0.0
      %824 = vmatprep.subr.mxu0 0.0
      %825 = vmatpush2.msra.mxu0 0.0
      %826 = vmatprep.subr.mxu0 0.0
      %827 = vmatpush2.msra.mxu0 0.0
      %828 = vmatprep.subr.mxu0 0.0
      %829 = vmatpush2.msra.mxu0 0.0
      %830 = vmatprep.subr.mxu0 0.0
      %831 = vmatpush2.msra.mxu0 0.0
      %832 = vmatprep.subr.mxu0 0.0
      %833 = vmatpush2.msra.mxu0 0.0
      %834 = vmatprep.subr.mxu0 0.0
      %835 = vmatpush2.msra.mxu0 0.0
      %836 = vmatprep.subr.mxu0 0.0
      %837 = vmatpush2.msra.mxu0 0.0
      %838 = vmatprep.subr.mxu0 0.0
      %839 = vmatpush2.msra.mxu0 0.0
      %840 = vmatprep.subr.mxu0 0.0
      %841 = vmatpush2.msra.mxu0 0.0
      %842 = vmatprep.subr.mxu0 0.0
      %843 = vmatpush2.msra.mxu0 0.0
      %844 = vmatprep.subr.mxu0 0.0
      %845 = vmatpush2.msra.mxu0 0.0
      %846 = vmatprep.subr.mxu0 0.0
      %847 = vmatpush2.msra.mxu0 0.0
      %848 = vmatprep.subr.mxu0 0.0
      %849 = vmatpush2.msra.mxu0 0.0
      %850 = vmatprep.subr.mxu0 0.0
      %851 = vmatpush2.msra.mxu0 0.0
      %852 = vmatprep.subr.mxu0 0.0
      %853 = vmatpush2.msra.mxu0 0.0
      %854 = vmatprep.mubr.f32.mxu0 0.0
      %855 = vmatmul.mubr.f32.gmra.mxu0 %v764
      %v856 = vpop.f32.mrf.mxu0
      %v857 = vadd.f32 0.0, %v856
      %v858 = vpop.f32.mrf.mxu0
      %859 = vmatprep.mubr.f32.mxu0 0.0
      %860 = vmatmul.mubr.f32.gmra.mxu0 %v767
      %v861 = vpop.f32.mrf.mxu0
      %v862 = vadd.f32 0.0, %v861
      %v863 = vpop.f32.mrf.mxu0
      %864 = vmatprep.mubr.f32.mxu0 0.0
      %865 = vmatmul.mubr.f32.gmra.mxu0 %v770
      %v866 = vpop.f32.mrf.mxu0
      %v867 = vadd.f32 0.0, %v866
      %v868 = vpop.f32.mrf.mxu0
      %869 = vmatprep.mubr.f32.mxu0 0.0
      %870 = vmatmul.mubr.f32.gmra.mxu0 %v773
      %v871 = vpop.f32.mrf.mxu0
      %v872 = vadd.f32 0.0, %v871
      %v873 = vpop.f32.mrf.mxu0
      %874 = vmatprep.mubr.f32.mxu0 0.0
      %875 = vmatmul.mubr.f32.gmra.mxu0 %v776
      %v876 = vpop.f32.mrf.mxu0
      %v877 = vadd.f32 0.0, %v876
      %v878 = vpop.f32.mrf.mxu0
      %879 = vmatprep.mubr.f32.mxu0 0.0
      %880 = vmatmul.mubr.f32.gmra.mxu0 %v779
      %v881 = vpop.f32.mrf.mxu0
      %v882 = vadd.f32 0.0, %v881
      %v883 = vpop.f32.mrf.mxu0
      %884 = vmatprep.mubr.f32.mxu0 0.0
      %885 = vmatmul.mubr.f32.gmra.mxu0 %v782
      %v886 = vpop.f32.mrf.mxu0
      %v887 = vadd.f32 0.0, %v886
      %v888 = vpop.f32.mrf.mxu0
      %889 = vmatprep.mubr.f32.mxu0 0.0
      %890 = vmatmul.mubr.f32.gmra.mxu0 %v785
      %v891 = vpop.f32.mrf.mxu0
      %v892 = vadd.f32 0.0, %v891
      %v893 = vpop.f32.mrf.mxu0
      %894 = vdwg.mxu0
      %v895 = vadd.f32 %v745, %v857
      %v896 = vadd.f32 %v746, %v862
      %v897 = vadd.f32 %v747, %v867
      %v898 = vadd.f32 %v748, %v872
      %v899 = vadd.f32 %v749, %v877
      %v900 = vadd.f32 %v750, %v882
      %v901 = vadd.f32 %v751, %v887
      %v902 = vadd.f32 %v752, %v892
      %v903 = vld [vmem:[%s310 + $0x1] sm:$0xff]
      %v904 = vld [vmem:[%s310 + $0x11] sm:$0xff]
      %v905 = vld [vmem:[%s310 + $0x21] sm:$0xff]
      %v906 = vld [vmem:[%s310 + $0x31] sm:$0xff]
      %v907 = vld [vmem:[%s310 + $0x41] sm:$0xff]
      %v908 = vld [vmem:[%s310 + $0x51] sm:$0xff]
      %v909 = vld [vmem:[%s310 + $0x61] sm:$0xff]
      %v910 = vld [vmem:[%s310 + $0x71] sm:$0xff]
      %s911 = scalar_lea.vmem %s1, 16
      %v912 = vld [vmem:[%s911] sm:$0xf]
      %v914 = vsel %vm288, %v903, 0
      %v917 = vsel %vm288, %v904, 0
      %v920 = vsel %vm288, %v905, 0
      %v923 = vsel %vm288, %v906, 0
      %v926 = vsel %vm288, %v907, 0
      %v929 = vsel %vm288, %v908, 0
      %v932 = vsel %vm288, %v909, 0
      %v935 = vsel %vm288, %v910, 0
      %v938 = vsel %vm362, %v912, 0
      %940 = vmatprep.subr.mxu0 0.0
      %941 = vmatpush1.msra.mxu0 0.0
      %942 = vmatprep.subr.mxu0 0.0
      %943 = vmatpush1.msra.mxu0 0.0
      %944 = vmatprep.subr.mxu0 0.0
      %945 = vmatpush1.msra.mxu0 0.0
      %946 = vmatprep.subr.mxu0 0.0
      %947 = vmatpush1.msra.mxu0 0.0
      %948 = vmatprep.subr.mxu0 0.0
      %949 = vmatpush1.msra.mxu0 0.0
      %950 = vmatprep.subr.mxu0 0.0
      %951 = vmatpush1.msra.mxu0 0.0
      %952 = vmatprep.subr.mxu0 0.0
      %953 = vmatpush1.msra.mxu0 0.0
      %954 = vmatprep.subr.mxu0 0.0
      %955 = vmatpush1.msra.mxu0 0.0
      %956 = vmatprep.subr.mxu0 0.0
      %957 = vmatpush1.msra.mxu0 0.0
      %958 = vmatprep.subr.mxu0 0.0
      %959 = vmatpush1.msra.mxu0 0.0
      %960 = vmatprep.subr.mxu0 0.0
      %961 = vmatpush1.msra.mxu0 0.0
      %962 = vmatprep.subr.mxu0 0.0
      %963 = vmatpush1.msra.mxu0 0.0
      %964 = vmatprep.subr.mxu0 0.0
      %965 = vmatpush1.msra.mxu0 0.0
      %966 = vmatprep.subr.mxu0 0.0
      %967 = vmatpush1.msra.mxu0 0.0
      %968 = vmatprep.subr.mxu0 0.0
      %969 = vmatpush1.msra.mxu0 0.0
      %970 = vmatprep.subr.mxu0 0.0
      %971 = vmatpush1.msra.mxu0 %v938
      %972 = vmatprep.subr.mxu0 0.0
      %973 = vmatpush2.msra.mxu0 0.0
      %974 = vmatprep.subr.mxu0 0.0
      %975 = vmatpush2.msra.mxu0 0.0
      %976 = vmatprep.subr.mxu0 0.0
      %977 = vmatpush2.msra.mxu0 0.0
      %978 = vmatprep.subr.mxu0 0.0
      %979 = vmatpush2.msra.mxu0 0.0
      %980 = vmatprep.subr.mxu0 0.0
      %981 = vmatpush2.msra.mxu0 0.0
      %982 = vmatprep.subr.mxu0 0.0
      %983 = vmatpush2.msra.mxu0 0.0
      %984 = vmatprep.subr.mxu0 0.0
      %985 = vmatpush2.msra.mxu0 0.0
      %986 = vmatprep.subr.mxu0 0.0
      %987 = vmatpush2.msra.mxu0 0.0
      %988 = vmatprep.subr.mxu0 0.0
      %989 = vmatpush2.msra.mxu0 0.0
      %990 = vmatprep.subr.mxu0 0.0
      %991 = vmatpush2.msra.mxu0 0.0
      %992 = vmatprep.subr.mxu0 0.0
      %993 = vmatpush2.msra.mxu0 0.0
      %994 = vmatprep.subr.mxu0 0.0
      %995 = vmatpush2.msra.mxu0 0.0
      %996 = vmatprep.subr.mxu0 0.0
      %997 = vmatpush2.msra.mxu0 0.0
      %998 = vmatprep.subr.mxu0 0.0
      %999 = vmatpush2.msra.mxu0 0.0
      %1000 = vmatprep.subr.mxu0 0.0
      %1001 = vmatpush2.msra.mxu0 0.0
      %1002 = vmatprep.subr.mxu0 0.0
      %1003 = vmatpush2.msra.mxu0 0.0
      %1004 = vmatprep.mubr.f32.mxu0 0.0
      %1005 = vmatmul.mubr.f32.gmra.mxu0 %v914
      %v1006 = vpop.f32.mrf.mxu0
      %v1007 = vadd.f32 0.0, %v1006
      %v1008 = vpop.f32.mrf.mxu0
      %1009 = vmatprep.mubr.f32.mxu0 0.0
      %1010 = vmatmul.mubr.f32.gmra.mxu0 %v917
      %v1011 = vpop.f32.mrf.mxu0
      %v1012 = vadd.f32 0.0, %v1011
      %v1013 = vpop.f32.mrf.mxu0
      %1014 = vmatprep.mubr.f32.mxu0 0.0
      %1015 = vmatmul.mubr.f32.gmra.mxu0 %v920
      %v1016 = vpop.f32.mrf.mxu0
      %v1017 = vadd.f32 0.0, %v1016
      %v1018 = vpop.f32.mrf.mxu0
      %1019 = vmatprep.mubr.f32.mxu0 0.0
      %1020 = vmatmul.mubr.f32.gmra.mxu0 %v923
      %v1021 = vpop.f32.mrf.mxu0
      %v1022 = vadd.f32 0.0, %v1021
      %v1023 = vpop.f32.mrf.mxu0
      %1024 = vmatprep.mubr.f32.mxu0 0.0
      %1025 = vmatmul.mubr.f32.gmra.mxu0 %v926
      %v1026 = vpop.f32.mrf.mxu0
      %v1027 = vadd.f32 0.0, %v1026
      %v1028 = vpop.f32.mrf.mxu0
      %1029 = vmatprep.mubr.f32.mxu0 0.0
      %1030 = vmatmul.mubr.f32.gmra.mxu0 %v929
      %v1031 = vpop.f32.mrf.mxu0
      %v1032 = vadd.f32 0.0, %v1031
      %v1033 = vpop.f32.mrf.mxu0
      %1034 = vmatprep.mubr.f32.mxu0 0.0
      %1035 = vmatmul.mubr.f32.gmra.mxu0 %v932
      %v1036 = vpop.f32.mrf.mxu0
      %v1037 = vadd.f32 0.0, %v1036
      %v1038 = vpop.f32.mrf.mxu0
      %1039 = vmatprep.mubr.f32.mxu0 0.0
      %1040 = vmatmul.mubr.f32.gmra.mxu0 %v935
      %v1041 = vpop.f32.mrf.mxu0
      %v1042 = vadd.f32 0.0, %v1041
      %v1043 = vpop.f32.mrf.mxu0
      %1044 = vdwg.mxu0
      %v1045 = vadd.f32 %v895, %v1007
      %v1046 = vadd.f32 %v896, %v1012
      %v1047 = vadd.f32 %v897, %v1017
      %v1048 = vadd.f32 %v898, %v1022
      %v1049 = vadd.f32 %v899, %v1027
      %v1050 = vadd.f32 %v900, %v1032
      %v1051 = vadd.f32 %v901, %v1037
      %v1052 = vadd.f32 %v902, %v1042
      %v1053 = vld [vmem:[%s310 + $0x2] sm:$0xff]
      %v1054 = vld [vmem:[%s310 + $0x12] sm:$0xff]
      %v1055 = vld [vmem:[%s310 + $0x22] sm:$0xff]
      %v1056 = vld [vmem:[%s310 + $0x32] sm:$0xff]
      %v1057 = vld [vmem:[%s310 + $0x42] sm:$0xff]
      %v1058 = vld [vmem:[%s310 + $0x52] sm:$0xff]
      %v1059 = vld [vmem:[%s310 + $0x62] sm:$0xff]
      %v1060 = vld [vmem:[%s310 + $0x72] sm:$0xff]
      %s1061 = scalar_lea.vmem %s1, 20
      %v1062 = vld [vmem:[%s1061] sm:$0xf]
      %v1064 = vsel %vm288, %v1053, 0
      %v1067 = vsel %vm288, %v1054, 0
      %v1070 = vsel %vm288, %v1055, 0
      %v1073 = vsel %vm288, %v1056, 0
      %v1076 = vsel %vm288, %v1057, 0
      %v1079 = vsel %vm288, %v1058, 0
      %v1082 = vsel %vm288, %v1059, 0
      %v1085 = vsel %vm288, %v1060, 0
      %v1088 = vsel %vm362, %v1062, 0
      %1090 = vmatprep.subr.mxu0 0.0
      %1091 = vmatpush1.msra.mxu0 0.0
      %1092 = vmatprep.subr.mxu0 0.0
      %1093 = vmatpush1.msra.mxu0 0.0
      %1094 = vmatprep.subr.mxu0 0.0
      %1095 = vmatpush1.msra.mxu0 0.0
      %1096 = vmatprep.subr.mxu0 0.0
      %1097 = vmatpush1.msra.mxu0 0.0
      %1098 = vmatprep.subr.mxu0 0.0
      %1099 = vmatpush1.msra.mxu0 0.0
      %1100 = vmatprep.subr.mxu0 0.0
      %1101 = vmatpush1.msra.mxu0 0.0
      %1102 = vmatprep.subr.mxu0 0.0
      %1103 = vmatpush1.msra.mxu0 0.0
      %1104 = vmatprep.subr.mxu0 0.0
      %1105 = vmatpush1.msra.mxu0 0.0
      %1106 = vmatprep.subr.mxu0 0.0
      %1107 = vmatpush1.msra.mxu0 0.0
      %1108 = vmatprep.subr.mxu0 0.0
      %1109 = vmatpush1.msra.mxu0 0.0
      %1110 = vmatprep.subr.mxu0 0.0
      %1111 = vmatpush1.msra.mxu0 0.0
      %1112 = vmatprep.subr.mxu0 0.0
      %1113 = vmatpush1.msra.mxu0 0.0
      %1114 = vmatprep.subr.mxu0 0.0
      %1115 = vmatpush1.msra.mxu0 0.0
      %1116 = vmatprep.subr.mxu0 0.0
      %1117 = vmatpush1.msra.mxu0 0.0
      %1118 = vmatprep.subr.mxu0 0.0
      %1119 = vmatpush1.msra.mxu0 0.0
      %1120 = vmatprep.subr.mxu0 0.0
      %1121 = vmatpush1.msra.mxu0 %v1088
      %1122 = vmatprep.subr.mxu0 0.0
      %1123 = vmatpush2.msra.mxu0 0.0
      %1124 = vmatprep.subr.mxu0 0.0
      %1125 = vmatpush2.msra.mxu0 0.0
      %1126 = vmatprep.subr.mxu0 0.0
      %1127 = vmatpush2.msra.mxu0 0.0
      %1128 = vmatprep.subr.mxu0 0.0
      %1129 = vmatpush2.msra.mxu0 0.0
      %1130 = vmatprep.subr.mxu0 0.0
      %1131 = vmatpush2.msra.mxu0 0.0
      %1132 = vmatprep.subr.mxu0 0.0
      %1133 = vmatpush2.msra.mxu0 0.0
      %1134 = vmatprep.subr.mxu0 0.0
      %1135 = vmatpush2.msra.mxu0 0.0
      %1136 = vmatprep.subr.mxu0 0.0
      %1137 = vmatpush2.msra.mxu0 0.0
      %1138 = vmatprep.subr.mxu0 0.0
      %1139 = vmatpush2.msra.mxu0 0.0
      %1140 = vmatprep.subr.mxu0 0.0
      %1141 = vmatpush2.msra.mxu0 0.0
      %1142 = vmatprep.subr.mxu0 0.0
      %1143 = vmatpush2.msra.mxu0 0.0
      %1144 = vmatprep.subr.mxu0 0.0
      %1145 = vmatpush2.msra.mxu0 0.0
      %1146 = vmatprep.subr.mxu0 0.0
      %1147 = vmatpush2.msra.mxu0 0.0
      %1148 = vmatprep.subr.mxu0 0.0
      %1149 = vmatpush2.msra.mxu0 0.0
      %1150 = vmatprep.subr.mxu0 0.0
      %1151 = vmatpush2.msra.mxu0 0.0
      %1152 = vmatprep.subr.mxu0 0.0
      %1153 = vmatpush2.msra.mxu0 0.0
      %1154 = vmatprep.mubr.f32.mxu0 0.0
      %1155 = vmatmul.mubr.f32.gmra.mxu0 %v1064
      %v1156 = vpop.f32.mrf.mxu0
      %v1157 = vadd.f32 0.0, %v1156
      %v1158 = vpop.f32.mrf.mxu0
      %1159 = vmatprep.mubr.f32.mxu0 0.0
      %1160 = vmatmul.mubr.f32.gmra.mxu0 %v1067
      %v1161 = vpop.f32.mrf.mxu0
      %v1162 = vadd.f32 0.0, %v1161
      %v1163 = vpop.f32.mrf.mxu0
      %1164 = vmatprep.mubr.f32.mxu0 0.0
      %1165 = vmatmul.mubr.f32.gmra.mxu0 %v1070
      %v1166 = vpop.f32.mrf.mxu0
      %v1167 = vadd.f32 0.0, %v1166
      %v1168 = vpop.f32.mrf.mxu0
      %1169 = vmatprep.mubr.f32.mxu0 0.0
      %1170 = vmatmul.mubr.f32.gmra.mxu0 %v1073
      %v1171 = vpop.f32.mrf.mxu0
      %v1172 = vadd.f32 0.0, %v1171
      %v1173 = vpop.f32.mrf.mxu0
      %1174 = vmatprep.mubr.f32.mxu0 0.0
      %1175 = vmatmul.mubr.f32.gmra.mxu0 %v1076
      %v1176 = vpop.f32.mrf.mxu0
      %v1177 = vadd.f32 0.0, %v1176
      %v1178 = vpop.f32.mrf.mxu0
      %1179 = vmatprep.mubr.f32.mxu0 0.0
      %1180 = vmatmul.mubr.f32.gmra.mxu0 %v1079
      %v1181 = vpop.f32.mrf.mxu0
      %v1182 = vadd.f32 0.0, %v1181
      %v1183 = vpop.f32.mrf.mxu0
      %1184 = vmatprep.mubr.f32.mxu0 0.0
      %1185 = vmatmul.mubr.f32.gmra.mxu0 %v1082
      %v1186 = vpop.f32.mrf.mxu0
      %v1187 = vadd.f32 0.0, %v1186
      %v1188 = vpop.f32.mrf.mxu0
      %1189 = vmatprep.mubr.f32.mxu0 0.0
      %1190 = vmatmul.mubr.f32.gmra.mxu0 %v1085
      %v1191 = vpop.f32.mrf.mxu0
      %v1192 = vadd.f32 0.0, %v1191
      %v1193 = vpop.f32.mrf.mxu0
      %1194 = vdwg.mxu0
      %v1195 = vadd.f32 %v1045, %v1157
      %v1196 = vadd.f32 %v1046, %v1162
      %v1197 = vadd.f32 %v1047, %v1167
      %v1198 = vadd.f32 %v1048, %v1172
      %v1199 = vadd.f32 %v1049, %v1177
      %v1200 = vadd.f32 %v1050, %v1182
      %v1201 = vadd.f32 %v1051, %v1187
      %v1202 = vadd.f32 %v1052, %v1192
      %s1203 = scalar_lea.vmem [#allocation2], 32
      %v1204 = vld [vmem:[%s1203] sm:$0xff]
      %v1205 = vld [vmem:[%s1203 + $0x10] sm:$0xff]
      %v1206 = vld [vmem:[%s1203 + $0x20] sm:$0xff]
      %v1207 = vld [vmem:[%s1203 + $0x30] sm:$0xff]
      %v1208 = vld [vmem:[%s1203 + $0x40] sm:$0xff]
      %v1209 = vld [vmem:[%s1203 + $0x50] sm:$0xff]
      %v1210 = vld [vmem:[%s1203 + $0x60] sm:$0xff]
      %v1211 = vld [vmem:[%s1203 + $0x70] sm:$0xff]
      %s1212 = scalar_lea.vmem %s1, 24
      %v1213 = vld [vmem:[%s1212] sm:$0xf]
      %v1215 = vsel %vm288, %v1204, 0
      %v1218 = vsel %vm288, %v1205, 0
      %v1221 = vsel %vm288, %v1206, 0
      %v1224 = vsel %vm288, %v1207, 0
      %v1227 = vsel %vm288, %v1208, 0
      %v1230 = vsel %vm288, %v1209, 0
      %v1233 = vsel %vm288, %v1210, 0
      %v1236 = vsel %vm288, %v1211, 0
      %v1239 = vsel %vm362, %v1213, 0
      %1241 = vmatprep.subr.mxu0 0.0
      %1242 = vmatpush1.msra.mxu0 0.0
      %1243 = vmatprep.subr.mxu0 0.0
      %1244 = vmatpush1.msra.mxu0 0.0
      %1245 = vmatprep.subr.mxu0 0.0
      %1246 = vmatpush1.msra.mxu0 0.0
      %1247 = vmatprep.subr.mxu0 0.0
      %1248 = vmatpush1.msra.mxu0 0.0
      %1249 = vmatprep.subr.mxu0 0.0
      %1250 = vmatpush1.msra.mxu0 0.0
      %1251 = vmatprep.subr.mxu0 0.0
      %1252 = vmatpush1.msra.mxu0 0.0
      %1253 = vmatprep.subr.mxu0 0.0
      %1254 = vmatpush1.msra.mxu0 0.0
      %1255 = vmatprep.subr.mxu0 0.0
      %1256 = vmatpush1.msra.mxu0 0.0
      %1257 = vmatprep.subr.mxu0 0.0
      %1258 = vmatpush1.msra.mxu0 0.0
      %1259 = vmatprep.subr.mxu0 0.0
      %1260 = vmatpush1.msra.mxu0 0.0
      %1261 = vmatprep.subr.mxu0 0.0
      %1262 = vmatpush1.msra.mxu0 0.0
      %1263 = vmatprep.subr.mxu0 0.0
      %1264 = vmatpush1.msra.mxu0 0.0
      %1265 = vmatprep.subr.mxu0 0.0
      %1266 = vmatpush1.msra.mxu0 0.0
      %1267 = vmatprep.subr.mxu0 0.0
      %1268 = vmatpush1.msra.mxu0 0.0
      %1269 = vmatprep.subr.mxu0 0.0
      %1270 = vmatpush1.msra.mxu0 0.0
      %1271 = vmatprep.subr.mxu0 0.0
      %1272 = vmatpush1.msra.mxu0 %v1239
      %1273 = vmatprep.subr.mxu0 0.0
      %1274 = vmatpush2.msra.mxu0 0.0
      %1275 = vmatprep.subr.mxu0 0.0
      %1276 = vmatpush2.msra.mxu0 0.0
      %1277 = vmatprep.subr.mxu0 0.0
      %1278 = vmatpush2.msra.mxu0 0.0
      %1279 = vmatprep.subr.mxu0 0.0
      %1280 = vmatpush2.msra.mxu0 0.0
      %1281 = vmatprep.subr.mxu0 0.0
      %1282 = vmatpush2.msra.mxu0 0.0
      %1283 = vmatprep.subr.mxu0 0.0
      %1284 = vmatpush2.msra.mxu0 0.0
      %1285 = vmatprep.subr.mxu0 0.0
      %1286 = vmatpush2.msra.mxu0 0.0
      %1287 = vmatprep.subr.mxu0 0.0
      %1288 = vmatpush2.msra.mxu0 0.0
      %1289 = vmatprep.subr.mxu0 0.0
      %1290 = vmatpush2.msra.mxu0 0.0
      %1291 = vmatprep.subr.mxu0 0.0
      %1292 = vmatpush2.msra.mxu0 0.0
      %1293 = vmatprep.subr.mxu0 0.0
      %1294 = vmatpush2.msra.mxu0 0.0
      %1295 = vmatprep.subr.mxu0 0.0
      %1296 = vmatpush2.msra.mxu0 0.0
      %1297 = vmatprep.subr.mxu0 0.0
      %1298 = vmatpush2.msra.mxu0 0.0
      %1299 = vmatprep.subr.mxu0 0.0
      %1300 = vmatpush2.msra.mxu0 0.0
      %1301 = vmatprep.subr.mxu0 0.0
      %1302 = vmatpush2.msra.mxu0 0.0
      %1303 = vmatprep.subr.mxu0 0.0
      %1304 = vmatpush2.msra.mxu0 0.0
      %1305 = vmatprep.mubr.f32.mxu0 0.0
      %1306 = vmatmul.mubr.f32.gmra.mxu0 %v1215
      %v1307 = vpop.f32.mrf.mxu0
      %v1308 = vadd.f32 0.0, %v1307
      %v1309 = vpop.f32.mrf.mxu0
      %1310 = vmatprep.mubr.f32.mxu0 0.0
      %1311 = vmatmul.mubr.f32.gmra.mxu0 %v1218
      %v1312 = vpop.f32.mrf.mxu0
      %v1313 = vadd.f32 0.0, %v1312
      %v1314 = vpop.f32.mrf.mxu0
      %1315 = vmatprep.mubr.f32.mxu0 0.0
      %1316 = vmatmul.mubr.f32.gmra.mxu0 %v1221
      %v1317 = vpop.f32.mrf.mxu0
      %v1318 = vadd.f32 0.0, %v1317
      %v1319 = vpop.f32.mrf.mxu0
      %1320 = vmatprep.mubr.f32.mxu0 0.0
      %1321 = vmatmul.mubr.f32.gmra.mxu0 %v1224
      %v1322 = vpop.f32.mrf.mxu0
      %v1323 = vadd.f32 0.0, %v1322
      %v1324 = vpop.f32.mrf.mxu0
      %1325 = vmatprep.mubr.f32.mxu0 0.0
      %1326 = vmatmul.mubr.f32.gmra.mxu0 %v1227
      %v1327 = vpop.f32.mrf.mxu0
      %v1328 = vadd.f32 0.0, %v1327
      %v1329 = vpop.f32.mrf.mxu0
      %1330 = vmatprep.mubr.f32.mxu0 0.0
      %1331 = vmatmul.mubr.f32.gmra.mxu0 %v1230
      %v1332 = vpop.f32.mrf.mxu0
      %v1333 = vadd.f32 0.0, %v1332
      %v1334 = vpop.f32.mrf.mxu0
      %1335 = vmatprep.mubr.f32.mxu0 0.0
      %1336 = vmatmul.mubr.f32.gmra.mxu0 %v1233
      %v1337 = vpop.f32.mrf.mxu0
      %v1338 = vadd.f32 0.0, %v1337
      %v1339 = vpop.f32.mrf.mxu0
      %1340 = vmatprep.mubr.f32.mxu0 0.0
      %1341 = vmatmul.mubr.f32.gmra.mxu0 %v1236
      %v1342 = vpop.f32.mrf.mxu0
      %v1343 = vadd.f32 0.0, %v1342
      %v1344 = vpop.f32.mrf.mxu0
      %1345 = vdwg.mxu0
      %v1346 = vadd.f32 %v1195, %v1308
      %v1347 = vadd.f32 %v1196, %v1313
      %v1348 = vadd.f32 %v1197, %v1318
      %v1349 = vadd.f32 %v1198, %v1323
      %v1350 = vadd.f32 %v1199, %v1328
      %v1351 = vadd.f32 %v1200, %v1333
      %v1352 = vadd.f32 %v1201, %v1338
      %v1353 = vadd.f32 %v1202, %v1343
      %v1354 = vld [vmem:[%s1203 + $0x1] sm:$0xff]
      %v1355 = vld [vmem:[%s1203 + $0x11] sm:$0xff]
      %v1356 = vld [vmem:[%s1203 + $0x21] sm:$0xff]
      %v1357 = vld [vmem:[%s1203 + $0x31] sm:$0xff]
      %v1358 = vld [vmem:[%s1203 + $0x41] sm:$0xff]
      %v1359 = vld [vmem:[%s1203 + $0x51] sm:$0xff]
      %v1360 = vld [vmem:[%s1203 + $0x61] sm:$0xff]
      %v1361 = vld [vmem:[%s1203 + $0x71] sm:$0xff]
      %s1362 = scalar_lea.vmem %s1, 28
      %v1363 = vld [vmem:[%s1362] sm:$0xf]
      %v1365 = vsel %vm288, %v1354, 0
      %v1368 = vsel %vm288, %v1355, 0
      %v1371 = vsel %vm288, %v1356, 0
      %v1374 = vsel %vm288, %v1357, 0
      %v1377 = vsel %vm288, %v1358, 0
      %v1380 = vsel %vm288, %v1359, 0
      %v1383 = vsel %vm288, %v1360, 0
      %v1386 = vsel %vm288, %v1361, 0
      %v1389 = vsel %vm362, %v1363, 0
      %1391 = vmatprep.subr.mxu0 0.0
      %1392 = vmatpush1.msra.mxu0 0.0
      %1393 = vmatprep.subr.mxu0 0.0
      %1394 = vmatpush1.msra.mxu0 0.0
      %1395 = vmatprep.subr.mxu0 0.0
      %1396 = vmatpush1.msra.mxu0 0.0
      %1397 = vmatprep.subr.mxu0 0.0
      %1398 = vmatpush1.msra.mxu0 0.0
      %1399 = vmatprep.subr.mxu0 0.0
      %1400 = vmatpush1.msra.mxu0 0.0
      %1401 = vmatprep.subr.mxu0 0.0
      %1402 = vmatpush1.msra.mxu0 0.0
      %1403 = vmatprep.subr.mxu0 0.0
      %1404 = vmatpush1.msra.mxu0 0.0
      %1405 = vmatprep.subr.mxu0 0.0
      %1406 = vmatpush1.msra.mxu0 0.0
      %1407 = vmatprep.subr.mxu0 0.0
      %1408 = vmatpush1.msra.mxu0 0.0
      %1409 = vmatprep.subr.mxu0 0.0
      %1410 = vmatpush1.msra.mxu0 0.0
      %1411 = vmatprep.subr.mxu0 0.0
      %1412 = vmatpush1.msra.mxu0 0.0
      %1413 = vmatprep.subr.mxu0 0.0
      %1414 = vmatpush1.msra.mxu0 0.0
      %1415 = vmatprep.subr.mxu0 0.0
      %1416 = vmatpush1.msra.mxu0 0.0
      %1417 = vmatprep.subr.mxu0 0.0
      %1418 = vmatpush1.msra.mxu0 0.0
      %1419 = vmatprep.subr.mxu0 0.0
      %1420 = vmatpush1.msra.mxu0 0.0
      %1421 = vmatprep.subr.mxu0 0.0
      %1422 = vmatpush1.msra.mxu0 %v1389
      %1423 = vmatprep.subr.mxu0 0.0
      %1424 = vmatpush2.msra.mxu0 0.0
      %1425 = vmatprep.subr.mxu0 0.0
      %1426 = vmatpush2.msra.mxu0 0.0
      %1427 = vmatprep.subr.mxu0 0.0
      %1428 = vmatpush2.msra.mxu0 0.0
      %1429 = vmatprep.subr.mxu0 0.0
      %1430 = vmatpush2.msra.mxu0 0.0
      %1431 = vmatprep.subr.mxu0 0.0
      %1432 = vmatpush2.msra.mxu0 0.0
      %1433 = vmatprep.subr.mxu0 0.0
      %1434 = vmatpush2.msra.mxu0 0.0
      %1435 = vmatprep.subr.mxu0 0.0
      %1436 = vmatpush2.msra.mxu0 0.0
      %1437 = vmatprep.subr.mxu0 0.0
      %1438 = vmatpush2.msra.mxu0 0.0
      %1439 = vmatprep.subr.mxu0 0.0
      %1440 = vmatpush2.msra.mxu0 0.0
      %1441 = vmatprep.subr.mxu0 0.0
      %1442 = vmatpush2.msra.mxu0 0.0
      %1443 = vmatprep.subr.mxu0 0.0
      %1444 = vmatpush2.msra.mxu0 0.0
      %1445 = vmatprep.subr.mxu0 0.0
      %1446 = vmatpush2.msra.mxu0 0.0
      %1447 = vmatprep.subr.mxu0 0.0
      %1448 = vmatpush2.msra.mxu0 0.0
      %1449 = vmatprep.subr.mxu0 0.0
      %1450 = vmatpush2.msra.mxu0 0.0
      %1451 = vmatprep.subr.mxu0 0.0
      %1452 = vmatpush2.msra.mxu0 0.0
      %1453 = vmatprep.subr.mxu0 0.0
      %1454 = vmatpush2.msra.mxu0 0.0
      %1455 = vmatprep.mubr.f32.mxu0 0.0
      %1456 = vmatmul.mubr.f32.gmra.mxu0 %v1365
      %v1457 = vpop.f32.mrf.mxu0
      %v1458 = vadd.f32 0.0, %v1457
      %v1459 = vpop.f32.mrf.mxu0
      %1460 = vmatprep.mubr.f32.mxu0 0.0
      %1461 = vmatmul.mubr.f32.gmra.mxu0 %v1368
      %v1462 = vpop.f32.mrf.mxu0
      %v1463 = vadd.f32 0.0, %v1462
      %v1464 = vpop.f32.mrf.mxu0
      %1465 = vmatprep.mubr.f32.mxu0 0.0
      %1466 = vmatmul.mubr.f32.gmra.mxu0 %v1371
      %v1467 = vpop.f32.mrf.mxu0
      %v1468 = vadd.f32 0.0, %v1467
      %v1469 = vpop.f32.mrf.mxu0
      %1470 = vmatprep.mubr.f32.mxu0 0.0
      %1471 = vmatmul.mubr.f32.gmra.mxu0 %v1374
      %v1472 = vpop.f32.mrf.mxu0
      %v1473 = vadd.f32 0.0, %v1472
      %v1474 = vpop.f32.mrf.mxu0
      %1475 = vmatprep.mubr.f32.mxu0 0.0
      %1476 = vmatmul.mubr.f32.gmra.mxu0 %v1377
      %v1477 = vpop.f32.mrf.mxu0
      %v1478 = vadd.f32 0.0, %v1477
      %v1479 = vpop.f32.mrf.mxu0
      %1480 = vmatprep.mubr.f32.mxu0 0.0
      %1481 = vmatmul.mubr.f32.gmra.mxu0 %v1380
      %v1482 = vpop.f32.mrf.mxu0
      %v1483 = vadd.f32 0.0, %v1482
      %v1484 = vpop.f32.mrf.mxu0
      %1485 = vmatprep.mubr.f32.mxu0 0.0
      %1486 = vmatmul.mubr.f32.gmra.mxu0 %v1383
      %v1487 = vpop.f32.mrf.mxu0
      %v1488 = vadd.f32 0.0, %v1487
      %v1489 = vpop.f32.mrf.mxu0
      %1490 = vmatprep.mubr.f32.mxu0 0.0
      %1491 = vmatmul.mubr.f32.gmra.mxu0 %v1386
      %v1492 = vpop.f32.mrf.mxu0
      %v1493 = vadd.f32 0.0, %v1492
      %v1494 = vpop.f32.mrf.mxu0
      %1495 = vdwg.mxu0
      %v1496 = vadd.f32 %v1346, %v1458
      %v1497 = vadd.f32 %v1347, %v1463
      %v1498 = vadd.f32 %v1348, %v1468
      %v1499 = vadd.f32 %v1349, %v1473
      %v1500 = vadd.f32 %v1350, %v1478
      %v1501 = vadd.f32 %v1351, %v1483
      %v1502 = vadd.f32 %v1352, %v1488
      %v1503 = vadd.f32 %v1353, %v1493
      %v1504 = vld [vmem:[%s1203 + $0x2] sm:$0xff]
      %v1505 = vld [vmem:[%s1203 + $0x12] sm:$0xff]
      %v1506 = vld [vmem:[%s1203 + $0x22] sm:$0xff]
      %v1507 = vld [vmem:[%s1203 + $0x32] sm:$0xff]
      %v1508 = vld [vmem:[%s1203 + $0x42] sm:$0xff]
      %v1509 = vld [vmem:[%s1203 + $0x52] sm:$0xff]
      %v1510 = vld [vmem:[%s1203 + $0x62] sm:$0xff]
      %v1511 = vld [vmem:[%s1203 + $0x72] sm:$0xff]
      %s1512 = scalar_lea.vmem %s1, 32
      %v1513 = vld [vmem:[%s1512] sm:$0xf]
      %v1515 = vsel %vm288, %v1504, 0
      %v1518 = vsel %vm288, %v1505, 0
      %v1521 = vsel %vm288, %v1506, 0
      %v1524 = vsel %vm288, %v1507, 0
      %v1527 = vsel %vm288, %v1508, 0
      %v1530 = vsel %vm288, %v1509, 0
      %v1533 = vsel %vm288, %v1510, 0
      %v1536 = vsel %vm288, %v1511, 0
      %v1539 = vsel %vm362, %v1513, 0
      %1541 = vmatprep.subr.mxu0 0.0
      %1542 = vmatpush1.msra.mxu0 0.0
      %1543 = vmatprep.subr.mxu0 0.0
      %1544 = vmatpush1.msra.mxu0 0.0
      %1545 = vmatprep.subr.mxu0 0.0
      %1546 = vmatpush1.msra.mxu0 0.0
      %1547 = vmatprep.subr.mxu0 0.0
      %1548 = vmatpush1.msra.mxu0 0.0
      %1549 = vmatprep.subr.mxu0 0.0
      %1550 = vmatpush1.msra.mxu0 0.0
      %1551 = vmatprep.subr.mxu0 0.0
      %1552 = vmatpush1.msra.mxu0 0.0
      %1553 = vmatprep.subr.mxu0 0.0
      %1554 = vmatpush1.msra.mxu0 0.0
      %1555 = vmatprep.subr.mxu0 0.0
      %1556 = vmatpush1.msra.mxu0 0.0
      %1557 = vmatprep.subr.mxu0 0.0
      %1558 = vmatpush1.msra.mxu0 0.0
      %1559 = vmatprep.subr.mxu0 0.0
      %1560 = vmatpush1.msra.mxu0 0.0
      %1561 = vmatprep.subr.mxu0 0.0
      %1562 = vmatpush1.msra.mxu0 0.0
      %1563 = vmatprep.subr.mxu0 0.0
      %1564 = vmatpush1.msra.mxu0 0.0
      %1565 = vmatprep.subr.mxu0 0.0
      %1566 = vmatpush1.msra.mxu0 0.0
      %1567 = vmatprep.subr.mxu0 0.0
      %1568 = vmatpush1.msra.mxu0 0.0
      %1569 = vmatprep.subr.mxu0 0.0
      %1570 = vmatpush1.msra.mxu0 0.0
      %1571 = vmatprep.subr.mxu0 0.0
      %1572 = vmatpush1.msra.mxu0 %v1539
      %1573 = vmatprep.subr.mxu0 0.0
      %1574 = vmatpush2.msra.mxu0 0.0
      %1575 = vmatprep.subr.mxu0 0.0
      %1576 = vmatpush2.msra.mxu0 0.0
      %1577 = vmatprep.subr.mxu0 0.0
      %1578 = vmatpush2.msra.mxu0 0.0
      %1579 = vmatprep.subr.mxu0 0.0
      %1580 = vmatpush2.msra.mxu0 0.0
      %1581 = vmatprep.subr.mxu0 0.0
      %1582 = vmatpush2.msra.mxu0 0.0
      %1583 = vmatprep.subr.mxu0 0.0
      %1584 = vmatpush2.msra.mxu0 0.0
      %1585 = vmatprep.subr.mxu0 0.0
      %1586 = vmatpush2.msra.mxu0 0.0
      %1587 = vmatprep.subr.mxu0 0.0
      %1588 = vmatpush2.msra.mxu0 0.0
      %1589 = vmatprep.subr.mxu0 0.0
      %1590 = vmatpush2.msra.mxu0 0.0
      %1591 = vmatprep.subr.mxu0 0.0
      %1592 = vmatpush2.msra.mxu0 0.0
      %1593 = vmatprep.subr.mxu0 0.0
      %1594 = vmatpush2.msra.mxu0 0.0
      %1595 = vmatprep.subr.mxu0 0.0
      %1596 = vmatpush2.msra.mxu0 0.0
      %1597 = vmatprep.subr.mxu0 0.0
      %1598 = vmatpush2.msra.mxu0 0.0
      %1599 = vmatprep.subr.mxu0 0.0
      %1600 = vmatpush2.msra.mxu0 0.0
      %1601 = vmatprep.subr.mxu0 0.0
      %1602 = vmatpush2.msra.mxu0 0.0
      %1603 = vmatprep.subr.mxu0 0.0
      %1604 = vmatpush2.msra.mxu0 0.0
      %1605 = vmatprep.mubr.f32.mxu0 0.0
      %1606 = vmatmul.mubr.f32.gmra.mxu0 %v1515
      %v1607 = vpop.f32.mrf.mxu0
      %v1608 = vadd.f32 0.0, %v1607
      %v1609 = vpop.f32.mrf.mxu0
      %1610 = vmatprep.mubr.f32.mxu0 0.0
      %1611 = vmatmul.mubr.f32.gmra.mxu0 %v1518
      %v1612 = vpop.f32.mrf.mxu0
      %v1613 = vadd.f32 0.0, %v1612
      %v1614 = vpop.f32.mrf.mxu0
      %1615 = vmatprep.mubr.f32.mxu0 0.0
      %1616 = vmatmul.mubr.f32.gmra.mxu0 %v1521
      %v1617 = vpop.f32.mrf.mxu0
      %v1618 = vadd.f32 0.0, %v1617
      %v1619 = vpop.f32.mrf.mxu0
      %1620 = vmatprep.mubr.f32.mxu0 0.0
      %1621 = vmatmul.mubr.f32.gmra.mxu0 %v1524
      %v1622 = vpop.f32.mrf.mxu0
      %v1623 = vadd.f32 0.0, %v1622
      %v1624 = vpop.f32.mrf.mxu0
      %1625 = vmatprep.mubr.f32.mxu0 0.0
      %1626 = vmatmul.mubr.f32.gmra.mxu0 %v1527
      %v1627 = vpop.f32.mrf.mxu0
      %v1628 = vadd.f32 0.0, %v1627
      %v1629 = vpop.f32.mrf.mxu0
      %1630 = vmatprep.mubr.f32.mxu0 0.0
      %1631 = vmatmul.mubr.f32.gmra.mxu0 %v1530
      %v1632 = vpop.f32.mrf.mxu0
      %v1633 = vadd.f32 0.0, %v1632
      %v1634 = vpop.f32.mrf.mxu0
      %1635 = vmatprep.mubr.f32.mxu0 0.0
      %1636 = vmatmul.mubr.f32.gmra.mxu0 %v1533
      %v1637 = vpop.f32.mrf.mxu0
      %v1638 = vadd.f32 0.0, %v1637
      %v1639 = vpop.f32.mrf.mxu0
      %1640 = vmatprep.mubr.f32.mxu0 0.0
      %1641 = vmatmul.mubr.f32.gmra.mxu0 %v1536
      %v1642 = vpop.f32.mrf.mxu0
      %v1643 = vadd.f32 0.0, %v1642
      %v1644 = vpop.f32.mrf.mxu0
      %1645 = vdwg.mxu0
      %v1646 = vadd.f32 %v1496, %v1608
      %v1647 = vadd.f32 %v1497, %v1613
      %v1648 = vadd.f32 %v1498, %v1618
      %v1649 = vadd.f32 %v1499, %v1623
      %v1650 = vadd.f32 %v1500, %v1628
      %v1651 = vadd.f32 %v1501, %v1633
      %v1652 = vadd.f32 %v1502, %v1638
      %v1653 = vadd.f32 %v1503, %v1643
      %v1654 = vld [vmem:[%s3] sm:$0x1]
      %v1656 = vlaneseq
      %v1657 = vshrl.u32 %v1656, 7
      %v1658 = vsub.s32 0, %v1657
      %v1659 = vrot.slane %v1654, %v1658
      %v1661 = vadd.f32 %v1646, %v1659
      %v1662 = vadd.f32 %v1647, %v1659
      %v1663 = vadd.f32 %v1648, %v1659
      %v1664 = vadd.f32 %v1649, %v1659
      %v1665 = vadd.f32 %v1650, %v1659
      %v1666 = vadd.f32 %v1651, %v1659
      %v1667 = vadd.f32 %v1652, %v1659
      %v1668 = vadd.f32 %v1653, %v1659
      %v1669 = vmax.f32 %v1661, 0.0
      %v1670 = vmax.f32 %v1662, 0.0
      %v1671 = vmax.f32 %v1663, 0.0
      %v1672 = vmax.f32 %v1664, 0.0
      %v1673 = vmax.f32 %v1665, 0.0
      %v1674 = vmax.f32 %v1666, 0.0
      %v1675 = vmax.f32 %v1667, 0.0
      %v1676 = vmax.f32 %v1668, 0.0
      %vm1677 = vcmask 64512
      %1678 = vst.msk [vmem:[#allocation3] sm:$0xff] %vm1677, 0.0
      %vm1679 = vcmask 58368
      %1680 = vst.msk [vmem:[#allocation3 + $0x8] sm:$0x3] %vm1679, 0.0
      %1681 = vst.msk [vmem:[#allocation3 + $0x10] sm:$0xff] %vm1677, 0.0
      %1682 = vst.msk [vmem:[#allocation3 + $0x18] sm:$0x3] %vm1679, 0.0
      %1683 = vst.msk [vmem:[#allocation3 + $0x20] sm:$0xff] %vm1677, 0.0
      %1684 = vst.msk [vmem:[#allocation3 + $0x28] sm:$0x3] %vm1679, 0.0
      %1685 = vst.msk [vmem:[#allocation3 + $0x30] sm:$0xff] %vm1677, 0.0
      %1686 = vst.msk [vmem:[#allocation3 + $0x38] sm:$0x3] %vm1679, 0.0
      %1687 = vst.msk [vmem:[#allocation3 + $0x40] sm:$0xff] %vm1677, 0.0
      %1688 = vst.msk [vmem:[#allocation3 + $0x48] sm:$0x3] %vm1679, 0.0
      %1689 = vst.msk [vmem:[#allocation3 + $0x50] sm:$0xff] %vm1677, 0.0
      %1690 = vst.msk [vmem:[#allocation3 + $0x58] sm:$0x3] %vm1679, 0.0
      %1691 = vst.msk [vmem:[#allocation3 + $0x60] sm:$0xff] %vm1677, 0.0
      %1692 = vst.msk [vmem:[#allocation3 + $0x68] sm:$0x3] %vm1679, 0.0
      %1693 = vst.msk [vmem:[#allocation3 + $0x70] sm:$0xff] %vm1677, 0.0
      %1694 = vst.msk [vmem:[#allocation3 + $0x78] sm:$0x3] %vm1679, 0.0
      %1695 = vst.msk [vmem:[#allocation3 + $0x80] sm:$0xff] %vm1677, 0.0
      %1696 = vst.msk [vmem:[#allocation3 + $0x88] sm:$0x3] %vm1679, 0.0
      %1697 = vst.msk [vmem:[#allocation3 + $0x90] sm:$0xff] %vm1677, 0.0
      %1698 = vst.msk [vmem:[#allocation3 + $0x98] sm:$0x3] %vm1679, 0.0
      %s1699 = scalar_lea.vmem [#allocation3], 16
      %1700 = vst.msk [vmem:[%s1699 + $0x1] sm:$0xff] %vm1677, %v1669
      %1701 = vst.msk [vmem:[%s1699 + $0x11] sm:$0xff] %vm1677, %v1670
      %1702 = vst.msk [vmem:[%s1699 + $0x21] sm:$0xff] %vm1677, %v1671
      %1703 = vst.msk [vmem:[%s1699 + $0x31] sm:$0xff] %vm1677, %v1672
      %1704 = vst.msk [vmem:[%s1699 + $0x41] sm:$0xff] %vm1677, %v1673
      %1705 = vst.msk [vmem:[%s1699 + $0x51] sm:$0xff] %vm1677, %v1674
      %1706 = vst.msk [vmem:[%s1699 + $0x61] sm:$0xff] %vm1677, %v1675
      %1707 = vst.msk [vmem:[%s1699 + $0x71] sm:$0xff] %vm1677, %v1676
      %v1708 = vld [vmem:[#allocation3] sm:$0xff]
      %v1709 = vld [vmem:[#allocation3 + $0x10] sm:$0xff]
      %v1710 = vld [vmem:[#allocation3 + $0x20] sm:$0xff]
      %v1711 = vld [vmem:[#allocation3 + $0x30] sm:$0xff]
      %v1712 = vld [vmem:[#allocation3 + $0x40] sm:$0xff]
      %v1713 = vld [vmem:[#allocation3 + $0x50] sm:$0xff]
      %v1714 = vld [vmem:[#allocation3 + $0x60] sm:$0xff]
      %v1715 = vld [vmem:[#allocation3 + $0x70] sm:$0xff]
      %v1716 = vld [vmem:[%s2] sm:$0xff]
      %v1717 = vld [vmem:[#allocation3 + $0x1] sm:$0xff]
      %v1718 = vld [vmem:[#allocation3 + $0x11] sm:$0xff]
      %v1719 = vld [vmem:[#allocation3 + $0x21] sm:$0xff]
      %v1720 = vld [vmem:[#allocation3 + $0x31] sm:$0xff]
      %v1721 = vld [vmem:[#allocation3 + $0x41] sm:$0xff]
      %v1722 = vld [vmem:[#allocation3 + $0x51] sm:$0xff]
      %v1723 = vld [vmem:[#allocation3 + $0x61] sm:$0xff]
      %v1724 = vld [vmem:[#allocation3 + $0x71] sm:$0xff]
      %s1725 = scalar_lea.vmem %s2, 8
      %v1726 = vld [vmem:[%s1725] sm:$0xff]
      %v1728 = vsel %vm1677, %v1717, 0
      %v1731 = vsel %vm1677, %v1718, 0
      %v1734 = vsel %vm1677, %v1719, 0
      %v1737 = vsel %vm1677, %v1720, 0
      %v1740 = vsel %vm1677, %v1721, 0
      %v1743 = vsel %vm1677, %v1722, 0
      %v1746 = vsel %vm1677, %v1723, 0
      %v1749 = vsel %vm1677, %v1724, 0
      %1751 = vmatprep.subr.mxu0 0.0
      %1752 = vmatpush1.msra.mxu0 0.0
      %1753 = vmatprep.subr.mxu0 0.0
      %1754 = vmatpush1.msra.mxu0 0.0
      %1755 = vmatprep.subr.mxu0 0.0
      %1756 = vmatpush1.msra.mxu0 0.0
      %1757 = vmatprep.subr.mxu0 0.0
      %1758 = vmatpush1.msra.mxu0 0.0
      %1759 = vmatprep.subr.mxu0 0.0
      %1760 = vmatpush1.msra.mxu0 0.0
      %1761 = vmatprep.subr.mxu0 0.0
      %1762 = vmatpush1.msra.mxu0 0.0
      %1763 = vmatprep.subr.mxu0 0.0
      %1764 = vmatpush1.msra.mxu0 0.0
      %1765 = vmatprep.subr.mxu0 0.0
      %1766 = vmatpush1.msra.mxu0 0.0
      %1767 = vmatprep.subr.mxu0 0.0
      %1768 = vmatpush1.msra.mxu0 0.0
      %1769 = vmatprep.subr.mxu0 0.0
      %1770 = vmatpush1.msra.mxu0 0.0
      %1771 = vmatprep.subr.mxu0 0.0
      %1772 = vmatpush1.msra.mxu0 0.0
      %1773 = vmatprep.subr.mxu0 0.0
      %1774 = vmatpush1.msra.mxu0 0.0
      %1775 = vmatprep.subr.mxu0 0.0
      %1776 = vmatpush1.msra.mxu0 0.0
      %1777 = vmatprep.subr.mxu0 0.0
      %1778 = vmatpush1.msra.mxu0 0.0
      %1779 = vmatprep.subr.mxu0 0.0
      %1780 = vmatpush1.msra.mxu0 0.0
      %1781 = vmatprep.subr.mxu0 0.0
      %1782 = vmatpush1.msra.mxu0 %v1726
      %1783 = vmatprep.subr.mxu0 0.0
      %1784 = vmatpush2.msra.mxu0 0.0
      %1785 = vmatprep.subr.mxu0 0.0
      %1786 = vmatpush2.msra.mxu0 0.0
      %1787 = vmatprep.subr.mxu0 0.0
      %1788 = vmatpush2.msra.mxu0 0.0
      %1789 = vmatprep.subr.mxu0 0.0
      %1790 = vmatpush2.msra.mxu0 0.0
      %1791 = vmatprep.subr.mxu0 0.0
      %1792 = vmatpush2.msra.mxu0 0.0
      %1793 = vmatprep.subr.mxu0 0.0
      %1794 = vmatpush2.msra.mxu0 0.0
      %1795 = vmatprep.subr.mxu0 0.0
      %1796 = vmatpush2.msra.mxu0 0.0
      %1797 = vmatprep.subr.mxu0 0.0
      %1798 = vmatpush2.msra.mxu0 0.0
      %1799 = vmatprep.subr.mxu0 0.0
      %1800 = vmatpush2.msra.mxu0 0.0
      %1801 = vmatprep.subr.mxu0 0.0
      %1802 = vmatpush2.msra.mxu0 0.0
      %1803 = vmatprep.subr.mxu0 0.0
      %1804 = vmatpush2.msra.mxu0 0.0
      %1805 = vmatprep.subr.mxu0 0.0
      %1806 = vmatpush2.msra.mxu0 0.0
      %1807 = vmatprep.subr.mxu0 0.0
      %1808 = vmatpush2.msra.mxu0 0.0
      %1809 = vmatprep.subr.mxu0 0.0
      %1810 = vmatpush2.msra.mxu0 0.0
      %1811 = vmatprep.subr.mxu0 0.0
      %1812 = vmatpush2.msra.mxu0 0.0
      %1813 = vmatprep.subr.mxu0 0.0
      %1814 = vmatpush2.msra.mxu0 0.0
      %1815 = vmatprep.mubr.f32.mxu0 0.0
      %1816 = vmatmul.mubr.f32.gmra.mxu0 %v1728
      %v1817 = vpop.f32.mrf.mxu0
      %v1818 = vadd.f32 0.0, %v1817
      %v1819 = vpop.f32.mrf.mxu0
      %1820 = vmatprep.mubr.f32.mxu0 0.0
      %1821 = vmatmul.mubr.f32.gmra.mxu0 %v1731
      %v1822 = vpop.f32.mrf.mxu0
      %v1823 = vadd.f32 0.0, %v1822
      %v1824 = vpop.f32.mrf.mxu0
      %1825 = vmatprep.mubr.f32.mxu0 0.0
      %1826 = vmatmul.mubr.f32.gmra.mxu0 %v1734
      %v1827 = vpop.f32.mrf.mxu0
      %v1828 = vadd.f32 0.0, %v1827
      %v1829 = vpop.f32.mrf.mxu0
      %1830 = vmatprep.mubr.f32.mxu0 0.0
      %1831 = vmatmul.mubr.f32.gmra.mxu0 %v1737
      %v1832 = vpop.f32.mrf.mxu0
      %v1833 = vadd.f32 0.0, %v1832
      %v1834 = vpop.f32.mrf.mxu0
      %1835 = vmatprep.mubr.f32.mxu0 0.0
      %1836 = vmatmul.mubr.f32.gmra.mxu0 %v1740
      %v1837 = vpop.f32.mrf.mxu0
      %v1838 = vadd.f32 0.0, %v1837
      %v1839 = vpop.f32.mrf.mxu0
      %1840 = vmatprep.mubr.f32.mxu0 0.0
      %1841 = vmatmul.mubr.f32.gmra.mxu0 %v1743
      %v1842 = vpop.f32.mrf.mxu0
      %v1843 = vadd.f32 0.0, %v1842
      %v1844 = vpop.f32.mrf.mxu0
      %1845 = vmatprep.mubr.f32.mxu0 0.0
      %1846 = vmatmul.mubr.f32.gmra.mxu0 %v1746
      %v1847 = vpop.f32.mrf.mxu0
      %v1848 = vadd.f32 0.0, %v1847
      %v1849 = vpop.f32.mrf.mxu0
      %1850 = vmatprep.mubr.f32.mxu0 0.0
      %1851 = vmatmul.mubr.f32.gmra.mxu0 %v1749
      %v1852 = vpop.f32.mrf.mxu0
      %v1853 = vadd.f32 0.0, %v1852
      %v1854 = vpop.f32.mrf.mxu0
      %1855 = vdwg.mxu0
      %v1857 = vsel %vm1677, %v1708, 0
      %v1860 = vsel %vm1677, %v1709, 0
      %v1863 = vsel %vm1677, %v1710, 0
      %v1866 = vsel %vm1677, %v1711, 0
      %v1869 = vsel %vm1677, %v1712, 0
      %v1872 = vsel %vm1677, %v1713, 0
      %v1875 = vsel %vm1677, %v1714, 0
      %v1878 = vsel %vm1677, %v1715, 0
      %1880 = vmatprep.subr.mxu0 0.0
      %1881 = vmatpush1.msra.mxu0 0.0
      %1882 = vmatprep.subr.mxu0 0.0
      %1883 = vmatpush1.msra.mxu0 0.0
      %1884 = vmatprep.subr.mxu0 0.0
      %1885 = vmatpush1.msra.mxu0 0.0
      %1886 = vmatprep.subr.mxu0 0.0
      %1887 = vmatpush1.msra.mxu0 0.0
      %1888 = vmatprep.subr.mxu0 0.0
      %1889 = vmatpush1.msra.mxu0 0.0
      %1890 = vmatprep.subr.mxu0 0.0
      %1891 = vmatpush1.msra.mxu0 0.0
      %1892 = vmatprep.subr.mxu0 0.0
      %1893 = vmatpush1.msra.mxu0 0.0
      %1894 = vmatprep.subr.mxu0 0.0
      %1895 = vmatpush1.msra.mxu0 0.0
      %1896 = vmatprep.subr.mxu0 0.0
      %1897 = vmatpush1.msra.mxu0 0.0
      %1898 = vmatprep.subr.mxu0 0.0
      %1899 = vmatpush1.msra.mxu0 0.0
      %1900 = vmatprep.subr.mxu0 0.0
      %1901 = vmatpush1.msra.mxu0 0.0
      %1902 = vmatprep.subr.mxu0 0.0
      %1903 = vmatpush1.msra.mxu0 0.0
      %1904 = vmatprep.subr.mxu0 0.0
      %1905 = vmatpush1.msra.mxu0 0.0
      %1906 = vmatprep.subr.mxu0 0.0
      %1907 = vmatpush1.msra.mxu0 0.0
      %1908 = vmatprep.subr.mxu0 0.0
      %1909 = vmatpush1.msra.mxu0 0.0
      %1910 = vmatprep.subr.mxu0 0.0
      %1911 = vmatpush1.msra.mxu0 %v1716
      %1912 = vmatprep.subr.mxu0 0.0
      %1913 = vmatpush2.msra.mxu0 0.0
      %1914 = vmatprep.subr.mxu0 0.0
      %1915 = vmatpush2.msra.mxu0 0.0
      %1916 = vmatprep.subr.mxu0 0.0
      %1917 = vmatpush2.msra.mxu0 0.0
      %1918 = vmatprep.subr.mxu0 0.0
      %1919 = vmatpush2.msra.mxu0 0.0
      %1920 = vmatprep.subr.mxu0 0.0
      %1921 = vmatpush2.msra.mxu0 0.0
      %1922 = vmatprep.subr.mxu0 0.0
      %1923 = vmatpush2.msra.mxu0 0.0
      %1924 = vmatprep.subr.mxu0 0.0
      %1925 = vmatpush2.msra.mxu0 0.0
      %1926 = vmatprep.subr.mxu0 0.0
      %1927 = vmatpush2.msra.mxu0 0.0
      %1928 = vmatprep.subr.mxu0 0.0
      %1929 = vmatpush2.msra.mxu0 0.0
      %1930 = vmatprep.subr.mxu0 0.0
      %1931 = vmatpush2.msra.mxu0 0.0
      %1932 = vmatprep.subr.mxu0 0.0
      %1933 = vmatpush2.msra.mxu0 0.0
      %1934 = vmatprep.subr.mxu0 0.0
      %1935 = vmatpush2.msra.mxu0 0.0
      %1936 = vmatprep.subr.mxu0 0.0
      %1937 = vmatpush2.msra.mxu0 0.0
      %1938 = vmatprep.subr.mxu0 0.0
      %1939 = vmatpush2.msra.mxu0 0.0
      %1940 = vmatprep.subr.mxu0 0.0
      %1941 = vmatpush2.msra.mxu0 0.0
      %1942 = vmatprep.subr.mxu0 0.0
      %1943 = vmatpush2.msra.mxu0 0.0
      %1944 = vmatprep.mubr.f32.mxu0 0.0
      %1945 = vmatmul.mubr.f32.gmra.mxu0 %v1857
      %v1946 = vpop.f32.mrf.mxu0
      %v1947 = vadd.f32 %v1818, %v1946
      %v1948 = vpop.f32.mrf.mxu0
      %1949 = vmatprep.mubr.f32.mxu0 0.0
      %1950 = vmatmul.mubr.f32.gmra.mxu0 %v1860
      %v1951 = vpop.f32.mrf.mxu0
      %v1952 = vadd.f32 %v1823, %v1951
      %v1953 = vpop.f32.mrf.mxu0
      %1954 = vmatprep.mubr.f32.mxu0 0.0
      %1955 = vmatmul.mubr.f32.gmra.mxu0 %v1863
      %v1956 = vpop.f32.mrf.mxu0
      %v1957 = vadd.f32 %v1828, %v1956
      %v1958 = vpop.f32.mrf.mxu0
      %1959 = vmatprep.mubr.f32.mxu0 0.0
      %1960 = vmatmul.mubr.f32.gmra.mxu0 %v1866
      %v1961 = vpop.f32.mrf.mxu0
      %v1962 = vadd.f32 %v1833, %v1961
      %v1963 = vpop.f32.mrf.mxu0
      %1964 = vmatprep.mubr.f32.mxu0 0.0
      %1965 = vmatmul.mubr.f32.gmra.mxu0 %v1869
      %v1966 = vpop.f32.mrf.mxu0
      %v1967 = vadd.f32 %v1838, %v1966
      %v1968 = vpop.f32.mrf.mxu0
      %1969 = vmatprep.mubr.f32.mxu0 0.0
      %1970 = vmatmul.mubr.f32.gmra.mxu0 %v1872
      %v1971 = vpop.f32.mrf.mxu0
      %v1972 = vadd.f32 %v1843, %v1971
      %v1973 = vpop.f32.mrf.mxu0
      %1974 = vmatprep.mubr.f32.mxu0 0.0
      %1975 = vmatmul.mubr.f32.gmra.mxu0 %v1875
      %v1976 = vpop.f32.mrf.mxu0
      %v1977 = vadd.f32 %v1848, %v1976
      %v1978 = vpop.f32.mrf.mxu0
      %1979 = vmatprep.mubr.f32.mxu0 0.0
      %1980 = vmatmul.mubr.f32.gmra.mxu0 %v1878
      %v1981 = vpop.f32.mrf.mxu0
      %v1982 = vadd.f32 %v1853, %v1981
      %v1983 = vpop.f32.mrf.mxu0
      %1984 = vdwg.mxu0
      %v1985 = vld [vmem:[#allocation3 + $0x2] sm:$0xff]
      %v1986 = vld [vmem:[#allocation3 + $0x12] sm:$0xff]
      %v1987 = vld [vmem:[#allocation3 + $0x22] sm:$0xff]
      %v1988 = vld [vmem:[#allocation3 + $0x32] sm:$0xff]
      %v1989 = vld [vmem:[#allocation3 + $0x42] sm:$0xff]
      %v1990 = vld [vmem:[#allocation3 + $0x52] sm:$0xff]
      %v1991 = vld [vmem:[#allocation3 + $0x62] sm:$0xff]
      %v1992 = vld [vmem:[#allocation3 + $0x72] sm:$0xff]
      %s1993 = scalar_lea.vmem %s2, 16
      %v1994 = vld [vmem:[%s1993] sm:$0xff]
      %v1996 = vsel %vm1677, %v1985, 0
      %v1999 = vsel %vm1677, %v1986, 0
      %v2002 = vsel %vm1677, %v1987, 0
      %v2005 = vsel %vm1677, %v1988, 0
      %v2008 = vsel %vm1677, %v1989, 0
      %v2011 = vsel %vm1677, %v1990, 0
      %v2014 = vsel %vm1677, %v1991, 0
      %v2017 = vsel %vm1677, %v1992, 0
      %2019 = vmatprep.subr.mxu0 0.0
      %2020 = vmatpush1.msra.mxu0 0.0
      %2021 = vmatprep.subr.mxu0 0.0
      %2022 = vmatpush1.msra.mxu0 0.0
      %2023 = vmatprep.subr.mxu0 0.0
      %2024 = vmatpush1.msra.mxu0 0.0
      %2025 = vmatprep.subr.mxu0 0.0
      %2026 = vmatpush1.msra.mxu0 0.0
      %2027 = vmatprep.subr.mxu0 0.0
      %2028 = vmatpush1.msra.mxu0 0.0
      %2029 = vmatprep.subr.mxu0 0.0
      %2030 = vmatpush1.msra.mxu0 0.0
      %2031 = vmatprep.subr.mxu0 0.0
      %2032 = vmatpush1.msra.mxu0 0.0
      %2033 = vmatprep.subr.mxu0 0.0
      %2034 = vmatpush1.msra.mxu0 0.0
      %2035 = vmatprep.subr.mxu0 0.0
      %2036 = vmatpush1.msra.mxu0 0.0
      %2037 = vmatprep.subr.mxu0 0.0
      %2038 = vmatpush1.msra.mxu0 0.0
      %2039 = vmatprep.subr.mxu0 0.0
      %2040 = vmatpush1.msra.mxu0 0.0
      %2041 = vmatprep.subr.mxu0 0.0
      %2042 = vmatpush1.msra.mxu0 0.0
      %2043 = vmatprep.subr.mxu0 0.0
      %2044 = vmatpush1.msra.mxu0 0.0
      %2045 = vmatprep.subr.mxu0 0.0
      %2046 = vmatpush1.msra.mxu0 0.0
      %2047 = vmatprep.subr.mxu0 0.0
      %2048 = vmatpush1.msra.mxu0 0.0
      %2049 = vmatprep.subr.mxu0 0.0
      %2050 = vmatpush1.msra.mxu0 %v1994
      %2051 = vmatprep.subr.mxu0 0.0
      %2052 = vmatpush2.msra.mxu0 0.0
      %2053 = vmatprep.subr.mxu0 0.0
      %2054 = vmatpush2.msra.mxu0 0.0
      %2055 = vmatprep.subr.mxu0 0.0
      %2056 = vmatpush2.msra.mxu0 0.0
      %2057 = vmatprep.subr.mxu0 0.0
      %2058 = vmatpush2.msra.mxu0 0.0
      %2059 = vmatprep.subr.mxu0 0.0
      %2060 = vmatpush2.msra.mxu0 0.0
      %2061 = vmatprep.subr.mxu0 0.0
      %2062 = vmatpush2.msra.mxu0 0.0
      %2063 = vmatprep.subr.mxu0 0.0
      %2064 = vmatpush2.msra.mxu0 0.0
      %2065 = vmatprep.subr.mxu0 0.0
      %2066 = vmatpush2.msra.mxu0 0.0
      %2067 = vmatprep.subr.mxu0 0.0
      %2068 = vmatpush2.msra.mxu0 0.0
      %2069 = vmatprep.subr.mxu0 0.0
      %2070 = vmatpush2.msra.mxu0 0.0
      %2071 = vmatprep.subr.mxu0 0.0
      %2072 = vmatpush2.msra.mxu0 0.0
      %2073 = vmatprep.subr.mxu0 0.0
      %2074 = vmatpush2.msra.mxu0 0.0
      %2075 = vmatprep.subr.mxu0 0.0
      %2076 = vmatpush2.msra.mxu0 0.0
      %2077 = vmatprep.subr.mxu0 0.0
      %2078 = vmatpush2.msra.mxu0 0.0
      %2079 = vmatprep.subr.mxu0 0.0
      %2080 = vmatpush2.msra.mxu0 0.0
      %2081 = vmatprep.subr.mxu0 0.0
      %2082 = vmatpush2.msra.mxu0 0.0
      %2083 = vmatprep.mubr.f32.mxu0 0.0
      %2084 = vmatmul.mubr.f32.gmra.mxu0 %v1996
      %v2085 = vpop.f32.mrf.mxu0
      %v2086 = vadd.f32 0.0, %v2085
      %v2087 = vpop.f32.mrf.mxu0
      %2088 = vmatprep.mubr.f32.mxu0 0.0
      %2089 = vmatmul.mubr.f32.gmra.mxu0 %v1999
      %v2090 = vpop.f32.mrf.mxu0
      %v2091 = vadd.f32 0.0, %v2090
      %v2092 = vpop.f32.mrf.mxu0
      %2093 = vmatprep.mubr.f32.mxu0 0.0
      %2094 = vmatmul.mubr.f32.gmra.mxu0 %v2002
      %v2095 = vpop.f32.mrf.mxu0
      %v2096 = vadd.f32 0.0, %v2095
      %v2097 = vpop.f32.mrf.mxu0
      %2098 = vmatprep.mubr.f32.mxu0 0.0
      %2099 = vmatmul.mubr.f32.gmra.mxu0 %v2005
      %v2100 = vpop.f32.mrf.mxu0
      %v2101 = vadd.f32 0.0, %v2100
      %v2102 = vpop.f32.mrf.mxu0
      %2103 = vmatprep.mubr.f32.mxu0 0.0
      %2104 = vmatmul.mubr.f32.gmra.mxu0 %v2008
      %v2105 = vpop.f32.mrf.mxu0
      %v2106 = vadd.f32 0.0, %v2105
      %v2107 = vpop.f32.mrf.mxu0
      %2108 = vmatprep.mubr.f32.mxu0 0.0
      %2109 = vmatmul.mubr.f32.gmra.mxu0 %v2011
      %v2110 = vpop.f32.mrf.mxu0
      %v2111 = vadd.f32 0.0, %v2110
      %v2112 = vpop.f32.mrf.mxu0
      %2113 = vmatprep.mubr.f32.mxu0 0.0
      %2114 = vmatmul.mubr.f32.gmra.mxu0 %v2014
      %v2115 = vpop.f32.mrf.mxu0
      %v2116 = vadd.f32 0.0, %v2115
      %v2117 = vpop.f32.mrf.mxu0
      %2118 = vmatprep.mubr.f32.mxu0 0.0
      %2119 = vmatmul.mubr.f32.gmra.mxu0 %v2017
      %v2120 = vpop.f32.mrf.mxu0
      %v2121 = vadd.f32 0.0, %v2120
      %v2122 = vpop.f32.mrf.mxu0
      %2123 = vdwg.mxu0
      %v2124 = vadd.f32 %v1947, %v2086
      %v2125 = vadd.f32 %v1952, %v2091
      %v2126 = vadd.f32 %v1957, %v2096
      %v2127 = vadd.f32 %v1962, %v2101
      %v2128 = vadd.f32 %v1967, %v2106
      %v2129 = vadd.f32 %v1972, %v2111
      %v2130 = vadd.f32 %v1977, %v2116
      %v2131 = vadd.f32 %v1982, %v2121
      %v2132 = vld [vmem:[%s1699] sm:$0xff]
      %v2133 = vld [vmem:[%s1699 + $0x10] sm:$0xff]
      %v2134 = vld [vmem:[%s1699 + $0x20] sm:$0xff]
      %v2135 = vld [vmem:[%s1699 + $0x30] sm:$0xff]
      %v2136 = vld [vmem:[%s1699 + $0x40] sm:$0xff]
      %v2137 = vld [vmem:[%s1699 + $0x50] sm:$0xff]
      %v2138 = vld [vmem:[%s1699 + $0x60] sm:$0xff]
      %v2139 = vld [vmem:[%s1699 + $0x70] sm:$0xff]
      %s2140 = scalar_lea.vmem %s2, 24
      %v2141 = vld [vmem:[%s2140] sm:$0xff]
      %v2143 = vsel %vm1677, %v2132, 0
      %v2146 = vsel %vm1677, %v2133, 0
      %v2149 = vsel %vm1677, %v2134, 0
      %v2152 = vsel %vm1677, %v2135, 0
      %v2155 = vsel %vm1677, %v2136, 0
      %v2158 = vsel %vm1677, %v2137, 0
      %v2161 = vsel %vm1677, %v2138, 0
      %v2164 = vsel %vm1677, %v2139, 0
      %2166 = vmatprep.subr.mxu0 0.0
      %2167 = vmatpush1.msra.mxu0 0.0
      %2168 = vmatprep.subr.mxu0 0.0
      %2169 = vmatpush1.msra.mxu0 0.0
      %2170 = vmatprep.subr.mxu0 0.0
      %2171 = vmatpush1.msra.mxu0 0.0
      %2172 = vmatprep.subr.mxu0 0.0
      %2173 = vmatpush1.msra.mxu0 0.0
      %2174 = vmatprep.subr.mxu0 0.0
      %2175 = vmatpush1.msra.mxu0 0.0
      %2176 = vmatprep.subr.mxu0 0.0
      %2177 = vmatpush1.msra.mxu0 0.0
      %2178 = vmatprep.subr.mxu0 0.0
      %2179 = vmatpush1.msra.mxu0 0.0
      %2180 = vmatprep.subr.mxu0 0.0
      %2181 = vmatpush1.msra.mxu0 0.0
      %2182 = vmatprep.subr.mxu0 0.0
      %2183 = vmatpush1.msra.mxu0 0.0
      %2184 = vmatprep.subr.mxu0 0.0
      %2185 = vmatpush1.msra.mxu0 0.0
      %2186 = vmatprep.subr.mxu0 0.0
      %2187 = vmatpush1.msra.mxu0 0.0
      %2188 = vmatprep.subr.mxu0 0.0
      %2189 = vmatpush1.msra.mxu0 0.0
      %2190 = vmatprep.subr.mxu0 0.0
      %2191 = vmatpush1.msra.mxu0 0.0
      %2192 = vmatprep.subr.mxu0 0.0
      %2193 = vmatpush1.msra.mxu0 0.0
      %2194 = vmatprep.subr.mxu0 0.0
      %2195 = vmatpush1.msra.mxu0 0.0
      %2196 = vmatprep.subr.mxu0 0.0
      %2197 = vmatpush1.msra.mxu0 %v2141
      %2198 = vmatprep.subr.mxu0 0.0
      %2199 = vmatpush2.msra.mxu0 0.0
      %2200 = vmatprep.subr.mxu0 0.0
      %2201 = vmatpush2.msra.mxu0 0.0
      %2202 = vmatprep.subr.mxu0 0.0
      %2203 = vmatpush2.msra.mxu0 0.0
      %2204 = vmatprep.subr.mxu0 0.0
      %2205 = vmatpush2.msra.mxu0 0.0
      %2206 = vmatprep.subr.mxu0 0.0
      %2207 = vmatpush2.msra.mxu0 0.0
      %2208 = vmatprep.subr.mxu0 0.0
      %2209 = vmatpush2.msra.mxu0 0.0
      %2210 = vmatprep.subr.mxu0 0.0
      %2211 = vmatpush2.msra.mxu0 0.0
      %2212 = vmatprep.subr.mxu0 0.0
      %2213 = vmatpush2.msra.mxu0 0.0
      %2214 = vmatprep.subr.mxu0 0.0
      %2215 = vmatpush2.msra.mxu0 0.0
      %2216 = vmatprep.subr.mxu0 0.0
      %2217 = vmatpush2.msra.mxu0 0.0
      %2218 = vmatprep.subr.mxu0 0.0
      %2219 = vmatpush2.msra.mxu0 0.0
      %2220 = vmatprep.subr.mxu0 0.0
      %2221 = vmatpush2.msra.mxu0 0.0
      %2222 = vmatprep.subr.mxu0 0.0
      %2223 = vmatpush2.msra.mxu0 0.0
      %2224 = vmatprep.subr.mxu0 0.0
      %2225 = vmatpush2.msra.mxu0 0.0
      %2226 = vmatprep.subr.mxu0 0.0
      %2227 = vmatpush2.msra.mxu0 0.0
      %2228 = vmatprep.subr.mxu0 0.0
      %2229 = vmatpush2.msra.mxu0 0.0
      %2230 = vmatprep.mubr.f32.mxu0 0.0
      %2231 = vmatmul.mubr.f32.gmra.mxu0 %v2143
      %v2232 = vpop.f32.mrf.mxu0
      %v2233 = vadd.f32 0.0, %v2232
      %v2234 = vpop.f32.mrf.mxu0
      %2235 = vmatprep.mubr.f32.mxu0 0.0
      %2236 = vmatmul.mubr.f32.gmra.mxu0 %v2146
      %v2237 = vpop.f32.mrf.mxu0
      %v2238 = vadd.f32 0.0, %v2237
      %v2239 = vpop.f32.mrf.mxu0
      %2240 = vmatprep.mubr.f32.mxu0 0.0
      %2241 = vmatmul.mubr.f32.gmra.mxu0 %v2149
      %v2242 = vpop.f32.mrf.mxu0
      %v2243 = vadd.f32 0.0, %v2242
      %v2244 = vpop.f32.mrf.mxu0
      %2245 = vmatprep.mubr.f32.mxu0 0.0
      %2246 = vmatmul.mubr.f32.gmra.mxu0 %v2152
      %v2247 = vpop.f32.mrf.mxu0
      %v2248 = vadd.f32 0.0, %v2247
      %v2249 = vpop.f32.mrf.mxu0
      %2250 = vmatprep.mubr.f32.mxu0 0.0
      %2251 = vmatmul.mubr.f32.gmra.mxu0 %v2155
      %v2252 = vpop.f32.mrf.mxu0
      %v2253 = vadd.f32 0.0, %v2252
      %v2254 = vpop.f32.mrf.mxu0
      %2255 = vmatprep.mubr.f32.mxu0 0.0
      %2256 = vmatmul.mubr.f32.gmra.mxu0 %v2158
      %v2257 = vpop.f32.mrf.mxu0
      %v2258 = vadd.f32 0.0, %v2257
      %v2259 = vpop.f32.mrf.mxu0
      %2260 = vmatprep.mubr.f32.mxu0 0.0
      %2261 = vmatmul.mubr.f32.gmra.mxu0 %v2161
      %v2262 = vpop.f32.mrf.mxu0
      %v2263 = vadd.f32 0.0, %v2262
      %v2264 = vpop.f32.mrf.mxu0
      %2265 = vmatprep.mubr.f32.mxu0 0.0
      %2266 = vmatmul.mubr.f32.gmra.mxu0 %v2164
      %v2267 = vpop.f32.mrf.mxu0
      %v2268 = vadd.f32 0.0, %v2267
      %v2269 = vpop.f32.mrf.mxu0
      %2270 = vdwg.mxu0
      %v2271 = vadd.f32 %v2124, %v2233
      %v2272 = vadd.f32 %v2125, %v2238
      %v2273 = vadd.f32 %v2126, %v2243
      %v2274 = vadd.f32 %v2127, %v2248
      %v2275 = vadd.f32 %v2128, %v2253
      %v2276 = vadd.f32 %v2129, %v2258
      %v2277 = vadd.f32 %v2130, %v2263
      %v2278 = vadd.f32 %v2131, %v2268
      %v2279 = vld [vmem:[%s1699 + $0x1] sm:$0xff]
      %v2280 = vld [vmem:[%s1699 + $0x11] sm:$0xff]
      %v2281 = vld [vmem:[%s1699 + $0x21] sm:$0xff]
      %v2282 = vld [vmem:[%s1699 + $0x31] sm:$0xff]
      %v2283 = vld [vmem:[%s1699 + $0x41] sm:$0xff]
      %v2284 = vld [vmem:[%s1699 + $0x51] sm:$0xff]
      %v2285 = vld [vmem:[%s1699 + $0x61] sm:$0xff]
      %v2286 = vld [vmem:[%s1699 + $0x71] sm:$0xff]
      %s2287 = scalar_lea.vmem %s2, 32
      %v2288 = vld [vmem:[%s2287] sm:$0xff]
      %v2290 = vsel %vm1677, %v2279, 0
      %v2293 = vsel %vm1677, %v2280, 0
      %v2296 = vsel %vm1677, %v2281, 0
      %v2299 = vsel %vm1677, %v2282, 0
      %v2302 = vsel %vm1677, %v2283, 0
      %v2305 = vsel %vm1677, %v2284, 0
      %v2308 = vsel %vm1677, %v2285, 0
      %v2311 = vsel %vm1677, %v2286, 0
      %2313 = vmatprep.subr.mxu0 0.0
      %2314 = vmatpush1.msra.mxu0 0.0
      %2315 = vmatprep.subr.mxu0 0.0
      %2316 = vmatpush1.msra.mxu0 0.0
      %2317 = vmatprep.subr.mxu0 0.0
      %2318 = vmatpush1.msra.mxu0 0.0
      %2319 = vmatprep.subr.mxu0 0.0
      %2320 = vmatpush1.msra.mxu0 0.0
      %2321 = vmatprep.subr.mxu0 0.0
      %2322 = vmatpush1.msra.mxu0 0.0
      %2323 = vmatprep.subr.mxu0 0.0
      %2324 = vmatpush1.msra.mxu0 0.0
      %2325 = vmatprep.subr.mxu0 0.0
      %2326 = vmatpush1.msra.mxu0 0.0
      %2327 = vmatprep.subr.mxu0 0.0
      %2328 = vmatpush1.msra.mxu0 0.0
      %2329 = vmatprep.subr.mxu0 0.0
      %2330 = vmatpush1.msra.mxu0 0.0
      %2331 = vmatprep.subr.mxu0 0.0
      %2332 = vmatpush1.msra.mxu0 0.0
      %2333 = vmatprep.subr.mxu0 0.0
      %2334 = vmatpush1.msra.mxu0 0.0
      %2335 = vmatprep.subr.mxu0 0.0
      %2336 = vmatpush1.msra.mxu0 0.0
      %2337 = vmatprep.subr.mxu0 0.0
      %2338 = vmatpush1.msra.mxu0 0.0
      %2339 = vmatprep.subr.mxu0 0.0
      %2340 = vmatpush1.msra.mxu0 0.0
      %2341 = vmatprep.subr.mxu0 0.0
      %2342 = vmatpush1.msra.mxu0 0.0
      %2343 = vmatprep.subr.mxu0 0.0
      %2344 = vmatpush1.msra.mxu0 %v2288
      %2345 = vmatprep.subr.mxu0 0.0
      %2346 = vmatpush2.msra.mxu0 0.0
      %2347 = vmatprep.subr.mxu0 0.0
      %2348 = vmatpush2.msra.mxu0 0.0
      %2349 = vmatprep.subr.mxu0 0.0
      %2350 = vmatpush2.msra.mxu0 0.0
      %2351 = vmatprep.subr.mxu0 0.0
      %2352 = vmatpush2.msra.mxu0 0.0
      %2353 = vmatprep.subr.mxu0 0.0
      %2354 = vmatpush2.msra.mxu0 0.0
      %2355 = vmatprep.subr.mxu0 0.0
      %2356 = vmatpush2.msra.mxu0 0.0
      %2357 = vmatprep.subr.mxu0 0.0
      %2358 = vmatpush2.msra.mxu0 0.0
      %2359 = vmatprep.subr.mxu0 0.0
      %2360 = vmatpush2.msra.mxu0 0.0
      %2361 = vmatprep.subr.mxu0 0.0
      %2362 = vmatpush2.msra.mxu0 0.0
      %2363 = vmatprep.subr.mxu0 0.0
      %2364 = vmatpush2.msra.mxu0 0.0
      %2365 = vmatprep.subr.mxu0 0.0
      %2366 = vmatpush2.msra.mxu0 0.0
      %2367 = vmatprep.subr.mxu0 0.0
      %2368 = vmatpush2.msra.mxu0 0.0
      %2369 = vmatprep.subr.mxu0 0.0
      %2370 = vmatpush2.msra.mxu0 0.0
      %2371 = vmatprep.subr.mxu0 0.0
      %2372 = vmatpush2.msra.mxu0 0.0
      %2373 = vmatprep.subr.mxu0 0.0
      %2374 = vmatpush2.msra.mxu0 0.0
      %2375 = vmatprep.subr.mxu0 0.0
      %2376 = vmatpush2.msra.mxu0 0.0
      %2377 = vmatprep.mubr.f32.mxu0 0.0
      %2378 = vmatmul.mubr.f32.gmra.mxu0 %v2290
      %v2379 = vpop.f32.mrf.mxu0
      %v2380 = vadd.f32 0.0, %v2379
      %v2381 = vpop.f32.mrf.mxu0
      %2382 = vmatprep.mubr.f32.mxu0 0.0
      %2383 = vmatmul.mubr.f32.gmra.mxu0 %v2293
      %v2384 = vpop.f32.mrf.mxu0
      %v2385 = vadd.f32 0.0, %v2384
      %v2386 = vpop.f32.mrf.mxu0
      %2387 = vmatprep.mubr.f32.mxu0 0.0
      %2388 = vmatmul.mubr.f32.gmra.mxu0 %v2296
      %v2389 = vpop.f32.mrf.mxu0
      %v2390 = vadd.f32 0.0, %v2389
      %v2391 = vpop.f32.mrf.mxu0
      %2392 = vmatprep.mubr.f32.mxu0 0.0
      %2393 = vmatmul.mubr.f32.gmra.mxu0 %v2299
      %v2394 = vpop.f32.mrf.mxu0
      %v2395 = vadd.f32 0.0, %v2394
      %v2396 = vpop.f32.mrf.mxu0
      %2397 = vmatprep.mubr.f32.mxu0 0.0
      %2398 = vmatmul.mubr.f32.gmra.mxu0 %v2302
      %v2399 = vpop.f32.mrf.mxu0
      %v2400 = vadd.f32 0.0, %v2399
      %v2401 = vpop.f32.mrf.mxu0
      %2402 = vmatprep.mubr.f32.mxu0 0.0
      %2403 = vmatmul.mubr.f32.gmra.mxu0 %v2305
      %v2404 = vpop.f32.mrf.mxu0
      %v2405 = vadd.f32 0.0, %v2404
      %v2406 = vpop.f32.mrf.mxu0
      %2407 = vmatprep.mubr.f32.mxu0 0.0
      %2408 = vmatmul.mubr.f32.gmra.mxu0 %v2308
      %v2409 = vpop.f32.mrf.mxu0
      %v2410 = vadd.f32 0.0, %v2409
      %v2411 = vpop.f32.mrf.mxu0
      %2412 = vmatprep.mubr.f32.mxu0 0.0
      %2413 = vmatmul.mubr.f32.gmra.mxu0 %v2311
      %v2414 = vpop.f32.mrf.mxu0
      %v2415 = vadd.f32 0.0, %v2414
      %v2416 = vpop.f32.mrf.mxu0
      %2417 = vdwg.mxu0
      %v2418 = vadd.f32 %v2271, %v2380
      %v2419 = vadd.f32 %v2272, %v2385
      %v2420 = vadd.f32 %v2273, %v2390
      %v2421 = vadd.f32 %v2274, %v2395
      %v2422 = vadd.f32 %v2275, %v2400
      %v2423 = vadd.f32 %v2276, %v2405
      %v2424 = vadd.f32 %v2277, %v2410
      %v2425 = vadd.f32 %v2278, %v2415
      %v2426 = vld [vmem:[%s1699 + $0x2] sm:$0xff]
      %v2427 = vld [vmem:[%s1699 + $0x12] sm:$0xff]
      %v2428 = vld [vmem:[%s1699 + $0x22] sm:$0xff]
      %v2429 = vld [vmem:[%s1699 + $0x32] sm:$0xff]
      %v2430 = vld [vmem:[%s1699 + $0x42] sm:$0xff]
      %v2431 = vld [vmem:[%s1699 + $0x52] sm:$0xff]
      %v2432 = vld [vmem:[%s1699 + $0x62] sm:$0xff]
      %v2433 = vld [vmem:[%s1699 + $0x72] sm:$0xff]
      %s2434 = scalar_lea.vmem %s2, 40
      %v2435 = vld [vmem:[%s2434] sm:$0xff]
      %v2437 = vsel %vm1677, %v2426, 0
      %v2440 = vsel %vm1677, %v2427, 0
      %v2443 = vsel %vm1677, %v2428, 0
      %v2446 = vsel %vm1677, %v2429, 0
      %v2449 = vsel %vm1677, %v2430, 0
      %v2452 = vsel %vm1677, %v2431, 0
      %v2455 = vsel %vm1677, %v2432, 0
      %v2458 = vsel %vm1677, %v2433, 0
      %2460 = vmatprep.subr.mxu0 0.0
      %2461 = vmatpush1.msra.mxu0 0.0
      %2462 = vmatprep.subr.mxu0 0.0
      %2463 = vmatpush1.msra.mxu0 0.0
      %2464 = vmatprep.subr.mxu0 0.0
      %2465 = vmatpush1.msra.mxu0 0.0
      %2466 = vmatprep.subr.mxu0 0.0
      %2467 = vmatpush1.msra.mxu0 0.0
      %2468 = vmatprep.subr.mxu0 0.0
      %2469 = vmatpush1.msra.mxu0 0.0
      %2470 = vmatprep.subr.mxu0 0.0
      %2471 = vmatpush1.msra.mxu0 0.0
      %2472 = vmatprep.subr.mxu0 0.0
      %2473 = vmatpush1.msra.mxu0 0.0
      %2474 = vmatprep.subr.mxu0 0.0
      %2475 = vmatpush1.msra.mxu0 0.0
      %2476 = vmatprep.subr.mxu0 0.0
      %2477 = vmatpush1.msra.mxu0 0.0
      %2478 = vmatprep.subr.mxu0 0.0
      %2479 = vmatpush1.msra.mxu0 0.0
      %2480 = vmatprep.subr.mxu0 0.0
      %2481 = vmatpush1.msra.mxu0 0.0
      %2482 = vmatprep.subr.mxu0 0.0
      %2483 = vmatpush1.msra.mxu0 0.0
      %2484 = vmatprep.subr.mxu0 0.0
      %2485 = vmatpush1.msra.mxu0 0.0
      %2486 = vmatprep.subr.mxu0 0.0
      %2487 = vmatpush1.msra.mxu0 0.0
      %2488 = vmatprep.subr.mxu0 0.0
      %2489 = vmatpush1.msra.mxu0 0.0
      %2490 = vmatprep.subr.mxu0 0.0
      %2491 = vmatpush1.msra.mxu0 %v2435
      %2492 = vmatprep.subr.mxu0 0.0
      %2493 = vmatpush2.msra.mxu0 0.0
      %2494 = vmatprep.subr.mxu0 0.0
      %2495 = vmatpush2.msra.mxu0 0.0
      %2496 = vmatprep.subr.mxu0 0.0
      %2497 = vmatpush2.msra.mxu0 0.0
      %2498 = vmatprep.subr.mxu0 0.0
      %2499 = vmatpush2.msra.mxu0 0.0
      %2500 = vmatprep.subr.mxu0 0.0
      %2501 = vmatpush2.msra.mxu0 0.0
      %2502 = vmatprep.subr.mxu0 0.0
      %2503 = vmatpush2.msra.mxu0 0.0
      %2504 = vmatprep.subr.mxu0 0.0
      %2505 = vmatpush2.msra.mxu0 0.0
      %2506 = vmatprep.subr.mxu0 0.0
      %2507 = vmatpush2.msra.mxu0 0.0
      %2508 = vmatprep.subr.mxu0 0.0
      %2509 = vmatpush2.msra.mxu0 0.0
      %2510 = vmatprep.subr.mxu0 0.0
      %2511 = vmatpush2.msra.mxu0 0.0
      %2512 = vmatprep.subr.mxu0 0.0
      %2513 = vmatpush2.msra.mxu0 0.0
      %2514 = vmatprep.subr.mxu0 0.0
      %2515 = vmatpush2.msra.mxu0 0.0
      %2516 = vmatprep.subr.mxu0 0.0
      %2517 = vmatpush2.msra.mxu0 0.0
      %2518 = vmatprep.subr.mxu0 0.0
      %2519 = vmatpush2.msra.mxu0 0.0
      %2520 = vmatprep.subr.mxu0 0.0
      %2521 = vmatpush2.msra.mxu0 0.0
      %2522 = vmatprep.subr.mxu0 0.0
      %2523 = vmatpush2.msra.mxu0 0.0
      %2524 = vmatprep.mubr.f32.mxu0 0.0
      %2525 = vmatmul.mubr.f32.gmra.mxu0 %v2437
      %v2526 = vpop.f32.mrf.mxu0
      %v2527 = vadd.f32 0.0, %v2526
      %v2528 = vpop.f32.mrf.mxu0
      %2529 = vmatprep.mubr.f32.mxu0 0.0
      %2530 = vmatmul.mubr.f32.gmra.mxu0 %v2440
      %v2531 = vpop.f32.mrf.mxu0
      %v2532 = vadd.f32 0.0, %v2531
      %v2533 = vpop.f32.mrf.mxu0
      %2534 = vmatprep.mubr.f32.mxu0 0.0
      %2535 = vmatmul.mubr.f32.gmra.mxu0 %v2443
      %v2536 = vpop.f32.mrf.mxu0
      %v2537 = vadd.f32 0.0, %v2536
      %v2538 = vpop.f32.mrf.mxu0
      %2539 = vmatprep.mubr.f32.mxu0 0.0
      %2540 = vmatmul.mubr.f32.gmra.mxu0 %v2446
      %v2541 = vpop.f32.mrf.mxu0
      %v2542 = vadd.f32 0.0, %v2541
      %v2543 = vpop.f32.mrf.mxu0
      %2544 = vmatprep.mubr.f32.mxu0 0.0
      %2545 = vmatmul.mubr.f32.gmra.mxu0 %v2449
      %v2546 = vpop.f32.mrf.mxu0
      %v2547 = vadd.f32 0.0, %v2546
      %v2548 = vpop.f32.mrf.mxu0
      %2549 = vmatprep.mubr.f32.mxu0 0.0
      %2550 = vmatmul.mubr.f32.gmra.mxu0 %v2452
      %v2551 = vpop.f32.mrf.mxu0
      %v2552 = vadd.f32 0.0, %v2551
      %v2553 = vpop.f32.mrf.mxu0
      %2554 = vmatprep.mubr.f32.mxu0 0.0
      %2555 = vmatmul.mubr.f32.gmra.mxu0 %v2455
      %v2556 = vpop.f32.mrf.mxu0
      %v2557 = vadd.f32 0.0, %v2556
      %v2558 = vpop.f32.mrf.mxu0
      %2559 = vmatprep.mubr.f32.mxu0 0.0
      %2560 = vmatmul.mubr.f32.gmra.mxu0 %v2458
      %v2561 = vpop.f32.mrf.mxu0
      %v2562 = vadd.f32 0.0, %v2561
      %v2563 = vpop.f32.mrf.mxu0
      %2564 = vdwg.mxu0
      %v2565 = vadd.f32 %v2418, %v2527
      %v2566 = vadd.f32 %v2419, %v2532
      %v2567 = vadd.f32 %v2420, %v2537
      %v2568 = vadd.f32 %v2421, %v2542
      %v2569 = vadd.f32 %v2422, %v2547
      %v2570 = vadd.f32 %v2423, %v2552
      %v2571 = vadd.f32 %v2424, %v2557
      %v2572 = vadd.f32 %v2425, %v2562
      %s2573 = scalar_lea.vmem [#allocation3], 32
      %v2574 = vld [vmem:[%s2573] sm:$0xff]
      %v2575 = vld [vmem:[%s2573 + $0x10] sm:$0xff]
      %v2576 = vld [vmem:[%s2573 + $0x20] sm:$0xff]
      %v2577 = vld [vmem:[%s2573 + $0x30] sm:$0xff]
      %v2578 = vld [vmem:[%s2573 + $0x40] sm:$0xff]
      %v2579 = vld [vmem:[%s2573 + $0x50] sm:$0xff]
      %v2580 = vld [vmem:[%s2573 + $0x60] sm:$0xff]
      %v2581 = vld [vmem:[%s2573 + $0x70] sm:$0xff]
      %s2582 = scalar_lea.vmem %s2, 48
      %v2583 = vld [vmem:[%s2582] sm:$0xff]
      %v2585 = vsel %vm1677, %v2574, 0
      %v2588 = vsel %vm1677, %v2575, 0
      %v2591 = vsel %vm1677, %v2576, 0
      %v2594 = vsel %vm1677, %v2577, 0
      %v2597 = vsel %vm1677, %v2578, 0
      %v2600 = vsel %vm1677, %v2579, 0
      %v2603 = vsel %vm1677, %v2580, 0
      %v2606 = vsel %vm1677, %v2581, 0
      %2608 = vmatprep.subr.mxu0 0.0
      %2609 = vmatpush1.msra.mxu0 0.0
      %2610 = vmatprep.subr.mxu0 0.0
      %2611 = vmatpush1.msra.mxu0 0.0
      %2612 = vmatprep.subr.mxu0 0.0
      %2613 = vmatpush1.msra.mxu0 0.0
      %2614 = vmatprep.subr.mxu0 0.0
      %2615 = vmatpush1.msra.mxu0 0.0
      %2616 = vmatprep.subr.mxu0 0.0
      %2617 = vmatpush1.msra.mxu0 0.0
      %2618 = vmatprep.subr.mxu0 0.0
      %2619 = vmatpush1.msra.mxu0 0.0
      %2620 = vmatprep.subr.mxu0 0.0
      %2621 = vmatpush1.msra.mxu0 0.0
      %2622 = vmatprep.subr.mxu0 0.0
      %2623 = vmatpush1.msra.mxu0 0.0
      %2624 = vmatprep.subr.mxu0 0.0
      %2625 = vmatpush1.msra.mxu0 0.0
      %2626 = vmatprep.subr.mxu0 0.0
      %2627 = vmatpush1.msra.mxu0 0.0
      %2628 = vmatprep.subr.mxu0 0.0
      %2629 = vmatpush1.msra.mxu0 0.0
      %2630 = vmatprep.subr.mxu0 0.0
      %2631 = vmatpush1.msra.mxu0 0.0
      %2632 = vmatprep.subr.mxu0 0.0
      %2633 = vmatpush1.msra.mxu0 0.0
      %2634 = vmatprep.subr.mxu0 0.0
      %2635 = vmatpush1.msra.mxu0 0.0
      %2636 = vmatprep.subr.mxu0 0.0
      %2637 = vmatpush1.msra.mxu0 0.0
      %2638 = vmatprep.subr.mxu0 0.0
      %2639 = vmatpush1.msra.mxu0 %v2583
      %2640 = vmatprep.subr.mxu0 0.0
      %2641 = vmatpush2.msra.mxu0 0.0
      %2642 = vmatprep.subr.mxu0 0.0
      %2643 = vmatpush2.msra.mxu0 0.0
      %2644 = vmatprep.subr.mxu0 0.0
      %2645 = vmatpush2.msra.mxu0 0.0
      %2646 = vmatprep.subr.mxu0 0.0
      %2647 = vmatpush2.msra.mxu0 0.0
      %2648 = vmatprep.subr.mxu0 0.0
      %2649 = vmatpush2.msra.mxu0 0.0
      %2650 = vmatprep.subr.mxu0 0.0
      %2651 = vmatpush2.msra.mxu0 0.0
      %2652 = vmatprep.subr.mxu0 0.0
      %2653 = vmatpush2.msra.mxu0 0.0
      %2654 = vmatprep.subr.mxu0 0.0
      %2655 = vmatpush2.msra.mxu0 0.0
      %2656 = vmatprep.subr.mxu0 0.0
      %2657 = vmatpush2.msra.mxu0 0.0
      %2658 = vmatprep.subr.mxu0 0.0
      %2659 = vmatpush2.msra.mxu0 0.0
      %2660 = vmatprep.subr.mxu0 0.0
      %2661 = vmatpush2.msra.mxu0 0.0
      %2662 = vmatprep.subr.mxu0 0.0
      %2663 = vmatpush2.msra.mxu0 0.0
      %2664 = vmatprep.subr.mxu0 0.0
      %2665 = vmatpush2.msra.mxu0 0.0
      %2666 = vmatprep.subr.mxu0 0.0
      %2667 = vmatpush2.msra.mxu0 0.0
      %2668 = vmatprep.subr.mxu0 0.0
      %2669 = vmatpush2.msra.mxu0 0.0
      %2670 = vmatprep.subr.mxu0 0.0
      %2671 = vmatpush2.msra.mxu0 0.0
      %2672 = vmatprep.mubr.f32.mxu0 0.0
      %2673 = vmatmul.mubr.f32.gmra.mxu0 %v2585
      %v2674 = vpop.f32.mrf.mxu0
      %v2675 = vadd.f32 0.0, %v2674
      %v2676 = vpop.f32.mrf.mxu0
      %2677 = vmatprep.mubr.f32.mxu0 0.0
      %2678 = vmatmul.mubr.f32.gmra.mxu0 %v2588
      %v2679 = vpop.f32.mrf.mxu0
      %v2680 = vadd.f32 0.0, %v2679
      %v2681 = vpop.f32.mrf.mxu0
      %2682 = vmatprep.mubr.f32.mxu0 0.0
      %2683 = vmatmul.mubr.f32.gmra.mxu0 %v2591
      %v2684 = vpop.f32.mrf.mxu0
      %v2685 = vadd.f32 0.0, %v2684
      %v2686 = vpop.f32.mrf.mxu0
      %2687 = vmatprep.mubr.f32.mxu0 0.0
      %2688 = vmatmul.mubr.f32.gmra.mxu0 %v2594
      %v2689 = vpop.f32.mrf.mxu0
      %v2690 = vadd.f32 0.0, %v2689
      %v2691 = vpop.f32.mrf.mxu0
      %2692 = vmatprep.mubr.f32.mxu0 0.0
      %2693 = vmatmul.mubr.f32.gmra.mxu0 %v2597
      %v2694 = vpop.f32.mrf.mxu0
      %v2695 = vadd.f32 0.0, %v2694
      %v2696 = vpop.f32.mrf.mxu0
      %2697 = vmatprep.mubr.f32.mxu0 0.0
      %2698 = vmatmul.mubr.f32.gmra.mxu0 %v2600
      %v2699 = vpop.f32.mrf.mxu0
      %v2700 = vadd.f32 0.0, %v2699
      %v2701 = vpop.f32.mrf.mxu0
      %2702 = vmatprep.mubr.f32.mxu0 0.0
      %2703 = vmatmul.mubr.f32.gmra.mxu0 %v2603
      %v2704 = vpop.f32.mrf.mxu0
      %v2705 = vadd.f32 0.0, %v2704
      %v2706 = vpop.f32.mrf.mxu0
      %2707 = vmatprep.mubr.f32.mxu0 0.0
      %2708 = vmatmul.mubr.f32.gmra.mxu0 %v2606
      %v2709 = vpop.f32.mrf.mxu0
      %v2710 = vadd.f32 0.0, %v2709
      %v2711 = vpop.f32.mrf.mxu0
      %2712 = vdwg.mxu0
      %v2713 = vadd.f32 %v2565, %v2675
      %v2714 = vadd.f32 %v2566, %v2680
      %v2715 = vadd.f32 %v2567, %v2685
      %v2716 = vadd.f32 %v2568, %v2690
      %v2717 = vadd.f32 %v2569, %v2695
      %v2718 = vadd.f32 %v2570, %v2700
      %v2719 = vadd.f32 %v2571, %v2705
      %v2720 = vadd.f32 %v2572, %v2710
      %v2721 = vld [vmem:[%s2573 + $0x1] sm:$0xff]
      %v2722 = vld [vmem:[%s2573 + $0x11] sm:$0xff]
      %v2723 = vld [vmem:[%s2573 + $0x21] sm:$0xff]
      %v2724 = vld [vmem:[%s2573 + $0x31] sm:$0xff]
      %v2725 = vld [vmem:[%s2573 + $0x41] sm:$0xff]
      %v2726 = vld [vmem:[%s2573 + $0x51] sm:$0xff]
      %v2727 = vld [vmem:[%s2573 + $0x61] sm:$0xff]
      %v2728 = vld [vmem:[%s2573 + $0x71] sm:$0xff]
      %s2729 = scalar_lea.vmem %s2, 56
      %v2730 = vld [vmem:[%s2729] sm:$0xff]
      %v2732 = vsel %vm1677, %v2721, 0
      %v2735 = vsel %vm1677, %v2722, 0
      %v2738 = vsel %vm1677, %v2723, 0
      %v2741 = vsel %vm1677, %v2724, 0
      %v2744 = vsel %vm1677, %v2725, 0
      %v2747 = vsel %vm1677, %v2726, 0
      %v2750 = vsel %vm1677, %v2727, 0
      %v2753 = vsel %vm1677, %v2728, 0
      %2755 = vmatprep.subr.mxu0 0.0
      %2756 = vmatpush1.msra.mxu0 0.0
      %2757 = vmatprep.subr.mxu0 0.0
      %2758 = vmatpush1.msra.mxu0 0.0
      %2759 = vmatprep.subr.mxu0 0.0
      %2760 = vmatpush1.msra.mxu0 0.0
      %2761 = vmatprep.subr.mxu0 0.0
      %2762 = vmatpush1.msra.mxu0 0.0
      %2763 = vmatprep.subr.mxu0 0.0
      %2764 = vmatpush1.msra.mxu0 0.0
      %2765 = vmatprep.subr.mxu0 0.0
      %2766 = vmatpush1.msra.mxu0 0.0
      %2767 = vmatprep.subr.mxu0 0.0
      %2768 = vmatpush1.msra.mxu0 0.0
      %2769 = vmatprep.subr.mxu0 0.0
      %2770 = vmatpush1.msra.mxu0 0.0
      %2771 = vmatprep.subr.mxu0 0.0
      %2772 = vmatpush1.msra.mxu0 0.0
      %2773 = vmatprep.subr.mxu0 0.0
      %2774 = vmatpush1.msra.mxu0 0.0
      %2775 = vmatprep.subr.mxu0 0.0
      %2776 = vmatpush1.msra.mxu0 0.0
      %2777 = vmatprep.subr.mxu0 0.0
      %2778 = vmatpush1.msra.mxu0 0.0
      %2779 = vmatprep.subr.mxu0 0.0
      %2780 = vmatpush1.msra.mxu0 0.0
      %2781 = vmatprep.subr.mxu0 0.0
      %2782 = vmatpush1.msra.mxu0 0.0
      %2783 = vmatprep.subr.mxu0 0.0
      %2784 = vmatpush1.msra.mxu0 0.0
      %2785 = vmatprep.subr.mxu0 0.0
      %2786 = vmatpush1.msra.mxu0 %v2730
      %2787 = vmatprep.subr.mxu0 0.0
      %2788 = vmatpush2.msra.mxu0 0.0
      %2789 = vmatprep.subr.mxu0 0.0
      %2790 = vmatpush2.msra.mxu0 0.0
      %2791 = vmatprep.subr.mxu0 0.0
      %2792 = vmatpush2.msra.mxu0 0.0
      %2793 = vmatprep.subr.mxu0 0.0
      %2794 = vmatpush2.msra.mxu0 0.0
      %2795 = vmatprep.subr.mxu0 0.0
      %2796 = vmatpush2.msra.mxu0 0.0
      %2797 = vmatprep.subr.mxu0 0.0
      %2798 = vmatpush2.msra.mxu0 0.0
      %2799 = vmatprep.subr.mxu0 0.0
      %2800 = vmatpush2.msra.mxu0 0.0
      %2801 = vmatprep.subr.mxu0 0.0
      %2802 = vmatpush2.msra.mxu0 0.0
      %2803 = vmatprep.subr.mxu0 0.0
      %2804 = vmatpush2.msra.mxu0 0.0
      %2805 = vmatprep.subr.mxu0 0.0
      %2806 = vmatpush2.msra.mxu0 0.0
      %2807 = vmatprep.subr.mxu0 0.0
      %2808 = vmatpush2.msra.mxu0 0.0
      %2809 = vmatprep.subr.mxu0 0.0
      %2810 = vmatpush2.msra.mxu0 0.0
      %2811 = vmatprep.subr.mxu0 0.0
      %2812 = vmatpush2.msra.mxu0 0.0
      %2813 = vmatprep.subr.mxu0 0.0
      %2814 = vmatpush2.msra.mxu0 0.0
      %2815 = vmatprep.subr.mxu0 0.0
      %2816 = vmatpush2.msra.mxu0 0.0
      %2817 = vmatprep.subr.mxu0 0.0
      %2818 = vmatpush2.msra.mxu0 0.0
      %2819 = vmatprep.mubr.f32.mxu0 0.0
      %2820 = vmatmul.mubr.f32.gmra.mxu0 %v2732
      %v2821 = vpop.f32.mrf.mxu0
      %v2822 = vadd.f32 0.0, %v2821
      %v2823 = vpop.f32.mrf.mxu0
      %2824 = vmatprep.mubr.f32.mxu0 0.0
      %2825 = vmatmul.mubr.f32.gmra.mxu0 %v2735
      %v2826 = vpop.f32.mrf.mxu0
      %v2827 = vadd.f32 0.0, %v2826
      %v2828 = vpop.f32.mrf.mxu0
      %2829 = vmatprep.mubr.f32.mxu0 0.0
      %2830 = vmatmul.mubr.f32.gmra.mxu0 %v2738
      %v2831 = vpop.f32.mrf.mxu0
      %v2832 = vadd.f32 0.0, %v2831
      %v2833 = vpop.f32.mrf.mxu0
      %2834 = vmatprep.mubr.f32.mxu0 0.0
      %2835 = vmatmul.mubr.f32.gmra.mxu0 %v2741
      %v2836 = vpop.f32.mrf.mxu0
      %v2837 = vadd.f32 0.0, %v2836
      %v2838 = vpop.f32.mrf.mxu0
      %2839 = vmatprep.mubr.f32.mxu0 0.0
      %2840 = vmatmul.mubr.f32.gmra.mxu0 %v2744
      %v2841 = vpop.f32.mrf.mxu0
      %v2842 = vadd.f32 0.0, %v2841
      %v2843 = vpop.f32.mrf.mxu0
      %2844 = vmatprep.mubr.f32.mxu0 0.0
      %2845 = vmatmul.mubr.f32.gmra.mxu0 %v2747
      %v2846 = vpop.f32.mrf.mxu0
      %v2847 = vadd.f32 0.0, %v2846
      %v2848 = vpop.f32.mrf.mxu0
      %2849 = vmatprep.mubr.f32.mxu0 0.0
      %2850 = vmatmul.mubr.f32.gmra.mxu0 %v2750
      %v2851 = vpop.f32.mrf.mxu0
      %v2852 = vadd.f32 0.0, %v2851
      %v2853 = vpop.f32.mrf.mxu0
      %2854 = vmatprep.mubr.f32.mxu0 0.0
      %2855 = vmatmul.mubr.f32.gmra.mxu0 %v2753
      %v2856 = vpop.f32.mrf.mxu0
      %v2857 = vadd.f32 0.0, %v2856
      %v2858 = vpop.f32.mrf.mxu0
      %2859 = vdwg.mxu0
      %v2860 = vadd.f32 %v2713, %v2822
      %v2861 = vadd.f32 %v2714, %v2827
      %v2862 = vadd.f32 %v2715, %v2832
      %v2863 = vadd.f32 %v2716, %v2837
      %v2864 = vadd.f32 %v2717, %v2842
      %v2865 = vadd.f32 %v2718, %v2847
      %v2866 = vadd.f32 %v2719, %v2852
      %v2867 = vadd.f32 %v2720, %v2857
      %v2868 = vld [vmem:[%s2573 + $0x2] sm:$0xff]
      %v2869 = vld [vmem:[%s2573 + $0x12] sm:$0xff]
      %v2870 = vld [vmem:[%s2573 + $0x22] sm:$0xff]
      %v2871 = vld [vmem:[%s2573 + $0x32] sm:$0xff]
      %v2872 = vld [vmem:[%s2573 + $0x42] sm:$0xff]
      %v2873 = vld [vmem:[%s2573 + $0x52] sm:$0xff]
      %v2874 = vld [vmem:[%s2573 + $0x62] sm:$0xff]
      %v2875 = vld [vmem:[%s2573 + $0x72] sm:$0xff]
      %s2876 = scalar_lea.vmem %s2, 64
      %v2877 = vld [vmem:[%s2876] sm:$0xff]
      %v2879 = vsel %vm1677, %v2868, 0
      %v2882 = vsel %vm1677, %v2869, 0
      %v2885 = vsel %vm1677, %v2870, 0
      %v2888 = vsel %vm1677, %v2871, 0
      %v2891 = vsel %vm1677, %v2872, 0
      %v2894 = vsel %vm1677, %v2873, 0
      %v2897 = vsel %vm1677, %v2874, 0
      %v2900 = vsel %vm1677, %v2875, 0
      %2902 = vmatprep.subr.mxu0 0.0
      %2903 = vmatpush1.msra.mxu0 0.0
      %2904 = vmatprep.subr.mxu0 0.0
      %2905 = vmatpush1.msra.mxu0 0.0
      %2906 = vmatprep.subr.mxu0 0.0
      %2907 = vmatpush1.msra.mxu0 0.0
      %2908 = vmatprep.subr.mxu0 0.0
      %2909 = vmatpush1.msra.mxu0 0.0
      %2910 = vmatprep.subr.mxu0 0.0
      %2911 = vmatpush1.msra.mxu0 0.0
      %2912 = vmatprep.subr.mxu0 0.0
      %2913 = vmatpush1.msra.mxu0 0.0
      %2914 = vmatprep.subr.mxu0 0.0
      %2915 = vmatpush1.msra.mxu0 0.0
      %2916 = vmatprep.subr.mxu0 0.0
      %2917 = vmatpush1.msra.mxu0 0.0
      %2918 = vmatprep.subr.mxu0 0.0
      %2919 = vmatpush1.msra.mxu0 0.0
      %2920 = vmatprep.subr.mxu0 0.0
      %2921 = vmatpush1.msra.mxu0 0.0
      %2922 = vmatprep.subr.mxu0 0.0
      %2923 = vmatpush1.msra.mxu0 0.0
      %2924 = vmatprep.subr.mxu0 0.0
      %2925 = vmatpush1.msra.mxu0 0.0
      %2926 = vmatprep.subr.mxu0 0.0
      %2927 = vmatpush1.msra.mxu0 0.0
      %2928 = vmatprep.subr.mxu0 0.0
      %2929 = vmatpush1.msra.mxu0 0.0
      %2930 = vmatprep.subr.mxu0 0.0
      %2931 = vmatpush1.msra.mxu0 0.0
      %2932 = vmatprep.subr.mxu0 0.0
      %2933 = vmatpush1.msra.mxu0 %v2877
      %2934 = vmatprep.subr.mxu0 0.0
      %2935 = vmatpush2.msra.mxu0 0.0
      %2936 = vmatprep.subr.mxu0 0.0
      %2937 = vmatpush2.msra.mxu0 0.0
      %2938 = vmatprep.subr.mxu0 0.0
      %2939 = vmatpush2.msra.mxu0 0.0
      %2940 = vmatprep.subr.mxu0 0.0
      %2941 = vmatpush2.msra.mxu0 0.0
      %2942 = vmatprep.subr.mxu0 0.0
      %2943 = vmatpush2.msra.mxu0 0.0
      %2944 = vmatprep.subr.mxu0 0.0
      %2945 = vmatpush2.msra.mxu0 0.0
      %2946 = vmatprep.subr.mxu0 0.0
      %2947 = vmatpush2.msra.mxu0 0.0
      %2948 = vmatprep.subr.mxu0 0.0
      %2949 = vmatpush2.msra.mxu0 0.0
      %2950 = vmatprep.subr.mxu0 0.0
      %2951 = vmatpush2.msra.mxu0 0.0
      %2952 = vmatprep.subr.mxu0 0.0
      %2953 = vmatpush2.msra.mxu0 0.0
      %2954 = vmatprep.subr.mxu0 0.0
      %2955 = vmatpush2.msra.mxu0 0.0
      %2956 = vmatprep.subr.mxu0 0.0
      %2957 = vmatpush2.msra.mxu0 0.0
      %2958 = vmatprep.subr.mxu0 0.0
      %2959 = vmatpush2.msra.mxu0 0.0
      %2960 = vmatprep.subr.mxu0 0.0
      %2961 = vmatpush2.msra.mxu0 0.0
      %2962 = vmatprep.subr.mxu0 0.0
      %2963 = vmatpush2.msra.mxu0 0.0
      %2964 = vmatprep.subr.mxu0 0.0
      %2965 = vmatpush2.msra.mxu0 0.0
      %2966 = vmatprep.mubr.f32.mxu0 0.0
      %2967 = vmatmul.mubr.f32.gmra.mxu0 %v2879
      %v2968 = vpop.f32.mrf.mxu0
      %v2969 = vadd.f32 0.0, %v2968
      %v2970 = vpop.f32.mrf.mxu0
      %2971 = vmatprep.mubr.f32.mxu0 0.0
      %2972 = vmatmul.mubr.f32.gmra.mxu0 %v2882
      %v2973 = vpop.f32.mrf.mxu0
      %v2974 = vadd.f32 0.0, %v2973
      %v2975 = vpop.f32.mrf.mxu0
      %2976 = vmatprep.mubr.f32.mxu0 0.0
      %2977 = vmatmul.mubr.f32.gmra.mxu0 %v2885
      %v2978 = vpop.f32.mrf.mxu0
      %v2979 = vadd.f32 0.0, %v2978
      %v2980 = vpop.f32.mrf.mxu0
      %2981 = vmatprep.mubr.f32.mxu0 0.0
      %2982 = vmatmul.mubr.f32.gmra.mxu0 %v2888
      %v2983 = vpop.f32.mrf.mxu0
      %v2984 = vadd.f32 0.0, %v2983
      %v2985 = vpop.f32.mrf.mxu0
      %2986 = vmatprep.mubr.f32.mxu0 0.0
      %2987 = vmatmul.mubr.f32.gmra.mxu0 %v2891
      %v2988 = vpop.f32.mrf.mxu0
      %v2989 = vadd.f32 0.0, %v2988
      %v2990 = vpop.f32.mrf.mxu0
      %2991 = vmatprep.mubr.f32.mxu0 0.0
      %2992 = vmatmul.mubr.f32.gmra.mxu0 %v2894
      %v2993 = vpop.f32.mrf.mxu0
      %v2994 = vadd.f32 0.0, %v2993
      %v2995 = vpop.f32.mrf.mxu0
      %2996 = vmatprep.mubr.f32.mxu0 0.0
      %2997 = vmatmul.mubr.f32.gmra.mxu0 %v2897
      %v2998 = vpop.f32.mrf.mxu0
      %v2999 = vadd.f32 0.0, %v2998
      %v3000 = vpop.f32.mrf.mxu0
      %3001 = vmatprep.mubr.f32.mxu0 0.0
      %3002 = vmatmul.mubr.f32.gmra.mxu0 %v2900
      %v3003 = vpop.f32.mrf.mxu0
      %v3004 = vadd.f32 0.0, %v3003
      %v3005 = vpop.f32.mrf.mxu0
      %3006 = vdwg.mxu0
      %v3007 = vadd.f32 %v2860, %v2969
      %v3008 = vadd.f32 %v2861, %v2974
      %v3009 = vadd.f32 %v2862, %v2979
      %v3010 = vadd.f32 %v2863, %v2984
      %v3011 = vadd.f32 %v2864, %v2989
      %v3012 = vadd.f32 %v2865, %v2994
      %v3013 = vadd.f32 %v2866, %v2999
      %v3014 = vadd.f32 %v2867, %v3004
      %v3015 = vld [vmem:[%s4] sm:$0x1]
      %v3017 = vlaneseq
      %v3018 = vshrl.u32 %v3017, 7
      %v3019 = vsub.s32 0, %v3018
      %v3020 = vrot.slane %v3015, %v3019
      %v3022 = vadd.f32 %v3007, %v3020
      %v3023 = vadd.f32 %v3008, %v3020
      %v3024 = vadd.f32 %v3009, %v3020
      %v3025 = vadd.f32 %v3010, %v3020
      %v3026 = vadd.f32 %v3011, %v3020
      %v3027 = vadd.f32 %v3012, %v3020
      %v3028 = vadd.f32 %v3013, %v3020
      %v3029 = vadd.f32 %v3014, %v3020
      %v3030 = vmax.f32 %v3022, 0.0
      %v3031 = vmax.f32 %v3023, 0.0
      %v3032 = vmax.f32 %v3024, 0.0
      %v3033 = vmax.f32 %v3025, 0.0
      %v3034 = vmax.f32 %v3026, 0.0
      %v3035 = vmax.f32 %v3027, 0.0
      %v3036 = vmax.f32 %v3028, 0.0
      %v3037 = vmax.f32 %v3029, 0.0
      %3038 = vxpose.xlu0.b32.start [1/16] %v3030, 128
      %3039 = vxpose.xlu0.b32.cont [2/16] %v3031, 128
      %3040 = vxpose.xlu0.b32.cont [3/16] %v3032, 128
      %3041 = vxpose.xlu0.b32.cont [4/16] %v3033, 128
      %3042 = vxpose.xlu0.b32.cont [5/16] %v3034, 128
      %3043 = vxpose.xlu0.b32.cont [6/16] %v3035, 128
      %3044 = vxpose.xlu0.b32.cont [7/16] %v3036, 128
      %3045 = vxpose.xlu0.b32.cont [8/16] %v3037, 128
      %3046 = vxpose.xlu0.b32.cont [9/16] 0.0, 128
      %3047 = vxpose.xlu0.b32.cont [10/16] 0.0, 128
      %3048 = vxpose.xlu0.b32.cont [11/16] 0.0, 128
      %3049 = vxpose.xlu0.b32.cont [12/16] 0.0, 128
      %3050 = vxpose.xlu0.b32.cont [13/16] 0.0, 128
      %3051 = vxpose.xlu0.b32.cont [14/16] 0.0, 128
      %3052 = vxpose.xlu0.b32.cont [15/16] 0.0, 128
      %3053 = vxpose.xlu0.b32.end [16/16] 0.0, 128
      %v3054 = vpop.trf.xlu0
      %v3055 = vpop.trf.xlu0
      %v3056 = vpop.trf.xlu0
      %v3057 = vpop.trf.xlu0
      %v3058 = vpop.trf.xlu0
      %v3059 = vpop.trf.xlu0
      %v3060 = vpop.trf.xlu0
      %v3061 = vpop.trf.xlu0
      %v3062 = vpop.trf.xlu0
      %v3063 = vpop.trf.xlu0
      %v3064 = vpop.trf.xlu0
      %v3065 = vpop.trf.xlu0
      %v3066 = vpop.trf.xlu0
      %v3067 = vpop.trf.xlu0
      %v3068 = vpop.trf.xlu0
      %v3069 = vpop.trf.xlu0
      %vm3070 = vcmask 523264
      %3071 = vst.msk [vmem:[%s222] sm:$0xff] %vm3070, %v3054
      %p3072 = scmp.lt.s32.totalorder %s16, 1
      %s3073 = scalar_select %p3072, %s16, 1
      %s3074 = smul.addr %s3073, 8
      %s3075 = scalar_lea.vmem %s5, %s3074
      // Predicated region
      $region41: #{down_layer_forward.1} parent=39 // pred_check
        %p3076 = pneg %p144
      $region42: #{down_layer_forward.1} parent=39 // pred_check_branch
        %3078 = sbr.rel (%p3076) target = $region44
      $region43: #{down_layer_forward.1} parent=39 // pred_region
        _
      $region44: #{down_layer_forward.1} parent=39 // pred_fallthru
        _
    $region40: #{down_layer_forward.1} parent=5 // pred_fallthru
      _
    %p3079 = scmp.le.s32.totalorder 2, %s11
    // Predicated region
    $region45: #{down_layer_forward.1} parent=5 // pred_check
      %p3080 = pneg %p3079
    $region46: #{down_layer_forward.1} parent=5 // pred_check_branch
      %3082 = sbr.rel (%p3080) target = $region48
    $region47: #{down_layer_forward.1} parent=5 // pred_region
      %s3083 = ssub.s32 %s11, 2
      // Predicated region
      $region49: #{down_layer_forward.1} parent=47 // pred_check
        %p3084 = pneg %p150
      $region50: #{down_layer_forward.1} parent=47 // pred_check_branch
        %3086 = sbr.rel (%p3084) target = $region52
      $region51: #{down_layer_forward.1} parent=47 // pred_region
        %p3087 = scmp.lt.s32.totalorder %s17, 1
        %s3088 = scalar_select %p3087, %s17, 1
        %s3089 = smul.addr %s3088, 8
        %s3090 = scalar_lea.vmem %s5, %s3089
      $region52: #{down_layer_forward.1} parent=47 // pred_fallthru
        _
    $region48: #{down_layer_forward.1} parent=5 // pred_fallthru
      _
  $region6: #{down_layer_forward.1} parent=0 // loop_footer
    %s15 = sadd.s32 1, %s11
  $region7: #{down_layer_forward.1} parent=0 // loop_footer_branch
    %10 = sbr.rel target = $region3
  $region8: #{down_layer_forward.1} parent=0 // loop_exit
    _

</llo_original>
